<compile_context>
chip_gen: v6e
topology: v6e:2x2x1
jax: 0.10.0
libtpu: 0.0.40
codegen_flags: <defaults>
</compile_context>

<pallas_src>
import jax
import jax.numpy as jnp
from jax.experimental import pallas as pl
from jax.experimental.pallas import tpu as pltpu


def _round_up(x, m):
    return (x + m - 1) // m * m


def _pick_k_tile(C, HW, TB, NCp, itemsize, budget_bytes=6 * 1024 * 1024):
    """Largest TK = C*g with g | HW such that one x-block + one w-block fit the budget.

    g | HW guarantees TK divides K = C*HW exactly, so the reduction axis never has a
    ragged (garbage-padded) block.  Budget keeps double-buffered blocks well under the
    32 MiB default scoped VMEM (and v7x's 64 MiB physical VMEM).
    """
    best_g = 1
    for g in range(1, HW + 1):
        if HW % g:
            continue
        tk = C * g
        if (TB * tk + tk * NCp) * itemsize <= budget_bytes:
            best_g = g
    return C * best_g


def finetune_head_kernel(x_ref, w_ref, b_ref, o_ref, acc_ref):
    """One (batch-tile, K-tile) step of  y = x2d @ W_exp + b.

    x_ref  : (TB, TK)   feature-map slab (free reshape of the NCHW trunk output)
    w_ref  : (TK, NCp)  expanded classifier weight (1/HW pooling scale pre-folded)
    b_ref  : (1, NCp)   bias, f32
    o_ref  : (TB, NCp)  output logits, f32
    acc_ref: (TB, NCp)  f32 accumulator, persists across the K ("arbitrary") grid axis
    """
    k = pl.program_id(1)

    @pl.when(k == 0)
    def _init():
        acc_ref[...] = jnp.zeros_like(acc_ref)

    acc_ref[...] += jnp.dot(x_ref[...], w_ref[...],
                            preferred_element_type=jnp.float32)

    @pl.when(k == pl.num_programs(1) - 1)
    def _finalize():
        o_ref[...] = (acc_ref[...] + b_ref[...]).astype(o_ref.dtype)


def finetune_forward(x_nchw, weight, bias, *, block_b=128, compute_dtype=None):
    """FineTuneModel head: AdaptiveAvgPool2d((1,1)) + flatten + Linear, fused.

    x_nchw : (B, C, H, W)  trunk feature map in PyTorch NCHW layout (C must be 2048).
    weight : (num_classes, C)  PyTorch nn.Linear weight layout.
    bias   : (num_classes,)
    compute_dtype : e.g. jnp.bfloat16 to halve HBM traffic of this memory-bound
        kernel (ideally the trunk already emits bf16); accumulation stays f32.
    """
    B, C, H, W = x_nchw.shape
    NC, C_w = weight.shape
    assert C == C_w, "trunk channels must match Linear in_features (2048)"
    assert C % 128 == 0
    HW = H * W
    K = C * HW

    if compute_dtype is not None:
        x_nchw = x_nchw.astype(compute_dtype)
    in_dtype = x_nchw.dtype
    itemsize = jnp.dtype(in_dtype).itemsize

    # Free view: NCHW is contiguous over (C, H, W) -> no HBM transpose round-trip.
    x2d = x_nchw.reshape(B, K)

    # Lane-dense padded classifier width.
    NCp = max(128, _round_up(NC, 128))

    # Expanded weight: W_exp[c*HW + s, n] = weight[n, c] / HW  so that
    #   x2d @ W_exp == mean_{H,W}(x) @ weight.T   (pool fused into the matmul, and the
    # 1/HW mean scale rides the weight for free).  This is parameter preprocessing and
    # would be built once per checkpoint in a real model.  For very large num_classes
    # (>> 256) one would switch to an in-kernel pool-then-matmul variant instead.
    w_exp = jnp.repeat(weight.T.astype(jnp.float32) / HW, HW, axis=0)      # (K, NC)
    w_exp = jnp.pad(w_exp, ((0, 0), (0, NCp - NC))).astype(in_dtype)       # (K, NCp)
    b_pad = jnp.pad(bias.astype(jnp.float32), (0, NCp - NC)).reshape(1, NCp)

    # Batch tile: "parallel" grid axis -> sharded across the two TensorCores on v7x.
    TB = min(B, block_b)
    # K tile: divides K exactly, multiple of 128, sized for double-buffered VMEM fit.
    TK = _pick_k_tile(C, HW, TB, NCp, itemsize)

    grid = (pl.cdiv(B, TB), K // TK)

    out = pl.pallas_call(
        finetune_head_kernel,
        out_shape=jax.ShapeDtypeStruct((B, NCp), jnp.float32),
        grid_spec=pltpu.PrefetchScalarGridSpec(
            num_scalar_prefetch=0,
            grid=grid,
            in_specs=[
                pl.BlockSpec((TB, TK), lambda i, k: (i, k)),
                pl.BlockSpec((TK, NCp), lambda i, k: (k, 0)),
                pl.BlockSpec((1, NCp), lambda i, k: (0, 0)),
            ],
            out_specs=pl.BlockSpec((TB, NCp), lambda i, k: (i, 0)),
            scratch_shapes=[pltpu.VMEM((TB, NCp), jnp.float32)],
        ),
        compiler_params=pltpu.CompilerParams(
            dimension_semantics=("parallel", "arbitrary"),
            vmem_limit_bytes=32 * 1024 * 1024,
        ),
    )(x2d, w_exp, b_pad)

    return out[:, :NC]


if __name__ == "__main__":
    # Small shapes consistent with the module: the classifier requires 2048 features.
    B, C, H, W, NUM_CLASSES = 2, 2048, 4, 4, 16

    key = jax.random.PRNGKey(0)
    kx, kw, kb = jax.random.split(key, 3)
    x = jax.random.normal(kx, (B, C, H, W), dtype=jnp.float32)
    # Deterministic synthetic Linear(2048, num_classes) params (PyTorch layout).
    weight = jax.random.normal(kw, (NUM_CLASSES, C), dtype=jnp.float32) * 0.02
    bias = jax.random.normal(kb, (NUM_CLASSES,), dtype=jnp.float32) * 0.02

    # Pure-JAX reference of the same semantics (avgpool + flatten + linear).
    ref = jnp.mean(x, axis=(2, 3)) @ weight.T + bias

    # f32 path.
    y = jax.block_until_ready(finetune_forward(x, weight, bias))
    assert y.shape == (B, NUM_CLASSES)
    assert jnp.allclose(y, ref, atol=1e-3, rtol=1e-3)

    # bf16 feature-map path (halves HBM traffic of the memory-bound kernel),
    # f32 accumulation keeps accuracy.
    y_bf16 = jax.block_until_ready(
        finetune_forward(x, weight, bias, compute_dtype=jnp.bfloat16))
    assert jnp.allclose(y_bf16, ref, atol=3e-2, rtol=5e-2)

    print("KERNEL_OK")
</pallas_src>

<mosaic_0001>
module attributes {stable_mosaic.version = 11 : i64} {
  func.func @finetune_head_kernel(%arg0: i32, %arg1: i32, %arg2: memref<2x8192xf32, #tpu.memory_space<vmem>>, %arg3: memref<8192x128xf32, #tpu.memory_space<vmem>>, %arg4: memref<1x128xf32, #tpu.memory_space<vmem>>, %arg5: memref<2x128xf32, #tpu.memory_space<vmem>>, %arg6: memref<2x128xf32, #tpu.memory_space<vmem>>) attributes {dimension_semantics = [#tpu.dimension_semantics<parallel>, #tpu.dimension_semantics<arbitrary>], iteration_bounds = array<i64: 1, 4>, scalar_prefetch = 0 : i64, scratch_operands = 1 : i64, tpu.core_type = #tpu.core_type<tc>, window_params = [{transform_indices = @transform_0, window_bounds = array<i64: 2, 8192>}, {transform_indices = @transform_1, window_bounds = array<i64: 8192, 128>}, {pipeline_mode = #tpu.pipeline_mode<synchronous>, transform_indices = @transform_2, window_bounds = array<i64: 1, 128>}, {transform_indices = @transform_3, window_bounds = array<i64: 2, 128>}]} {
    %c0_i32 = arith.constant 0 : i32
    %0 = arith.cmpi eq, %arg1, %c0_i32 : i32
    %1 = arith.extui %0 : i1 to i32
    %c0_i32_0 = arith.constant 0 : i32
    %2 = arith.cmpi ne, %1, %c0_i32_0 : i32
    scf.if %2 {
      %cst_9 = arith.constant 0.000000e+00 : f32
      %12 = vector.broadcast %cst_9 : f32 to vector<2x128xf32>
      %c0_10 = arith.constant 0 : index
      %c0_11 = arith.constant 0 : index
      %13 = vector.load %arg6[%c0_10, %c0_11] : memref<2x128xf32, #tpu.memory_space<vmem>>, vector<2x128xf32>
      tpu.vector_store %arg6[%c0_10, %c0_11], %12 {strides = array<i32>} : memref<2x128xf32, #tpu.memory_space<vmem>>, vector<2x128xf32>,
    } else {
    }
    %c0 = arith.constant 0 : index
    %c0_1 = arith.constant 0 : index
    %3 = vector.load %arg6[%c0, %c0_1] : memref<2x128xf32, #tpu.memory_space<vmem>>, vector<2x128xf32>
    %c0_2 = arith.constant 0 : index
    %c0_3 = arith.constant 0 : index
    %4 = vector.load %arg2[%c0_2, %c0_3] : memref<2x8192xf32, #tpu.memory_space<vmem>>, vector<2x8192xf32>
    %c0_4 = arith.constant 0 : index
    %c0_5 = arith.constant 0 : index
    %5 = vector.load %arg3[%c0_4, %c0_5] : memref<8192x128xf32, #tpu.memory_space<vmem>>, vector<8192x128xf32>
    %cst = arith.constant dense<0.000000e+00> : vector<2x128xf32>
    %6 = tpu.matmul %4, %5, %cst {dimension_numbers = #tpu.dot_dimension_numbers<[1], [0], [0], [1], [0, 0, 1, 1], [], []>} : vector<2x8192xf32>, vector<8192x128xf32>, vector<2x128xf32> -> vector<2x128xf32>
    %7 = arith.addf %3, %6 : vector<2x128xf32>
    %c0_6 = arith.constant 0 : index
    %c0_7 = arith.constant 0 : index
    %8 = vector.load %arg6[%c0_6, %c0_7] : memref<2x128xf32, #tpu.memory_space<vmem>>, vector<2x128xf32>
    tpu.vector_store %arg6[%c0_6, %c0_7], %7 {strides = array<i32>} : memref<2x128xf32, #tpu.memory_space<vmem>>, vector<2x128xf32>,
    %c3_i32 = arith.constant 3 : i32
    %9 = arith.cmpi eq, %arg1, %c3_i32 : i32
    %10 = arith.extui %9 : i1 to i32
    %c0_i32_8 = arith.constant 0 : i32
    %11 = arith.cmpi ne, %10, %c0_i32_8 : i32
    scf.if %11 {
      %c0_9 = arith.constant 0 : index
      %c0_10 = arith.constant 0 : index
      %12 = vector.load %arg6[%c0_9, %c0_10] : memref<2x128xf32, #tpu.memory_space<vmem>>, vector<2x128xf32>
      %c0_11 = arith.constant 0 : index
      %c0_12 = arith.constant 0 : index
      %13 = vector.load %arg4[%c0_11, %c0_12] : memref<1x128xf32, #tpu.memory_space<vmem>>, vector<1x128xf32>
      %14 = vector.broadcast %13 : vector<1x128xf32> to vector<2x128xf32>
      %15 = arith.addf %12, %14 : vector<2x128xf32>
      %c0_13 = arith.constant 0 : index
      %c0_14 = arith.constant 0 : index
      %16 = vector.load %arg5[%c0_13, %c0_14] : memref<2x128xf32, #tpu.memory_space<vmem>>, vector<2x128xf32>
      tpu.vector_store %arg5[%c0_13, %c0_14], %15 {strides = array<i32>} : memref<2x128xf32, #tpu.memory_space<vmem>>, vector<2x128xf32>,
    } else {
    }
    return
  }
  func.func @transform_0(%arg0: i32, %arg1: i32) -> (i32, i32) {
    %c0_i32 = arith.constant 0 : i32
    return %arg0, %arg1 : i32, i32
  }
  func.func @transform_1(%arg0: i32, %arg1: i32) -> (i32, i32) {
    %c0_i32 = arith.constant 0 : i32
    %c0_i32_0 = arith.constant 0 : i32
    return %arg1, %c0_i32 : i32, i32
  }
  func.func @transform_2(%arg0: i32, %arg1: i32) -> (i32, i32) {
    %c0_i32 = arith.constant 0 : i32
    %c0_i32_0 = arith.constant 0 : i32
    %c0_i32_1 = arith.constant 0 : i32
    return %c0_i32, %c0_i32_0 : i32, i32
  }
  func.func @transform_3(%arg0: i32, %arg1: i32) -> (i32, i32) {
    %c0_i32 = arith.constant 0 : i32
    %c0_i32_0 = arith.constant 0 : i32
    return %arg0, %c0_i32 : i32, i32
  }
}

</mosaic_0001>

<llo_original>
// kernel: tpu_custom_call.1
$region0: #{tpu_custom_call.1}
  #allocation0 [shape = 'u32[]', space=smem, size = 0x4, offset = 0x4, fixed_abs, tag = 'smem constant byte address 0x4 - core index']
  #allocation1 [shape = 'u32[144,128]{1,0:T(1,128)}', space=vmem, size = 0x12000, scoped, tag = 'internal scratch']
  #allocation2 [shape = 'f32[2,128]{1,0:T(2,128)}', space=vmem, size = 0x400, scoped, tag = 'scratch operand']
  %s0 = inlined_call_operand.hbm [shape: f32[2,32768], index: 0, kind: input, shape index: {}]
  %s1 = inlined_call_operand.hbm [shape: f32[32768,128], index: 1, kind: input, shape index: {}]
  %s2 = inlined_call_operand.hbm [shape: f32[1,128], index: 2, kind: input, shape index: {}]
  %s3 = inlined_call_operand.hbm [shape: f32[2,128], index: 3, kind: output, shape index: {}]
  %s4 = sld [smem:[#allocation0]]
  $region65: #{tpu_custom_call.1} parent=0
    _
  %s6 = ssub.s32 1, %s4
  %s7 = scalar_select 0, %s6, %s4
  $region1: #{tpu_custom_call.1} parent=0
    #allocation3 [shape = 'u8[131072]{0}', space=vmem, size = 0x20000, scoped, tag = 'input window, operand 0']
    #allocation4 [shape = 's32[2]{0}', space=sflag, size = 0x8, scoped, tag = 'scoped memory for tpu_custom_call.1']
    #allocation5 [shape = 's32[2]{0}', space=sflag, size = 0x8, scoped, tag = 'scoped memory for tpu_custom_call.1']
    #allocation6 [shape = 'u8[8388608]{0}', space=vmem, size = 0x800000, scoped, tag = 'input window, operand 1']
    #allocation7 [shape = 's32[2]{0}', space=sflag, size = 0x8, scoped, tag = 'scoped memory for tpu_custom_call.1']
    #allocation8 [shape = 'u8[512]{0}', space=vmem, size = 0x400, scoped, tag = 'input window, operand 2, single buffered']
    #allocation9 [shape = 'u8[1024]{0}', space=vmem, size = 0x400, scoped, tag = 'output window, operand 0, single buffered']
    %8 = vsyncpa [#allocation4], 0
    %s9 = scalar_lea.sflag [#allocation4], 1
    %10 = vsyncpa %s9, 0
    %11 = vsyncpa [#allocation7], 0
    %s12 = scalar_lea.sflag [#allocation7], 1
    %13 = vsyncpa %s12, 0
    %14 = vsyncpa [#allocation5], 0
    loop: start=0, step=1, limit=6
    $region2: #{tpu_custom_call.1} parent=1 // loop_pre_header
      _
    $region3: #{tpu_custom_call.1} parent=1 // loop_header
      %s16 = sphi 0, %s20
      %p17 = scmp.ge.s32.totalorder %s16, 6
      %s23 = sphi 0, %s35
      %s24 = sphi 0, %s31
      %s25 = sphi 0, %s23
      %s26 = sphi 0, %s24
      %s27 = sphi 0, %s25
      %s28 = sphi 0, %s26
      %s40 = sphi 0, %s42
      %s43 = sphi 0, %s40
      %s44 = sphi 0, %s43
      %s60 = sphi 0, %s44
      %s66 = sphi 0, %s68
      %s69 = sphi 0, %s66
      %s70 = sphi 0, %s69
      %s86 = sphi 0, %s70
      %s90 = sphi 0, %s90
      %s92 = sphi 0, %s90
      %s93 = sphi 0, %s92
      %s107 = sphi 0, %s93
      %s113 = sphi 0, %s115
      %s116 = sphi 0, %s113
      %s117 = sphi 0, %s116
      %s133 = sphi 0, %s117
    $region4: #{tpu_custom_call.1} parent=1 // loop_header_branch
      %19 = sbr.rel (%p17) target = $region8
    $region5: #{tpu_custom_call.1} parent=1 // loop_body
      %s21 = ssub.s32 %s16, 1
      %s22 = ssub.s32 %s16, 2
      %s29 = sadd.s32 1, %s24
      %p30 = scmp.ge.s32.totalorder %s29, 4
      %s31 = scalar_select %p30, 0, %s29
      %s32 = sadd.s32 1, %s23
      %s33 = scalar_select %p30, %s32, %s23
      %p34 = scmp.ge.s32.totalorder %s33, 1
      %s35 = scalar_select %p34, 0, %s33
      %s36 = ssub.s32 %s23, %s35
      %s37 = ssub.s32 %s24, %s31
      %s38 = sor.u32 %s36, %s37
      %p39 = scmp.eq.s32.totalorder %s38, 0
      %s41 = sadd.s32 %s40, 1
      %s42 = scalar_select %p39, %s40, %s41
      %p45 = pneg %p39
      %p46 = scmp.eq.s32.totalorder %s16, 3
      %p47 = por %p45, %p46
      %p48 = scmp.ne.s32.totalorder %s40, %s43
      %p49 = scmp.eq.s32.totalorder %s16, 0
      %p50 = por %p48, %p49
      %p51 = scmp.ne.s32.totalorder %s40, %s43
      %p52 = scmp.eq.s32.totalorder %s21, 3
      %p53 = por %p51, %p52
      %p54 = scmp.ne.s32.totalorder %s43, %s44
      %p55 = scmp.eq.s32.totalorder %s21, 0
      %p56 = por %p54, %p55
      %p57 = scmp.ne.s32.totalorder %s43, %s44
      %p58 = scmp.eq.s32.totalorder %s22, 3
      %p59 = por %p57, %p58
      %p61 = scmp.ne.s32.totalorder %s44, %s60
      %p62 = scmp.eq.s32.totalorder %s22, 0
      %p63 = por %p61, %p62
      %s64 = ssub.s32 %s24, %s31
      %p65 = scmp.eq.s32.totalorder %s64, 0
      %s67 = sadd.s32 %s66, 1
      %s68 = scalar_select %p65, %s66, %s67
      %p71 = pneg %p65
      %p72 = scmp.eq.s32.totalorder %s16, 3
      %p73 = por %p71, %p72
      %p74 = scmp.ne.s32.totalorder %s66, %s69
      %p75 = scmp.eq.s32.totalorder %s16, 0
      %p76 = por %p74, %p75
      %p77 = scmp.ne.s32.totalorder %s66, %s69
      %p78 = scmp.eq.s32.totalorder %s21, 3
      %p79 = por %p77, %p78
      %p80 = scmp.ne.s32.totalorder %s69, %s70
      %p81 = scmp.eq.s32.totalorder %s21, 0
      %p82 = por %p80, %p81
      %p83 = scmp.ne.s32.totalorder %s69, %s70
      %p84 = scmp.eq.s32.totalorder %s22, 3
      %p85 = por %p83, %p84
      %p87 = scmp.ne.s32.totalorder %s70, %s86
      %p88 = scmp.eq.s32.totalorder %s22, 0
      %p89 = por %p87, %p88
      %s91 = sadd.s32 %s90, 1
      %p94 = scmp.eq.s32.totalorder %s16, 3
      %p95 = scmp.ne.s32.totalorder %s90, %s92
      %p96 = scmp.eq.s32.totalorder %s16, 0
      %p97 = por %p95, %p96
      %p98 = scmp.ne.s32.totalorder %s90, %s92
      %p99 = scmp.eq.s32.totalorder %s21, 3
      %p100 = por %p98, %p99
      %p101 = scmp.ne.s32.totalorder %s92, %s93
      %p102 = scmp.eq.s32.totalorder %s21, 0
      %p103 = por %p101, %p102
      %p104 = scmp.ne.s32.totalorder %s92, %s93
      %p105 = scmp.eq.s32.totalorder %s22, 3
      %p106 = por %p104, %p105
      %p108 = scmp.ne.s32.totalorder %s93, %s107
      %p109 = scmp.eq.s32.totalorder %s22, 0
      %p110 = por %p108, %p109
      %s111 = ssub.s32 %s23, %s35
      %p112 = scmp.eq.s32.totalorder %s111, 0
      %s114 = sadd.s32 %s113, 1
      %s115 = scalar_select %p112, %s113, %s114
      %p118 = pneg %p112
      %p119 = scmp.eq.s32.totalorder %s16, 3
      %p120 = por %p118, %p119
      %p121 = scmp.ne.s32.totalorder %s113, %s116
      %p122 = scmp.eq.s32.totalorder %s16, 0
      %p123 = por %p121, %p122
      %p124 = scmp.ne.s32.totalorder %s113, %s116
      %p125 = scmp.eq.s32.totalorder %s21, 3
      %p126 = por %p124, %p125
      %p127 = scmp.ne.s32.totalorder %s116, %s117
      %p128 = scmp.eq.s32.totalorder %s21, 0
      %p129 = por %p127, %p128
      %p130 = scmp.ne.s32.totalorder %s116, %s117
      %p131 = scmp.eq.s32.totalorder %s22, 3
      %p132 = por %p130, %p131
      %p134 = scmp.ne.s32.totalorder %s117, %s133
      %p135 = scmp.eq.s32.totalorder %s22, 0
      %p136 = por %p134, %p135
      %p137 = scmp.le.s32.totalorder 1, %s16
      %p138 = scmp.lt.s32.totalorder %s16, 5
      %p139 = pnand %p137, %p138
      %p140 = pneg %p139
      // Predicated region
      $region9: #{tpu_custom_call.1} parent=5 // pred_check
        _
      $region10: #{tpu_custom_call.1} parent=5 // pred_check_branch
        %142 = sbr.rel (%p139) target = $region12
      $region11: #{tpu_custom_call.1} parent=5 // pred_region
        %s143 = ssub.s32 %s16, 1
        // Predicated region
        $region13: #{tpu_custom_call.1} parent=11 // pred_check
          %p144 = pneg %p103
        $region14: #{tpu_custom_call.1} parent=11 // pred_check_branch
          %146 = sbr.rel (%p144) target = $region16
        $region15: #{tpu_custom_call.1} parent=11 // pred_region
          %s148 = ssub.s32 16, 16
          %149 = vsyncadd [#allocation7], %s148
          %s151 = sshll.u32 [#allocation8], 4
          %s152 = int_to_ptr.vmem [resolvable:$true] %s151
          %154 = dma.hbm_to_vmem [thread:$0]  %s2, 16, %s152, [#allocation7]
        $region16: #{tpu_custom_call.1} parent=11 // pred_fallthru
          _
      $region12: #{tpu_custom_call.1} parent=5 // pred_fallthru
        _
      %p155 = scmp.lt.s32.totalorder %s16, 4
      // Predicated region
      $region17: #{tpu_custom_call.1} parent=5 // pred_check
        %p156 = pneg %p155
      $region18: #{tpu_custom_call.1} parent=5 // pred_check_branch
        %158 = sbr.rel (%p156) target = $region20
      $region19: #{tpu_custom_call.1} parent=5 // pred_region
        // Predicated region
        $region21: #{tpu_custom_call.1} parent=19 // pred_check
          %p159 = pneg %p50
        $region22: #{tpu_custom_call.1} parent=19 // pred_check_branch
          %161 = sbr.rel (%p159) target = $region24
        $region23: #{tpu_custom_call.1} parent=19 // pred_region
          %s162 = sand.u32 %s40, 1
          %s163 = scalar_lea.sflag [#allocation4], %s162
          %s164 = sand.u32 %s40, 1
          %s165 = smul.addr %s164, 128
          %s166 = scalar_lea.vmem [#allocation3], %s165
          %s167 = smul.u32 64, %s24
          %s169 = ssub.s32 2048, 2048
          %170 = vsyncadd %s163, %s169
          %s171 = smul.addr %s23, 256
          %s172 = sadd.s32 %s167, %s171
          %s173 = smul.addr %s172, 32
          %s174 = scalar_lea.hbm %s0, %s173
          %s176 = sshll.u32 %s166, 4
          %s177 = int_to_ptr.vmem [resolvable:$true] %s176
          %179 = dma.hbm_to_vmem [thread:$0]  %s174, 2048, %s177, %s163
        $region24: #{tpu_custom_call.1} parent=19 // pred_fallthru
          _
        // Predicated region
        $region25: #{tpu_custom_call.1} parent=19 // pred_check
          %p180 = pneg %p76
        $region26: #{tpu_custom_call.1} parent=19 // pred_check_branch
          %182 = sbr.rel (%p180) target = $region28
        $region27: #{tpu_custom_call.1} parent=19 // pred_region
          %s183 = sand.u32 %s16, 1
          %s184 = scalar_lea.sflag [#allocation7], %s183
          %s185 = sand.u32 %s66, 1
          %s186 = smul.addr %s185, 8192
          %s187 = scalar_lea.vmem [#allocation6], %s186
          %s188 = smul.u32 1024, %s24
          %s190 = ssub.s32 131072, 131072
          %191 = vsyncadd %s184, %s190
          %s192 = smul.addr %s188, 128
          %s193 = scalar_lea.hbm %s1, %s192
          %s194 = sshll.u32 %s187, 4
          %s195 = int_to_ptr.vmem [resolvable:$true] %s194
          %200 = dma.hbm_to_vmem [thread:$0]  %s193, 131072, %s195, %s184, 128, 128, 8
        $region28: #{tpu_custom_call.1} parent=19 // pred_fallthru
          _
      $region20: #{tpu_custom_call.1} parent=5 // pred_fallthru
        _
      %p201 = scmp.le.s32.totalorder 1, %s16
      %p202 = scmp.lt.s32.totalorder %s16, 5
      %p203 = pnand %p201, %p202
      %p204 = pneg %p203
      // Predicated region
      $region29: #{tpu_custom_call.1} parent=5 // pred_check
        _
      $region30: #{tpu_custom_call.1} parent=5 // pred_check_branch
        %206 = sbr.rel (%p203) target = $region32
      $region31: #{tpu_custom_call.1} parent=5 // pred_region
        %s207 = ssub.s32 %s16, 1
        %s208 = sand.u32 %s43, 1
        %s209 = scalar_lea.sflag [#allocation4], %s208
        %s210 = sand.u32 %s43, 1
        %s211 = smul.addr %s210, 128
        %s212 = scalar_lea.vmem [#allocation3], %s211
        // Predicated region
        $region33: #{tpu_custom_call.1} parent=31 // pred_check
          %p213 = pneg %p56
        $region34: #{tpu_custom_call.1} parent=31 // pred_check_branch
          %215 = sbr.rel (%p213) target = $region36
        $region35: #{tpu_custom_call.1} parent=31 // pred_region
          %216 = dma.done %s209, 2048
        $region36: #{tpu_custom_call.1} parent=31 // pred_fallthru
          _
        %s217 = sand.u32 %s21, 1
        %s218 = scalar_lea.sflag [#allocation7], %s217
        %s219 = sand.u32 %s69, 1
        %s220 = smul.addr %s219, 8192
        %s221 = scalar_lea.vmem [#allocation6], %s220
        // Predicated region
        $region37: #{tpu_custom_call.1} parent=31 // pred_check
          %p222 = pneg %p82
        $region38: #{tpu_custom_call.1} parent=31 // pred_check_branch
          %224 = sbr.rel (%p222) target = $region40
        $region39: #{tpu_custom_call.1} parent=31 // pred_region
          %225 = dma.done %s218, 131072
        $region40: #{tpu_custom_call.1} parent=31 // pred_fallthru
          _
        // Predicated region
        $region41: #{tpu_custom_call.1} parent=31 // pred_check
          %p226 = pneg %p103
        $region42: #{tpu_custom_call.1} parent=31 // pred_check_branch
          %228 = sbr.rel (%p226) target = $region44
        $region43: #{tpu_custom_call.1} parent=31 // pred_region
          %229 = dma.done [#allocation7], 16
        $region44: #{tpu_custom_call.1} parent=31 // pred_fallthru
          _
        %s230 = sand.u32 %s43, 1
        %s231 = scalar_lea.sflag [#allocation4], %s230
        %s232 = sand.u32 %s43, 1
        %s233 = smul.addr %s232, 128
        %s234 = scalar_lea.vmem [#allocation3], %s233
        %p235 = pneg %p56
        %p236 = pneg %p53
        %s237 = sand.u32 %s21, 1
        %s238 = scalar_lea.sflag [#allocation7], %s237
        %s239 = sand.u32 %s69, 1
        %s240 = smul.addr %s239, 8192
        %s241 = scalar_lea.vmem [#allocation6], %s240
        %p242 = pneg %p82
        %p243 = pneg %p79
        %p244 = pneg %p103
        %p245 = pneg %p100
        %p246 = pneg %p129
        %p247 = pneg %p126
        %s248 = smul.u32 64, %s26
        %s249 = smul.u32 1024, %s26
        %p250 = scmp.eq.s32.totalorder %s26, 0
        // Predicated region
        $region45: #{tpu_custom_call.1} parent=31 // pred_check
          %p251 = pneg %p250
        $region46: #{tpu_custom_call.1} parent=31 // pred_check_branch
          %253 = sbr.rel (%p251) target = $region48
        $region47: #{tpu_custom_call.1} parent=31 // pred_region
          %254 = vst [vmem:[#allocation2] sm:$0x3] 0.0
        $region48: #{tpu_custom_call.1} parent=31 // pred_fallthru
          _
        %v255 = vld [vmem:[#allocation2] sm:$0x3]
        %v256 = vld [vmem:[%s212] sm:$0xff]
        %v257 = vld [vmem:[%s212 + $0x8] sm:$0xff]
        %v258 = vld [vmem:[%s212 + $0x10] sm:$0xff]
        %v259 = vld [vmem:[%s212 + $0x18] sm:$0xff]
        %v260 = vld [vmem:[%s212 + $0x20] sm:$0xff]
        %v261 = vld [vmem:[%s212 + $0x28] sm:$0xff]
        %v262 = vld [vmem:[%s212 + $0x30] sm:$0xff]
        %v263 = vld [vmem:[%s212 + $0x38] sm:$0xff]
        %v264 = vld [vmem:[%s212 + $0x40] sm:$0xff]
        %v265 = vld [vmem:[%s212 + $0x48] sm:$0xff]
        %v266 = vld [vmem:[%s212 + $0x50] sm:$0xff]
        %v267 = vld [vmem:[%s212 + $0x58] sm:$0xff]
        %v268 = vld [vmem:[%s212 + $0x60] sm:$0xff]
        %v269 = vld [vmem:[%s212 + $0x68] sm:$0xff]
        %v270 = vld [vmem:[%s212 + $0x70] sm:$0xff]
        %v271 = vld [vmem:[%s212 + $0x78] sm:$0xff]
        %v272 = vld [vmem:[%s221] sm:$0xff]
        %v273 = vld [vmem:[%s221 + $0x8] sm:$0xff]
        %v274 = vld [vmem:[%s221 + $0x10] sm:$0xff]
        %v275 = vld [vmem:[%s221 + $0x18] sm:$0xff]
        %v276 = vld [vmem:[%s221 + $0x20] sm:$0xff]
        %v277 = vld [vmem:[%s221 + $0x28] sm:$0xff]
        %v278 = vld [vmem:[%s221 + $0x30] sm:$0xff]
        %v279 = vld [vmem:[%s221 + $0x38] sm:$0xff]
        %v280 = vld [vmem:[%s221 + $0x40] sm:$0xff]
        %v281 = vld [vmem:[%s221 + $0x48] sm:$0xff]
        %v282 = vld [vmem:[%s221 + $0x50] sm:$0xff]
        %v283 = vld [vmem:[%s221 + $0x58] sm:$0xff]
        %v284 = vld [vmem:[%s221 + $0x60] sm:$0xff]
        %v285 = vld [vmem:[%s221 + $0x68] sm:$0xff]
        %v286 = vld [vmem:[%s221 + $0x70] sm:$0xff]
        %v287 = vld [vmem:[%s221 + $0x78] sm:$0xff]
        %v288 = vld [vmem:[%s221 + $0x80] sm:$0xff]
        %v289 = vld [vmem:[%s221 + $0x88] sm:$0xff]
        %v290 = vld [vmem:[%s221 + $0x90] sm:$0xff]
        %v291 = vld [vmem:[%s221 + $0x98] sm:$0xff]
        %v292 = vld [vmem:[%s221 + $0xa0] sm:$0xff]
        %v293 = vld [vmem:[%s221 + $0xa8] sm:$0xff]
        %v294 = vld [vmem:[%s221 + $0xb0] sm:$0xff]
        %v295 = vld [vmem:[%s221 + $0xb8] sm:$0xff]
        %v296 = vld [vmem:[%s221 + $0xc0] sm:$0xff]
        %v297 = vld [vmem:[%s221 + $0xc8] sm:$0xff]
        %v298 = vld [vmem:[%s221 + $0xd0] sm:$0xff]
        %v299 = vld [vmem:[%s221 + $0xd8] sm:$0xff]
        %v300 = vld [vmem:[%s221 + $0xe0] sm:$0xff]
        %v301 = vld [vmem:[%s221 + $0xe8] sm:$0xff]
        %v302 = vld [vmem:[%s221 + $0xf0] sm:$0xff]
        %v303 = vld [vmem:[%s221 + $0xf8] sm:$0xff]
        %v304 = vld [vmem:[%s221 + $0x100] sm:$0xff]
        %v305 = vld [vmem:[%s221 + $0x108] sm:$0xff]
        %v306 = vld [vmem:[%s221 + $0x110] sm:$0xff]
        %v307 = vld [vmem:[%s221 + $0x118] sm:$0xff]
        %v308 = vld [vmem:[%s221 + $0x120] sm:$0xff]
        %v309 = vld [vmem:[%s221 + $0x128] sm:$0xff]
        %v310 = vld [vmem:[%s221 + $0x130] sm:$0xff]
        %v311 = vld [vmem:[%s221 + $0x138] sm:$0xff]
        %v312 = vld [vmem:[%s221 + $0x140] sm:$0xff]
        %v313 = vld [vmem:[%s221 + $0x148] sm:$0xff]
        %v314 = vld [vmem:[%s221 + $0x150] sm:$0xff]
        %v315 = vld [vmem:[%s221 + $0x158] sm:$0xff]
        %v316 = vld [vmem:[%s221 + $0x160] sm:$0xff]
        %v317 = vld [vmem:[%s221 + $0x168] sm:$0xff]
        %v318 = vld [vmem:[%s221 + $0x170] sm:$0xff]
        %v319 = vld [vmem:[%s221 + $0x178] sm:$0xff]
        %v320 = vld [vmem:[%s221 + $0x180] sm:$0xff]
        %v321 = vld [vmem:[%s221 + $0x188] sm:$0xff]
        %v322 = vld [vmem:[%s221 + $0x190] sm:$0xff]
        %v323 = vld [vmem:[%s221 + $0x198] sm:$0xff]
        %v324 = vld [vmem:[%s221 + $0x1a0] sm:$0xff]
        %v325 = vld [vmem:[%s221 + $0x1a8] sm:$0xff]
        %v326 = vld [vmem:[%s221 + $0x1b0] sm:$0xff]
        %v327 = vld [vmem:[%s221 + $0x1b8] sm:$0xff]
        %v328 = vld [vmem:[%s221 + $0x1c0] sm:$0xff]
        %v329 = vld [vmem:[%s221 + $0x1c8] sm:$0xff]
        %v330 = vld [vmem:[%s221 + $0x1d0] sm:$0xff]
        %v331 = vld [vmem:[%s221 + $0x1d8] sm:$0xff]
        %v332 = vld [vmem:[%s221 + $0x1e0] sm:$0xff]
        %v333 = vld [vmem:[%s221 + $0x1e8] sm:$0xff]
        %v334 = vld [vmem:[%s221 + $0x1f0] sm:$0xff]
        %v335 = vld [vmem:[%s221 + $0x1f8] sm:$0xff]
        %v336 = vld [vmem:[%s221 + $0x200] sm:$0xff]
        %v337 = vld [vmem:[%s221 + $0x208] sm:$0xff]
        %v338 = vld [vmem:[%s221 + $0x210] sm:$0xff]
        %v339 = vld [vmem:[%s221 + $0x218] sm:$0xff]
        %v340 = vld [vmem:[%s221 + $0x220] sm:$0xff]
        %v341 = vld [vmem:[%s221 + $0x228] sm:$0xff]
        %v342 = vld [vmem:[%s221 + $0x230] sm:$0xff]
        %v343 = vld [vmem:[%s221 + $0x238] sm:$0xff]
        %v344 = vld [vmem:[%s221 + $0x240] sm:$0xff]
        %v345 = vld [vmem:[%s221 + $0x248] sm:$0xff]
        %v346 = vld [vmem:[%s221 + $0x250] sm:$0xff]
        %v347 = vld [vmem:[%s221 + $0x258] sm:$0xff]
        %v348 = vld [vmem:[%s221 + $0x260] sm:$0xff]
        %v349 = vld [vmem:[%s221 + $0x268] sm:$0xff]
        %v350 = vld [vmem:[%s221 + $0x270] sm:$0xff]
        %v351 = vld [vmem:[%s221 + $0x278] sm:$0xff]
        %v352 = vld [vmem:[%s221 + $0x280] sm:$0xff]
        %v353 = vld [vmem:[%s221 + $0x288] sm:$0xff]
        %v354 = vld [vmem:[%s221 + $0x290] sm:$0xff]
        %v355 = vld [vmem:[%s221 + $0x298] sm:$0xff]
        %v356 = vld [vmem:[%s221 + $0x2a0] sm:$0xff]
        %v357 = vld [vmem:[%s221 + $0x2a8] sm:$0xff]
        %v358 = vld [vmem:[%s221 + $0x2b0] sm:$0xff]
        %v359 = vld [vmem:[%s221 + $0x2b8] sm:$0xff]
        %v360 = vld [vmem:[%s221 + $0x2c0] sm:$0xff]
        %v361 = vld [vmem:[%s221 + $0x2c8] sm:$0xff]
        %v362 = vld [vmem:[%s221 + $0x2d0] sm:$0xff]
        %v363 = vld [vmem:[%s221 + $0x2d8] sm:$0xff]
        %v364 = vld [vmem:[%s221 + $0x2e0] sm:$0xff]
        %v365 = vld [vmem:[%s221 + $0x2e8] sm:$0xff]
        %v366 = vld [vmem:[%s221 + $0x2f0] sm:$0xff]
        %v367 = vld [vmem:[%s221 + $0x2f8] sm:$0xff]
        %v368 = vld [vmem:[%s221 + $0x300] sm:$0xff]
        %v369 = vld [vmem:[%s221 + $0x308] sm:$0xff]
        %v370 = vld [vmem:[%s221 + $0x310] sm:$0xff]
        %v371 = vld [vmem:[%s221 + $0x318] sm:$0xff]
        %v372 = vld [vmem:[%s221 + $0x320] sm:$0xff]
        %v373 = vld [vmem:[%s221 + $0x328] sm:$0xff]
        %v374 = vld [vmem:[%s221 + $0x330] sm:$0xff]
        %v375 = vld [vmem:[%s221 + $0x338] sm:$0xff]
        %v376 = vld [vmem:[%s221 + $0x340] sm:$0xff]
        %v377 = vld [vmem:[%s221 + $0x348] sm:$0xff]
        %v378 = vld [vmem:[%s221 + $0x350] sm:$0xff]
        %v379 = vld [vmem:[%s221 + $0x358] sm:$0xff]
        %v380 = vld [vmem:[%s221 + $0x360] sm:$0xff]
        %v381 = vld [vmem:[%s221 + $0x368] sm:$0xff]
        %v382 = vld [vmem:[%s221 + $0x370] sm:$0xff]
        %v383 = vld [vmem:[%s221 + $0x378] sm:$0xff]
        %v384 = vld [vmem:[%s221 + $0x380] sm:$0xff]
        %v385 = vld [vmem:[%s221 + $0x388] sm:$0xff]
        %v386 = vld [vmem:[%s221 + $0x390] sm:$0xff]
        %v387 = vld [vmem:[%s221 + $0x398] sm:$0xff]
        %v388 = vld [vmem:[%s221 + $0x3a0] sm:$0xff]
        %v389 = vld [vmem:[%s221 + $0x3a8] sm:$0xff]
        %v390 = vld [vmem:[%s221 + $0x3b0] sm:$0xff]
        %v391 = vld [vmem:[%s221 + $0x3b8] sm:$0xff]
        %v392 = vld [vmem:[%s221 + $0x3c0] sm:$0xff]
        %v393 = vld [vmem:[%s221 + $0x3c8] sm:$0xff]
        %v394 = vld [vmem:[%s221 + $0x3d0] sm:$0xff]
        %v395 = vld [vmem:[%s221 + $0x3d8] sm:$0xff]
        %v396 = vld [vmem:[%s221 + $0x3e0] sm:$0xff]
        %v397 = vld [vmem:[%s221 + $0x3e8] sm:$0xff]
        %v398 = vld [vmem:[%s221 + $0x3f0] sm:$0xff]
        %v399 = vld [vmem:[%s221 + $0x3f8] sm:$0xff]
        %v400 = vld [vmem:[%s221 + $0x400] sm:$0xff]
        %v401 = vld [vmem:[%s221 + $0x408] sm:$0xff]
        %v402 = vld [vmem:[%s221 + $0x410] sm:$0xff]
        %v403 = vld [vmem:[%s221 + $0x418] sm:$0xff]
        %v404 = vld [vmem:[%s221 + $0x420] sm:$0xff]
        %v405 = vld [vmem:[%s221 + $0x428] sm:$0xff]
        %v406 = vld [vmem:[%s221 + $0x430] sm:$0xff]
        %v407 = vld [vmem:[%s221 + $0x438] sm:$0xff]
        %v408 = vld [vmem:[%s221 + $0x440] sm:$0xff]
        %v409 = vld [vmem:[%s221 + $0x448] sm:$0xff]
        %v410 = vld [vmem:[%s221 + $0x450] sm:$0xff]
        %v411 = vld [vmem:[%s221 + $0x458] sm:$0xff]
        %v412 = vld [vmem:[%s221 + $0x460] sm:$0xff]
        %v413 = vld [vmem:[%s221 + $0x468] sm:$0xff]
        %v414 = vld [vmem:[%s221 + $0x470] sm:$0xff]
        %v415 = vld [vmem:[%s221 + $0x478] sm:$0xff]
        %v416 = vld [vmem:[%s221 + $0x480] sm:$0xff]
        %v417 = vld [vmem:[%s221 + $0x488] sm:$0xff]
        %v418 = vld [vmem:[%s221 + $0x490] sm:$0xff]
        %v419 = vld [vmem:[%s221 + $0x498] sm:$0xff]
        %v420 = vld [vmem:[%s221 + $0x4a0] sm:$0xff]
        %v421 = vld [vmem:[%s221 + $0x4a8] sm:$0xff]
        %v422 = vld [vmem:[%s221 + $0x4b0] sm:$0xff]
        %v423 = vld [vmem:[%s221 + $0x4b8] sm:$0xff]
        %v424 = vld [vmem:[%s221 + $0x4c0] sm:$0xff]
        %v425 = vld [vmem:[%s221 + $0x4c8] sm:$0xff]
        %v426 = vld [vmem:[%s221 + $0x4d0] sm:$0xff]
        %v427 = vld [vmem:[%s221 + $0x4d8] sm:$0xff]
        %v428 = vld [vmem:[%s221 + $0x4e0] sm:$0xff]
        %v429 = vld [vmem:[%s221 + $0x4e8] sm:$0xff]
        %v430 = vld [vmem:[%s221 + $0x4f0] sm:$0xff]
        %v431 = vld [vmem:[%s221 + $0x4f8] sm:$0xff]
        %v432 = vld [vmem:[%s221 + $0x500] sm:$0xff]
        %v433 = vld [vmem:[%s221 + $0x508] sm:$0xff]
        %v434 = vld [vmem:[%s221 + $0x510] sm:$0xff]
        %v435 = vld [vmem:[%s221 + $0x518] sm:$0xff]
        %v436 = vld [vmem:[%s221 + $0x520] sm:$0xff]
        %v437 = vld [vmem:[%s221 + $0x528] sm:$0xff]
        %v438 = vld [vmem:[%s221 + $0x530] sm:$0xff]
        %v439 = vld [vmem:[%s221 + $0x538] sm:$0xff]
        %v440 = vld [vmem:[%s221 + $0x540] sm:$0xff]
        %v441 = vld [vmem:[%s221 + $0x548] sm:$0xff]
        %v442 = vld [vmem:[%s221 + $0x550] sm:$0xff]
        %v443 = vld [vmem:[%s221 + $0x558] sm:$0xff]
        %v444 = vld [vmem:[%s221 + $0x560] sm:$0xff]
        %v445 = vld [vmem:[%s221 + $0x568] sm:$0xff]
        %v446 = vld [vmem:[%s221 + $0x570] sm:$0xff]
        %v447 = vld [vmem:[%s221 + $0x578] sm:$0xff]
        %v448 = vld [vmem:[%s221 + $0x580] sm:$0xff]
        %v449 = vld [vmem:[%s221 + $0x588] sm:$0xff]
        %v450 = vld [vmem:[%s221 + $0x590] sm:$0xff]
        %v451 = vld [vmem:[%s221 + $0x598] sm:$0xff]
        %v452 = vld [vmem:[%s221 + $0x5a0] sm:$0xff]
        %v453 = vld [vmem:[%s221 + $0x5a8] sm:$0xff]
        %v454 = vld [vmem:[%s221 + $0x5b0] sm:$0xff]
        %v455 = vld [vmem:[%s221 + $0x5b8] sm:$0xff]
        %v456 = vld [vmem:[%s221 + $0x5c0] sm:$0xff]
        %v457 = vld [vmem:[%s221 + $0x5c8] sm:$0xff]
        %v458 = vld [vmem:[%s221 + $0x5d0] sm:$0xff]
        %v459 = vld [vmem:[%s221 + $0x5d8] sm:$0xff]
        %v460 = vld [vmem:[%s221 + $0x5e0] sm:$0xff]
        %v461 = vld [vmem:[%s221 + $0x5e8] sm:$0xff]
        %v462 = vld [vmem:[%s221 + $0x5f0] sm:$0xff]
        %v463 = vld [vmem:[%s221 + $0x5f8] sm:$0xff]
        %v464 = vld [vmem:[%s221 + $0x600] sm:$0xff]
        %v465 = vld [vmem:[%s221 + $0x608] sm:$0xff]
        %v466 = vld [vmem:[%s221 + $0x610] sm:$0xff]
        %v467 = vld [vmem:[%s221 + $0x618] sm:$0xff]
        %v468 = vld [vmem:[%s221 + $0x620] sm:$0xff]
        %v469 = vld [vmem:[%s221 + $0x628] sm:$0xff]
        %v470 = vld [vmem:[%s221 + $0x630] sm:$0xff]
        %v471 = vld [vmem:[%s221 + $0x638] sm:$0xff]
        %v472 = vld [vmem:[%s221 + $0x640] sm:$0xff]
        %v473 = vld [vmem:[%s221 + $0x648] sm:$0xff]
        %v474 = vld [vmem:[%s221 + $0x650] sm:$0xff]
        %v475 = vld [vmem:[%s221 + $0x658] sm:$0xff]
        %v476 = vld [vmem:[%s221 + $0x660] sm:$0xff]
        %v477 = vld [vmem:[%s221 + $0x668] sm:$0xff]
        %v478 = vld [vmem:[%s221 + $0x670] sm:$0xff]
        %v479 = vld [vmem:[%s221 + $0x678] sm:$0xff]
        %v480 = vld [vmem:[%s221 + $0x680] sm:$0xff]
        %v481 = vld [vmem:[%s221 + $0x688] sm:$0xff]
        %v482 = vld [vmem:[%s221 + $0x690] sm:$0xff]
        %v483 = vld [vmem:[%s221 + $0x698] sm:$0xff]
        %v484 = vld [vmem:[%s221 + $0x6a0] sm:$0xff]
        %v485 = vld [vmem:[%s221 + $0x6a8] sm:$0xff]
        %v486 = vld [vmem:[%s221 + $0x6b0] sm:$0xff]
        %v487 = vld [vmem:[%s221 + $0x6b8] sm:$0xff]
        %v488 = vld [vmem:[%s221 + $0x6c0] sm:$0xff]
        %v489 = vld [vmem:[%s221 + $0x6c8] sm:$0xff]
        %v490 = vld [vmem:[%s221 + $0x6d0] sm:$0xff]
        %v491 = vld [vmem:[%s221 + $0x6d8] sm:$0xff]
        %v492 = vld [vmem:[%s221 + $0x6e0] sm:$0xff]
        %v493 = vld [vmem:[%s221 + $0x6e8] sm:$0xff]
        %v494 = vld [vmem:[%s221 + $0x6f0] sm:$0xff]
        %v495 = vld [vmem:[%s221 + $0x6f8] sm:$0xff]
        %v496 = vld [vmem:[%s221 + $0x700] sm:$0xff]
        %v497 = vld [vmem:[%s221 + $0x708] sm:$0xff]
        %v498 = vld [vmem:[%s221 + $0x710] sm:$0xff]
        %v499 = vld [vmem:[%s221 + $0x718] sm:$0xff]
        %v500 = vld [vmem:[%s221 + $0x720] sm:$0xff]
        %v501 = vld [vmem:[%s221 + $0x728] sm:$0xff]
        %v502 = vld [vmem:[%s221 + $0x730] sm:$0xff]
        %v503 = vld [vmem:[%s221 + $0x738] sm:$0xff]
        %v504 = vld [vmem:[%s221 + $0x740] sm:$0xff]
        %v505 = vld [vmem:[%s221 + $0x748] sm:$0xff]
        %v506 = vld [vmem:[%s221 + $0x750] sm:$0xff]
        %v507 = vld [vmem:[%s221 + $0x758] sm:$0xff]
        %v508 = vld [vmem:[%s221 + $0x760] sm:$0xff]
        %v509 = vld [vmem:[%s221 + $0x768] sm:$0xff]
        %v510 = vld [vmem:[%s221 + $0x770] sm:$0xff]
        %v511 = vld [vmem:[%s221 + $0x778] sm:$0xff]
        %v512 = vld [vmem:[%s221 + $0x780] sm:$0xff]
        %v513 = vld [vmem:[%s221 + $0x788] sm:$0xff]
        %v514 = vld [vmem:[%s221 + $0x790] sm:$0xff]
        %v515 = vld [vmem:[%s221 + $0x798] sm:$0xff]
        %v516 = vld [vmem:[%s221 + $0x7a0] sm:$0xff]
        %v517 = vld [vmem:[%s221 + $0x7a8] sm:$0xff]
        %v518 = vld [vmem:[%s221 + $0x7b0] sm:$0xff]
        %v519 = vld [vmem:[%s221 + $0x7b8] sm:$0xff]
        %v520 = vld [vmem:[%s221 + $0x7c0] sm:$0xff]
        %v521 = vld [vmem:[%s221 + $0x7c8] sm:$0xff]
        %v522 = vld [vmem:[%s221 + $0x7d0] sm:$0xff]
        %v523 = vld [vmem:[%s221 + $0x7d8] sm:$0xff]
        %v524 = vld [vmem:[%s221 + $0x7e0] sm:$0xff]
        %v525 = vld [vmem:[%s221 + $0x7e8] sm:$0xff]
        %v526 = vld [vmem:[%s221 + $0x7f0] sm:$0xff]
        %v527 = vld [vmem:[%s221 + $0x7f8] sm:$0xff]
        %v528 = vld [vmem:[%s221 + $0x800] sm:$0xff]
        %v529 = vld [vmem:[%s221 + $0x808] sm:$0xff]
        %v530 = vld [vmem:[%s221 + $0x810] sm:$0xff]
        %v531 = vld [vmem:[%s221 + $0x818] sm:$0xff]
        %v532 = vld [vmem:[%s221 + $0x820] sm:$0xff]
        %v533 = vld [vmem:[%s221 + $0x828] sm:$0xff]
        %v534 = vld [vmem:[%s221 + $0x830] sm:$0xff]
        %v535 = vld [vmem:[%s221 + $0x838] sm:$0xff]
        %v536 = vld [vmem:[%s221 + $0x840] sm:$0xff]
        %v537 = vld [vmem:[%s221 + $0x848] sm:$0xff]
        %v538 = vld [vmem:[%s221 + $0x850] sm:$0xff]
        %v539 = vld [vmem:[%s221 + $0x858] sm:$0xff]
        %v540 = vld [vmem:[%s221 + $0x860] sm:$0xff]
        %v541 = vld [vmem:[%s221 + $0x868] sm:$0xff]
        %v542 = vld [vmem:[%s221 + $0x870] sm:$0xff]
        %v543 = vld [vmem:[%s221 + $0x878] sm:$0xff]
        %v544 = vld [vmem:[%s221 + $0x880] sm:$0xff]
        %v545 = vld [vmem:[%s221 + $0x888] sm:$0xff]
        %v546 = vld [vmem:[%s221 + $0x890] sm:$0xff]
        %v547 = vld [vmem:[%s221 + $0x898] sm:$0xff]
        %v548 = vld [vmem:[%s221 + $0x8a0] sm:$0xff]
        %v549 = vld [vmem:[%s221 + $0x8a8] sm:$0xff]
        %v550 = vld [vmem:[%s221 + $0x8b0] sm:$0xff]
        %v551 = vld [vmem:[%s221 + $0x8b8] sm:$0xff]
        %v552 = vld [vmem:[%s221 + $0x8c0] sm:$0xff]
        %v553 = vld [vmem:[%s221 + $0x8c8] sm:$0xff]
        %v554 = vld [vmem:[%s221 + $0x8d0] sm:$0xff]
        %v555 = vld [vmem:[%s221 + $0x8d8] sm:$0xff]
        %v556 = vld [vmem:[%s221 + $0x8e0] sm:$0xff]
        %v557 = vld [vmem:[%s221 + $0x8e8] sm:$0xff]
        %v558 = vld [vmem:[%s221 + $0x8f0] sm:$0xff]
        %v559 = vld [vmem:[%s221 + $0x8f8] sm:$0xff]
        %v560 = vld [vmem:[%s221 + $0x900] sm:$0xff]
        %v561 = vld [vmem:[%s221 + $0x908] sm:$0xff]
        %v562 = vld [vmem:[%s221 + $0x910] sm:$0xff]
        %v563 = vld [vmem:[%s221 + $0x918] sm:$0xff]
        %v564 = vld [vmem:[%s221 + $0x920] sm:$0xff]
        %v565 = vld [vmem:[%s221 + $0x928] sm:$0xff]
        %v566 = vld [vmem:[%s221 + $0x930] sm:$0xff]
        %v567 = vld [vmem:[%s221 + $0x938] sm:$0xff]
        %v568 = vld [vmem:[%s221 + $0x940] sm:$0xff]
        %v569 = vld [vmem:[%s221 + $0x948] sm:$0xff]
        %v570 = vld [vmem:[%s221 + $0x950] sm:$0xff]
        %v571 = vld [vmem:[%s221 + $0x958] sm:$0xff]
        %v572 = vld [vmem:[%s221 + $0x960] sm:$0xff]
        %v573 = vld [vmem:[%s221 + $0x968] sm:$0xff]
        %v574 = vld [vmem:[%s221 + $0x970] sm:$0xff]
        %v575 = vld [vmem:[%s221 + $0x978] sm:$0xff]
        %v576 = vld [vmem:[%s221 + $0x980] sm:$0xff]
        %v577 = vld [vmem:[%s221 + $0x988] sm:$0xff]
        %v578 = vld [vmem:[%s221 + $0x990] sm:$0xff]
        %v579 = vld [vmem:[%s221 + $0x998] sm:$0xff]
        %v580 = vld [vmem:[%s221 + $0x9a0] sm:$0xff]
        %v581 = vld [vmem:[%s221 + $0x9a8] sm:$0xff]
        %v582 = vld [vmem:[%s221 + $0x9b0] sm:$0xff]
        %v583 = vld [vmem:[%s221 + $0x9b8] sm:$0xff]
        %v584 = vld [vmem:[%s221 + $0x9c0] sm:$0xff]
        %v585 = vld [vmem:[%s221 + $0x9c8] sm:$0xff]
        %v586 = vld [vmem:[%s221 + $0x9d0] sm:$0xff]
        %v587 = vld [vmem:[%s221 + $0x9d8] sm:$0xff]
        %v588 = vld [vmem:[%s221 + $0x9e0] sm:$0xff]
        %v589 = vld [vmem:[%s221 + $0x9e8] sm:$0xff]
        %v590 = vld [vmem:[%s221 + $0x9f0] sm:$0xff]
        %v591 = vld [vmem:[%s221 + $0x9f8] sm:$0xff]
        %v592 = vld [vmem:[%s221 + $0xa00] sm:$0xff]
        %v593 = vld [vmem:[%s221 + $0xa08] sm:$0xff]
        %v594 = vld [vmem:[%s221 + $0xa10] sm:$0xff]
        %v595 = vld [vmem:[%s221 + $0xa18] sm:$0xff]
        %v596 = vld [vmem:[%s221 + $0xa20] sm:$0xff]
        %v597 = vld [vmem:[%s221 + $0xa28] sm:$0xff]
        %v598 = vld [vmem:[%s221 + $0xa30] sm:$0xff]
        %v599 = vld [vmem:[%s221 + $0xa38] sm:$0xff]
        %v600 = vld [vmem:[%s221 + $0xa40] sm:$0xff]
        %v601 = vld [vmem:[%s221 + $0xa48] sm:$0xff]
        %v602 = vld [vmem:[%s221 + $0xa50] sm:$0xff]
        %v603 = vld [vmem:[%s221 + $0xa58] sm:$0xff]
        %v604 = vld [vmem:[%s221 + $0xa60] sm:$0xff]
        %v605 = vld [vmem:[%s221 + $0xa68] sm:$0xff]
        %v606 = vld [vmem:[%s221 + $0xa70] sm:$0xff]
        %v607 = vld [vmem:[%s221 + $0xa78] sm:$0xff]
        %v608 = vld [vmem:[%s221 + $0xa80] sm:$0xff]
        %v609 = vld [vmem:[%s221 + $0xa88] sm:$0xff]
        %v610 = vld [vmem:[%s221 + $0xa90] sm:$0xff]
        %v611 = vld [vmem:[%s221 + $0xa98] sm:$0xff]
        %v612 = vld [vmem:[%s221 + $0xaa0] sm:$0xff]
        %v613 = vld [vmem:[%s221 + $0xaa8] sm:$0xff]
        %v614 = vld [vmem:[%s221 + $0xab0] sm:$0xff]
        %v615 = vld [vmem:[%s221 + $0xab8] sm:$0xff]
        %v616 = vld [vmem:[%s221 + $0xac0] sm:$0xff]
        %v617 = vld [vmem:[%s221 + $0xac8] sm:$0xff]
        %v618 = vld [vmem:[%s221 + $0xad0] sm:$0xff]
        %v619 = vld [vmem:[%s221 + $0xad8] sm:$0xff]
        %v620 = vld [vmem:[%s221 + $0xae0] sm:$0xff]
        %v621 = vld [vmem:[%s221 + $0xae8] sm:$0xff]
        %v622 = vld [vmem:[%s221 + $0xaf0] sm:$0xff]
        %v623 = vld [vmem:[%s221 + $0xaf8] sm:$0xff]
        %v624 = vld [vmem:[%s221 + $0xb00] sm:$0xff]
        %v625 = vld [vmem:[%s221 + $0xb08] sm:$0xff]
        %v626 = vld [vmem:[%s221 + $0xb10] sm:$0xff]
        %v627 = vld [vmem:[%s221 + $0xb18] sm:$0xff]
        %v628 = vld [vmem:[%s221 + $0xb20] sm:$0xff]
        %v629 = vld [vmem:[%s221 + $0xb28] sm:$0xff]
        %v630 = vld [vmem:[%s221 + $0xb30] sm:$0xff]
        %v631 = vld [vmem:[%s221 + $0xb38] sm:$0xff]
        %v632 = vld [vmem:[%s221 + $0xb40] sm:$0xff]
        %v633 = vld [vmem:[%s221 + $0xb48] sm:$0xff]
        %v634 = vld [vmem:[%s221 + $0xb50] sm:$0xff]
        %v635 = vld [vmem:[%s221 + $0xb58] sm:$0xff]
        %v636 = vld [vmem:[%s221 + $0xb60] sm:$0xff]
        %v637 = vld [vmem:[%s221 + $0xb68] sm:$0xff]
        %v638 = vld [vmem:[%s221 + $0xb70] sm:$0xff]
        %v639 = vld [vmem:[%s221 + $0xb78] sm:$0xff]
        %v640 = vld [vmem:[%s221 + $0xb80] sm:$0xff]
        %v641 = vld [vmem:[%s221 + $0xb88] sm:$0xff]
        %v642 = vld [vmem:[%s221 + $0xb90] sm:$0xff]
        %v643 = vld [vmem:[%s221 + $0xb98] sm:$0xff]
        %v644 = vld [vmem:[%s221 + $0xba0] sm:$0xff]
        %v645 = vld [vmem:[%s221 + $0xba8] sm:$0xff]
        %v646 = vld [vmem:[%s221 + $0xbb0] sm:$0xff]
        %v647 = vld [vmem:[%s221 + $0xbb8] sm:$0xff]
        %v648 = vld [vmem:[%s221 + $0xbc0] sm:$0xff]
        %v649 = vld [vmem:[%s221 + $0xbc8] sm:$0xff]
        %v650 = vld [vmem:[%s221 + $0xbd0] sm:$0xff]
        %v651 = vld [vmem:[%s221 + $0xbd8] sm:$0xff]
        %v652 = vld [vmem:[%s221 + $0xbe0] sm:$0xff]
        %v653 = vld [vmem:[%s221 + $0xbe8] sm:$0xff]
        %v654 = vld [vmem:[%s221 + $0xbf0] sm:$0xff]
        %v655 = vld [vmem:[%s221 + $0xbf8] sm:$0xff]
        %v656 = vld [vmem:[%s221 + $0xc00] sm:$0xff]
        %v657 = vld [vmem:[%s221 + $0xc08] sm:$0xff]
        %v658 = vld [vmem:[%s221 + $0xc10] sm:$0xff]
        %v659 = vld [vmem:[%s221 + $0xc18] sm:$0xff]
        %v660 = vld [vmem:[%s221 + $0xc20] sm:$0xff]
        %v661 = vld [vmem:[%s221 + $0xc28] sm:$0xff]
        %v662 = vld [vmem:[%s221 + $0xc30] sm:$0xff]
        %v663 = vld [vmem:[%s221 + $0xc38] sm:$0xff]
        %v664 = vld [vmem:[%s221 + $0xc40] sm:$0xff]
        %v665 = vld [vmem:[%s221 + $0xc48] sm:$0xff]
        %v666 = vld [vmem:[%s221 + $0xc50] sm:$0xff]
        %v667 = vld [vmem:[%s221 + $0xc58] sm:$0xff]
        %v668 = vld [vmem:[%s221 + $0xc60] sm:$0xff]
        %v669 = vld [vmem:[%s221 + $0xc68] sm:$0xff]
        %v670 = vld [vmem:[%s221 + $0xc70] sm:$0xff]
        %v671 = vld [vmem:[%s221 + $0xc78] sm:$0xff]
        %v672 = vld [vmem:[%s221 + $0xc80] sm:$0xff]
        %v673 = vld [vmem:[%s221 + $0xc88] sm:$0xff]
        %v674 = vld [vmem:[%s221 + $0xc90] sm:$0xff]
        %v675 = vld [vmem:[%s221 + $0xc98] sm:$0xff]
        %v676 = vld [vmem:[%s221 + $0xca0] sm:$0xff]
        %v677 = vld [vmem:[%s221 + $0xca8] sm:$0xff]
        %v678 = vld [vmem:[%s221 + $0xcb0] sm:$0xff]
        %v679 = vld [vmem:[%s221 + $0xcb8] sm:$0xff]
        %v680 = vld [vmem:[%s221 + $0xcc0] sm:$0xff]
        %v681 = vld [vmem:[%s221 + $0xcc8] sm:$0xff]
        %v682 = vld [vmem:[%s221 + $0xcd0] sm:$0xff]
        %v683 = vld [vmem:[%s221 + $0xcd8] sm:$0xff]
        %v684 = vld [vmem:[%s221 + $0xce0] sm:$0xff]
        %v685 = vld [vmem:[%s221 + $0xce8] sm:$0xff]
        %v686 = vld [vmem:[%s221 + $0xcf0] sm:$0xff]
        %v687 = vld [vmem:[%s221 + $0xcf8] sm:$0xff]
        %v688 = vld [vmem:[%s221 + $0xd00] sm:$0xff]
        %v689 = vld [vmem:[%s221 + $0xd08] sm:$0xff]
        %v690 = vld [vmem:[%s221 + $0xd10] sm:$0xff]
        %v691 = vld [vmem:[%s221 + $0xd18] sm:$0xff]
        %v692 = vld [vmem:[%s221 + $0xd20] sm:$0xff]
        %v693 = vld [vmem:[%s221 + $0xd28] sm:$0xff]
        %v694 = vld [vmem:[%s221 + $0xd30] sm:$0xff]
        %v695 = vld [vmem:[%s221 + $0xd38] sm:$0xff]
        %v696 = vld [vmem:[%s221 + $0xd40] sm:$0xff]
        %v697 = vld [vmem:[%s221 + $0xd48] sm:$0xff]
        %v698 = vld [vmem:[%s221 + $0xd50] sm:$0xff]
        %v699 = vld [vmem:[%s221 + $0xd58] sm:$0xff]
        %v700 = vld [vmem:[%s221 + $0xd60] sm:$0xff]
        %v701 = vld [vmem:[%s221 + $0xd68] sm:$0xff]
        %v702 = vld [vmem:[%s221 + $0xd70] sm:$0xff]
        %v703 = vld [vmem:[%s221 + $0xd78] sm:$0xff]
        %v704 = vld [vmem:[%s221 + $0xd80] sm:$0xff]
        %v705 = vld [vmem:[%s221 + $0xd88] sm:$0xff]
        %v706 = vld [vmem:[%s221 + $0xd90] sm:$0xff]
        %v707 = vld [vmem:[%s221 + $0xd98] sm:$0xff]
        %v708 = vld [vmem:[%s221 + $0xda0] sm:$0xff]
        %v709 = vld [vmem:[%s221 + $0xda8] sm:$0xff]
        %v710 = vld [vmem:[%s221 + $0xdb0] sm:$0xff]
        %v711 = vld [vmem:[%s221 + $0xdb8] sm:$0xff]
        %v712 = vld [vmem:[%s221 + $0xdc0] sm:$0xff]
        %v713 = vld [vmem:[%s221 + $0xdc8] sm:$0xff]
        %v714 = vld [vmem:[%s221 + $0xdd0] sm:$0xff]
        %v715 = vld [vmem:[%s221 + $0xdd8] sm:$0xff]
        %v716 = vld [vmem:[%s221 + $0xde0] sm:$0xff]
        %v717 = vld [vmem:[%s221 + $0xde8] sm:$0xff]
        %v718 = vld [vmem:[%s221 + $0xdf0] sm:$0xff]
        %v719 = vld [vmem:[%s221 + $0xdf8] sm:$0xff]
        %v720 = vld [vmem:[%s221 + $0xe00] sm:$0xff]
        %v721 = vld [vmem:[%s221 + $0xe08] sm:$0xff]
        %v722 = vld [vmem:[%s221 + $0xe10] sm:$0xff]
        %v723 = vld [vmem:[%s221 + $0xe18] sm:$0xff]
        %v724 = vld [vmem:[%s221 + $0xe20] sm:$0xff]
        %v725 = vld [vmem:[%s221 + $0xe28] sm:$0xff]
        %v726 = vld [vmem:[%s221 + $0xe30] sm:$0xff]
        %v727 = vld [vmem:[%s221 + $0xe38] sm:$0xff]
        %v728 = vld [vmem:[%s221 + $0xe40] sm:$0xff]
        %v729 = vld [vmem:[%s221 + $0xe48] sm:$0xff]
        %v730 = vld [vmem:[%s221 + $0xe50] sm:$0xff]
        %v731 = vld [vmem:[%s221 + $0xe58] sm:$0xff]
        %v732 = vld [vmem:[%s221 + $0xe60] sm:$0xff]
        %v733 = vld [vmem:[%s221 + $0xe68] sm:$0xff]
        %v734 = vld [vmem:[%s221 + $0xe70] sm:$0xff]
        %v735 = vld [vmem:[%s221 + $0xe78] sm:$0xff]
        %v736 = vld [vmem:[%s221 + $0xe80] sm:$0xff]
        %v737 = vld [vmem:[%s221 + $0xe88] sm:$0xff]
        %v738 = vld [vmem:[%s221 + $0xe90] sm:$0xff]
        %v739 = vld [vmem:[%s221 + $0xe98] sm:$0xff]
        %v740 = vld [vmem:[%s221 + $0xea0] sm:$0xff]
        %v741 = vld [vmem:[%s221 + $0xea8] sm:$0xff]
        %v742 = vld [vmem:[%s221 + $0xeb0] sm:$0xff]
        %v743 = vld [vmem:[%s221 + $0xeb8] sm:$0xff]
        %v744 = vld [vmem:[%s221 + $0xec0] sm:$0xff]
        %v745 = vld [vmem:[%s221 + $0xec8] sm:$0xff]
        %v746 = vld [vmem:[%s221 + $0xed0] sm:$0xff]
        %v747 = vld [vmem:[%s221 + $0xed8] sm:$0xff]
        %v748 = vld [vmem:[%s221 + $0xee0] sm:$0xff]
        %v749 = vld [vmem:[%s221 + $0xee8] sm:$0xff]
        %v750 = vld [vmem:[%s221 + $0xef0] sm:$0xff]
        %v751 = vld [vmem:[%s221 + $0xef8] sm:$0xff]
        %v752 = vld [vmem:[%s221 + $0xf00] sm:$0xff]
        %v753 = vld [vmem:[%s221 + $0xf08] sm:$0xff]
        %v754 = vld [vmem:[%s221 + $0xf10] sm:$0xff]
        %v755 = vld [vmem:[%s221 + $0xf18] sm:$0xff]
        %v756 = vld [vmem:[%s221 + $0xf20] sm:$0xff]
        %v757 = vld [vmem:[%s221 + $0xf28] sm:$0xff]
        %v758 = vld [vmem:[%s221 + $0xf30] sm:$0xff]
        %v759 = vld [vmem:[%s221 + $0xf38] sm:$0xff]
        %v760 = vld [vmem:[%s221 + $0xf40] sm:$0xff]
        %v761 = vld [vmem:[%s221 + $0xf48] sm:$0xff]
        %v762 = vld [vmem:[%s221 + $0xf50] sm:$0xff]
        %v763 = vld [vmem:[%s221 + $0xf58] sm:$0xff]
        %v764 = vld [vmem:[%s221 + $0xf60] sm:$0xff]
        %v765 = vld [vmem:[%s221 + $0xf68] sm:$0xff]
        %v766 = vld [vmem:[%s221 + $0xf70] sm:$0xff]
        %v767 = vld [vmem:[%s221 + $0xf78] sm:$0xff]
        %v768 = vld [vmem:[%s221 + $0xf80] sm:$0xff]
        %v769 = vld [vmem:[%s221 + $0xf88] sm:$0xff]
        %v770 = vld [vmem:[%s221 + $0xf90] sm:$0xff]
        %v771 = vld [vmem:[%s221 + $0xf98] sm:$0xff]
        %v772 = vld [vmem:[%s221 + $0xfa0] sm:$0xff]
        %v773 = vld [vmem:[%s221 + $0xfa8] sm:$0xff]
        %v774 = vld [vmem:[%s221 + $0xfb0] sm:$0xff]
        %v775 = vld [vmem:[%s221 + $0xfb8] sm:$0xff]
        %v776 = vld [vmem:[%s221 + $0xfc0] sm:$0xff]
        %v777 = vld [vmem:[%s221 + $0xfc8] sm:$0xff]
        %v778 = vld [vmem:[%s221 + $0xfd0] sm:$0xff]
        %v779 = vld [vmem:[%s221 + $0xfd8] sm:$0xff]
        %v780 = vld [vmem:[%s221 + $0xfe0] sm:$0xff]
        %v781 = vld [vmem:[%s221 + $0xfe8] sm:$0xff]
        %v782 = vld [vmem:[%s221 + $0xff0] sm:$0xff]
        %v783 = vld [vmem:[%s221 + $0xff8] sm:$0xff]
        %v784 = vld [vmem:[%s221 + $0x1000] sm:$0xff]
        %v785 = vld [vmem:[%s221 + $0x1008] sm:$0xff]
        %v786 = vld [vmem:[%s221 + $0x1010] sm:$0xff]
        %v787 = vld [vmem:[%s221 + $0x1018] sm:$0xff]
        %v788 = vld [vmem:[%s221 + $0x1020] sm:$0xff]
        %v789 = vld [vmem:[%s221 + $0x1028] sm:$0xff]
        %v790 = vld [vmem:[%s221 + $0x1030] sm:$0xff]
        %v791 = vld [vmem:[%s221 + $0x1038] sm:$0xff]
        %v792 = vld [vmem:[%s221 + $0x1040] sm:$0xff]
        %v793 = vld [vmem:[%s221 + $0x1048] sm:$0xff]
        %v794 = vld [vmem:[%s221 + $0x1050] sm:$0xff]
        %v795 = vld [vmem:[%s221 + $0x1058] sm:$0xff]
        %v796 = vld [vmem:[%s221 + $0x1060] sm:$0xff]
        %v797 = vld [vmem:[%s221 + $0x1068] sm:$0xff]
        %v798 = vld [vmem:[%s221 + $0x1070] sm:$0xff]
        %v799 = vld [vmem:[%s221 + $0x1078] sm:$0xff]
        %v800 = vld [vmem:[%s221 + $0x1080] sm:$0xff]
        %v801 = vld [vmem:[%s221 + $0x1088] sm:$0xff]
        %v802 = vld [vmem:[%s221 + $0x1090] sm:$0xff]
        %v803 = vld [vmem:[%s221 + $0x1098] sm:$0xff]
        %v804 = vld [vmem:[%s221 + $0x10a0] sm:$0xff]
        %v805 = vld [vmem:[%s221 + $0x10a8] sm:$0xff]
        %v806 = vld [vmem:[%s221 + $0x10b0] sm:$0xff]
        %v807 = vld [vmem:[%s221 + $0x10b8] sm:$0xff]
        %v808 = vld [vmem:[%s221 + $0x10c0] sm:$0xff]
        %v809 = vld [vmem:[%s221 + $0x10c8] sm:$0xff]
        %v810 = vld [vmem:[%s221 + $0x10d0] sm:$0xff]
        %v811 = vld [vmem:[%s221 + $0x10d8] sm:$0xff]
        %v812 = vld [vmem:[%s221 + $0x10e0] sm:$0xff]
        %v813 = vld [vmem:[%s221 + $0x10e8] sm:$0xff]
        %v814 = vld [vmem:[%s221 + $0x10f0] sm:$0xff]
        %v815 = vld [vmem:[%s221 + $0x10f8] sm:$0xff]
        %v816 = vld [vmem:[%s221 + $0x1100] sm:$0xff]
        %v817 = vld [vmem:[%s221 + $0x1108] sm:$0xff]
        %v818 = vld [vmem:[%s221 + $0x1110] sm:$0xff]
        %v819 = vld [vmem:[%s221 + $0x1118] sm:$0xff]
        %v820 = vld [vmem:[%s221 + $0x1120] sm:$0xff]
        %v821 = vld [vmem:[%s221 + $0x1128] sm:$0xff]
        %v822 = vld [vmem:[%s221 + $0x1130] sm:$0xff]
        %v823 = vld [vmem:[%s221 + $0x1138] sm:$0xff]
        %v824 = vld [vmem:[%s221 + $0x1140] sm:$0xff]
        %v825 = vld [vmem:[%s221 + $0x1148] sm:$0xff]
        %v826 = vld [vmem:[%s221 + $0x1150] sm:$0xff]
        %v827 = vld [vmem:[%s221 + $0x1158] sm:$0xff]
        %v828 = vld [vmem:[%s221 + $0x1160] sm:$0xff]
        %v829 = vld [vmem:[%s221 + $0x1168] sm:$0xff]
        %v830 = vld [vmem:[%s221 + $0x1170] sm:$0xff]
        %v831 = vld [vmem:[%s221 + $0x1178] sm:$0xff]
        %v832 = vld [vmem:[%s221 + $0x1180] sm:$0xff]
        %v833 = vld [vmem:[%s221 + $0x1188] sm:$0xff]
        %v834 = vld [vmem:[%s221 + $0x1190] sm:$0xff]
        %v835 = vld [vmem:[%s221 + $0x1198] sm:$0xff]
        %v836 = vld [vmem:[%s221 + $0x11a0] sm:$0xff]
        %v837 = vld [vmem:[%s221 + $0x11a8] sm:$0xff]
        %v838 = vld [vmem:[%s221 + $0x11b0] sm:$0xff]
        %v839 = vld [vmem:[%s221 + $0x11b8] sm:$0xff]
        %v840 = vld [vmem:[%s221 + $0x11c0] sm:$0xff]
        %v841 = vld [vmem:[%s221 + $0x11c8] sm:$0xff]
        %v842 = vld [vmem:[%s221 + $0x11d0] sm:$0xff]
        %v843 = vld [vmem:[%s221 + $0x11d8] sm:$0xff]
        %v844 = vld [vmem:[%s221 + $0x11e0] sm:$0xff]
        %v845 = vld [vmem:[%s221 + $0x11e8] sm:$0xff]
        %v846 = vld [vmem:[%s221 + $0x11f0] sm:$0xff]
        %v847 = vld [vmem:[%s221 + $0x11f8] sm:$0xff]
        %v848 = vld [vmem:[%s221 + $0x1200] sm:$0xff]
        %v849 = vld [vmem:[%s221 + $0x1208] sm:$0xff]
        %v850 = vld [vmem:[%s221 + $0x1210] sm:$0xff]
        %v851 = vld [vmem:[%s221 + $0x1218] sm:$0xff]
        %v852 = vld [vmem:[%s221 + $0x1220] sm:$0xff]
        %v853 = vld [vmem:[%s221 + $0x1228] sm:$0xff]
        %v854 = vld [vmem:[%s221 + $0x1230] sm:$0xff]
        %v855 = vld [vmem:[%s221 + $0x1238] sm:$0xff]
        %v856 = vld [vmem:[%s221 + $0x1240] sm:$0xff]
        %v857 = vld [vmem:[%s221 + $0x1248] sm:$0xff]
        %v858 = vld [vmem:[%s221 + $0x1250] sm:$0xff]
        %v859 = vld [vmem:[%s221 + $0x1258] sm:$0xff]
        %v860 = vld [vmem:[%s221 + $0x1260] sm:$0xff]
        %v861 = vld [vmem:[%s221 + $0x1268] sm:$0xff]
        %v862 = vld [vmem:[%s221 + $0x1270] sm:$0xff]
        %v863 = vld [vmem:[%s221 + $0x1278] sm:$0xff]
        %v864 = vld [vmem:[%s221 + $0x1280] sm:$0xff]
        %v865 = vld [vmem:[%s221 + $0x1288] sm:$0xff]
        %v866 = vld [vmem:[%s221 + $0x1290] sm:$0xff]
        %v867 = vld [vmem:[%s221 + $0x1298] sm:$0xff]
        %v868 = vld [vmem:[%s221 + $0x12a0] sm:$0xff]
        %v869 = vld [vmem:[%s221 + $0x12a8] sm:$0xff]
        %v870 = vld [vmem:[%s221 + $0x12b0] sm:$0xff]
        %v871 = vld [vmem:[%s221 + $0x12b8] sm:$0xff]
        %v872 = vld [vmem:[%s221 + $0x12c0] sm:$0xff]
        %v873 = vld [vmem:[%s221 + $0x12c8] sm:$0xff]
        %v874 = vld [vmem:[%s221 + $0x12d0] sm:$0xff]
        %v875 = vld [vmem:[%s221 + $0x12d8] sm:$0xff]
        %v876 = vld [vmem:[%s221 + $0x12e0] sm:$0xff]
        %v877 = vld [vmem:[%s221 + $0x12e8] sm:$0xff]
        %v878 = vld [vmem:[%s221 + $0x12f0] sm:$0xff]
        %v879 = vld [vmem:[%s221 + $0x12f8] sm:$0xff]
        %v880 = vld [vmem:[%s221 + $0x1300] sm:$0xff]
        %v881 = vld [vmem:[%s221 + $0x1308] sm:$0xff]
        %v882 = vld [vmem:[%s221 + $0x1310] sm:$0xff]
        %v883 = vld [vmem:[%s221 + $0x1318] sm:$0xff]
        %v884 = vld [vmem:[%s221 + $0x1320] sm:$0xff]
        %v885 = vld [vmem:[%s221 + $0x1328] sm:$0xff]
        %v886 = vld [vmem:[%s221 + $0x1330] sm:$0xff]
        %v887 = vld [vmem:[%s221 + $0x1338] sm:$0xff]
        %v888 = vld [vmem:[%s221 + $0x1340] sm:$0xff]
        %v889 = vld [vmem:[%s221 + $0x1348] sm:$0xff]
        %v890 = vld [vmem:[%s221 + $0x1350] sm:$0xff]
        %v891 = vld [vmem:[%s221 + $0x1358] sm:$0xff]
        %v892 = vld [vmem:[%s221 + $0x1360] sm:$0xff]
        %v893 = vld [vmem:[%s221 + $0x1368] sm:$0xff]
        %v894 = vld [vmem:[%s221 + $0x1370] sm:$0xff]
        %v895 = vld [vmem:[%s221 + $0x1378] sm:$0xff]
        %v896 = vld [vmem:[%s221 + $0x1380] sm:$0xff]
        %v897 = vld [vmem:[%s221 + $0x1388] sm:$0xff]
        %v898 = vld [vmem:[%s221 + $0x1390] sm:$0xff]
        %v899 = vld [vmem:[%s221 + $0x1398] sm:$0xff]
        %v900 = vld [vmem:[%s221 + $0x13a0] sm:$0xff]
        %v901 = vld [vmem:[%s221 + $0x13a8] sm:$0xff]
        %v902 = vld [vmem:[%s221 + $0x13b0] sm:$0xff]
        %v903 = vld [vmem:[%s221 + $0x13b8] sm:$0xff]
        %v904 = vld [vmem:[%s221 + $0x13c0] sm:$0xff]
        %v905 = vld [vmem:[%s221 + $0x13c8] sm:$0xff]
        %v906 = vld [vmem:[%s221 + $0x13d0] sm:$0xff]
        %v907 = vld [vmem:[%s221 + $0x13d8] sm:$0xff]
        %v908 = vld [vmem:[%s221 + $0x13e0] sm:$0xff]
        %v909 = vld [vmem:[%s221 + $0x13e8] sm:$0xff]
        %v910 = vld [vmem:[%s221 + $0x13f0] sm:$0xff]
        %v911 = vld [vmem:[%s221 + $0x13f8] sm:$0xff]
        %v912 = vld [vmem:[%s221 + $0x1400] sm:$0xff]
        %v913 = vld [vmem:[%s221 + $0x1408] sm:$0xff]
        %v914 = vld [vmem:[%s221 + $0x1410] sm:$0xff]
        %v915 = vld [vmem:[%s221 + $0x1418] sm:$0xff]
        %v916 = vld [vmem:[%s221 + $0x1420] sm:$0xff]
        %v917 = vld [vmem:[%s221 + $0x1428] sm:$0xff]
        %v918 = vld [vmem:[%s221 + $0x1430] sm:$0xff]
        %v919 = vld [vmem:[%s221 + $0x1438] sm:$0xff]
        %v920 = vld [vmem:[%s221 + $0x1440] sm:$0xff]
        %v921 = vld [vmem:[%s221 + $0x1448] sm:$0xff]
        %v922 = vld [vmem:[%s221 + $0x1450] sm:$0xff]
        %v923 = vld [vmem:[%s221 + $0x1458] sm:$0xff]
        %v924 = vld [vmem:[%s221 + $0x1460] sm:$0xff]
        %v925 = vld [vmem:[%s221 + $0x1468] sm:$0xff]
        %v926 = vld [vmem:[%s221 + $0x1470] sm:$0xff]
        %v927 = vld [vmem:[%s221 + $0x1478] sm:$0xff]
        %v928 = vld [vmem:[%s221 + $0x1480] sm:$0xff]
        %v929 = vld [vmem:[%s221 + $0x1488] sm:$0xff]
        %v930 = vld [vmem:[%s221 + $0x1490] sm:$0xff]
        %v931 = vld [vmem:[%s221 + $0x1498] sm:$0xff]
        %v932 = vld [vmem:[%s221 + $0x14a0] sm:$0xff]
        %v933 = vld [vmem:[%s221 + $0x14a8] sm:$0xff]
        %v934 = vld [vmem:[%s221 + $0x14b0] sm:$0xff]
        %v935 = vld [vmem:[%s221 + $0x14b8] sm:$0xff]
        %v936 = vld [vmem:[%s221 + $0x14c0] sm:$0xff]
        %v937 = vld [vmem:[%s221 + $0x14c8] sm:$0xff]
        %v938 = vld [vmem:[%s221 + $0x14d0] sm:$0xff]
        %v939 = vld [vmem:[%s221 + $0x14d8] sm:$0xff]
        %v940 = vld [vmem:[%s221 + $0x14e0] sm:$0xff]
        %v941 = vld [vmem:[%s221 + $0x14e8] sm:$0xff]
        %v942 = vld [vmem:[%s221 + $0x14f0] sm:$0xff]
        %v943 = vld [vmem:[%s221 + $0x14f8] sm:$0xff]
        %v944 = vld [vmem:[%s221 + $0x1500] sm:$0xff]
        %v945 = vld [vmem:[%s221 + $0x1508] sm:$0xff]
        %v946 = vld [vmem:[%s221 + $0x1510] sm:$0xff]
        %v947 = vld [vmem:[%s221 + $0x1518] sm:$0xff]
        %v948 = vld [vmem:[%s221 + $0x1520] sm:$0xff]
        %v949 = vld [vmem:[%s221 + $0x1528] sm:$0xff]
        %v950 = vld [vmem:[%s221 + $0x1530] sm:$0xff]
        %v951 = vld [vmem:[%s221 + $0x1538] sm:$0xff]
        %v952 = vld [vmem:[%s221 + $0x1540] sm:$0xff]
        %v953 = vld [vmem:[%s221 + $0x1548] sm:$0xff]
        %v954 = vld [vmem:[%s221 + $0x1550] sm:$0xff]
        %v955 = vld [vmem:[%s221 + $0x1558] sm:$0xff]
        %v956 = vld [vmem:[%s221 + $0x1560] sm:$0xff]
        %v957 = vld [vmem:[%s221 + $0x1568] sm:$0xff]
        %v958 = vld [vmem:[%s221 + $0x1570] sm:$0xff]
        %v959 = vld [vmem:[%s221 + $0x1578] sm:$0xff]
        %v960 = vld [vmem:[%s221 + $0x1580] sm:$0xff]
        %v961 = vld [vmem:[%s221 + $0x1588] sm:$0xff]
        %v962 = vld [vmem:[%s221 + $0x1590] sm:$0xff]
        %v963 = vld [vmem:[%s221 + $0x1598] sm:$0xff]
        %v964 = vld [vmem:[%s221 + $0x15a0] sm:$0xff]
        %v965 = vld [vmem:[%s221 + $0x15a8] sm:$0xff]
        %v966 = vld [vmem:[%s221 + $0x15b0] sm:$0xff]
        %v967 = vld [vmem:[%s221 + $0x15b8] sm:$0xff]
        %v968 = vld [vmem:[%s221 + $0x15c0] sm:$0xff]
        %v969 = vld [vmem:[%s221 + $0x15c8] sm:$0xff]
        %v970 = vld [vmem:[%s221 + $0x15d0] sm:$0xff]
        %v971 = vld [vmem:[%s221 + $0x15d8] sm:$0xff]
        %v972 = vld [vmem:[%s221 + $0x15e0] sm:$0xff]
        %v973 = vld [vmem:[%s221 + $0x15e8] sm:$0xff]
        %v974 = vld [vmem:[%s221 + $0x15f0] sm:$0xff]
        %v975 = vld [vmem:[%s221 + $0x15f8] sm:$0xff]
        %v976 = vld [vmem:[%s221 + $0x1600] sm:$0xff]
        %v977 = vld [vmem:[%s221 + $0x1608] sm:$0xff]
        %v978 = vld [vmem:[%s221 + $0x1610] sm:$0xff]
        %v979 = vld [vmem:[%s221 + $0x1618] sm:$0xff]
        %v980 = vld [vmem:[%s221 + $0x1620] sm:$0xff]
        %v981 = vld [vmem:[%s221 + $0x1628] sm:$0xff]
        %v982 = vld [vmem:[%s221 + $0x1630] sm:$0xff]
        %v983 = vld [vmem:[%s221 + $0x1638] sm:$0xff]
        %v984 = vld [vmem:[%s221 + $0x1640] sm:$0xff]
        %v985 = vld [vmem:[%s221 + $0x1648] sm:$0xff]
        %v986 = vld [vmem:[%s221 + $0x1650] sm:$0xff]
        %v987 = vld [vmem:[%s221 + $0x1658] sm:$0xff]
        %v988 = vld [vmem:[%s221 + $0x1660] sm:$0xff]
        %v989 = vld [vmem:[%s221 + $0x1668] sm:$0xff]
        %v990 = vld [vmem:[%s221 + $0x1670] sm:$0xff]
        %v991 = vld [vmem:[%s221 + $0x1678] sm:$0xff]
        %v992 = vld [vmem:[%s221 + $0x1680] sm:$0xff]
        %v993 = vld [vmem:[%s221 + $0x1688] sm:$0xff]
        %v994 = vld [vmem:[%s221 + $0x1690] sm:$0xff]
        %v995 = vld [vmem:[%s221 + $0x1698] sm:$0xff]
        %v996 = vld [vmem:[%s221 + $0x16a0] sm:$0xff]
        %v997 = vld [vmem:[%s221 + $0x16a8] sm:$0xff]
        %v998 = vld [vmem:[%s221 + $0x16b0] sm:$0xff]
        %v999 = vld [vmem:[%s221 + $0x16b8] sm:$0xff]
        %v1000 = vld [vmem:[%s221 + $0x16c0] sm:$0xff]
        %v1001 = vld [vmem:[%s221 + $0x16c8] sm:$0xff]
        %v1002 = vld [vmem:[%s221 + $0x16d0] sm:$0xff]
        %v1003 = vld [vmem:[%s221 + $0x16d8] sm:$0xff]
        %v1004 = vld [vmem:[%s221 + $0x16e0] sm:$0xff]
        %v1005 = vld [vmem:[%s221 + $0x16e8] sm:$0xff]
        %v1006 = vld [vmem:[%s221 + $0x16f0] sm:$0xff]
        %v1007 = vld [vmem:[%s221 + $0x16f8] sm:$0xff]
        %v1008 = vld [vmem:[%s221 + $0x1700] sm:$0xff]
        %v1009 = vld [vmem:[%s221 + $0x1708] sm:$0xff]
        %v1010 = vld [vmem:[%s221 + $0x1710] sm:$0xff]
        %v1011 = vld [vmem:[%s221 + $0x1718] sm:$0xff]
        %v1012 = vld [vmem:[%s221 + $0x1720] sm:$0xff]
        %v1013 = vld [vmem:[%s221 + $0x1728] sm:$0xff]
        %v1014 = vld [vmem:[%s221 + $0x1730] sm:$0xff]
        %v1015 = vld [vmem:[%s221 + $0x1738] sm:$0xff]
        %v1016 = vld [vmem:[%s221 + $0x1740] sm:$0xff]
        %v1017 = vld [vmem:[%s221 + $0x1748] sm:$0xff]
        %v1018 = vld [vmem:[%s221 + $0x1750] sm:$0xff]
        %v1019 = vld [vmem:[%s221 + $0x1758] sm:$0xff]
        %v1020 = vld [vmem:[%s221 + $0x1760] sm:$0xff]
        %v1021 = vld [vmem:[%s221 + $0x1768] sm:$0xff]
        %v1022 = vld [vmem:[%s221 + $0x1770] sm:$0xff]
        %v1023 = vld [vmem:[%s221 + $0x1778] sm:$0xff]
        %v1024 = vld [vmem:[%s221 + $0x1780] sm:$0xff]
        %v1025 = vld [vmem:[%s221 + $0x1788] sm:$0xff]
        %v1026 = vld [vmem:[%s221 + $0x1790] sm:$0xff]
        %v1027 = vld [vmem:[%s221 + $0x1798] sm:$0xff]
        %v1028 = vld [vmem:[%s221 + $0x17a0] sm:$0xff]
        %v1029 = vld [vmem:[%s221 + $0x17a8] sm:$0xff]
        %v1030 = vld [vmem:[%s221 + $0x17b0] sm:$0xff]
        %v1031 = vld [vmem:[%s221 + $0x17b8] sm:$0xff]
        %v1032 = vld [vmem:[%s221 + $0x17c0] sm:$0xff]
        %v1033 = vld [vmem:[%s221 + $0x17c8] sm:$0xff]
        %v1034 = vld [vmem:[%s221 + $0x17d0] sm:$0xff]
        %v1035 = vld [vmem:[%s221 + $0x17d8] sm:$0xff]
        %v1036 = vld [vmem:[%s221 + $0x17e0] sm:$0xff]
        %v1037 = vld [vmem:[%s221 + $0x17e8] sm:$0xff]
        %v1038 = vld [vmem:[%s221 + $0x17f0] sm:$0xff]
        %v1039 = vld [vmem:[%s221 + $0x17f8] sm:$0xff]
        %v1040 = vld [vmem:[%s221 + $0x1800] sm:$0xff]
        %v1041 = vld [vmem:[%s221 + $0x1808] sm:$0xff]
        %v1042 = vld [vmem:[%s221 + $0x1810] sm:$0xff]
        %v1043 = vld [vmem:[%s221 + $0x1818] sm:$0xff]
        %v1044 = vld [vmem:[%s221 + $0x1820] sm:$0xff]
        %v1045 = vld [vmem:[%s221 + $0x1828] sm:$0xff]
        %v1046 = vld [vmem:[%s221 + $0x1830] sm:$0xff]
        %v1047 = vld [vmem:[%s221 + $0x1838] sm:$0xff]
        %v1048 = vld [vmem:[%s221 + $0x1840] sm:$0xff]
        %v1049 = vld [vmem:[%s221 + $0x1848] sm:$0xff]
        %v1050 = vld [vmem:[%s221 + $0x1850] sm:$0xff]
        %v1051 = vld [vmem:[%s221 + $0x1858] sm:$0xff]
        %v1052 = vld [vmem:[%s221 + $0x1860] sm:$0xff]
        %v1053 = vld [vmem:[%s221 + $0x1868] sm:$0xff]
        %v1054 = vld [vmem:[%s221 + $0x1870] sm:$0xff]
        %v1055 = vld [vmem:[%s221 + $0x1878] sm:$0xff]
        %v1056 = vld [vmem:[%s221 + $0x1880] sm:$0xff]
        %v1057 = vld [vmem:[%s221 + $0x1888] sm:$0xff]
        %v1058 = vld [vmem:[%s221 + $0x1890] sm:$0xff]
        %v1059 = vld [vmem:[%s221 + $0x1898] sm:$0xff]
        %v1060 = vld [vmem:[%s221 + $0x18a0] sm:$0xff]
        %v1061 = vld [vmem:[%s221 + $0x18a8] sm:$0xff]
        %v1062 = vld [vmem:[%s221 + $0x18b0] sm:$0xff]
        %v1063 = vld [vmem:[%s221 + $0x18b8] sm:$0xff]
        %v1064 = vld [vmem:[%s221 + $0x18c0] sm:$0xff]
        %v1065 = vld [vmem:[%s221 + $0x18c8] sm:$0xff]
        %v1066 = vld [vmem:[%s221 + $0x18d0] sm:$0xff]
        %v1067 = vld [vmem:[%s221 + $0x18d8] sm:$0xff]
        %v1068 = vld [vmem:[%s221 + $0x18e0] sm:$0xff]
        %v1069 = vld [vmem:[%s221 + $0x18e8] sm:$0xff]
        %v1070 = vld [vmem:[%s221 + $0x18f0] sm:$0xff]
        %v1071 = vld [vmem:[%s221 + $0x18f8] sm:$0xff]
        %v1072 = vld [vmem:[%s221 + $0x1900] sm:$0xff]
        %v1073 = vld [vmem:[%s221 + $0x1908] sm:$0xff]
        %v1074 = vld [vmem:[%s221 + $0x1910] sm:$0xff]
        %v1075 = vld [vmem:[%s221 + $0x1918] sm:$0xff]
        %v1076 = vld [vmem:[%s221 + $0x1920] sm:$0xff]
        %v1077 = vld [vmem:[%s221 + $0x1928] sm:$0xff]
        %v1078 = vld [vmem:[%s221 + $0x1930] sm:$0xff]
        %v1079 = vld [vmem:[%s221 + $0x1938] sm:$0xff]
        %v1080 = vld [vmem:[%s221 + $0x1940] sm:$0xff]
        %v1081 = vld [vmem:[%s221 + $0x1948] sm:$0xff]
        %v1082 = vld [vmem:[%s221 + $0x1950] sm:$0xff]
        %v1083 = vld [vmem:[%s221 + $0x1958] sm:$0xff]
        %v1084 = vld [vmem:[%s221 + $0x1960] sm:$0xff]
        %v1085 = vld [vmem:[%s221 + $0x1968] sm:$0xff]
        %v1086 = vld [vmem:[%s221 + $0x1970] sm:$0xff]
        %v1087 = vld [vmem:[%s221 + $0x1978] sm:$0xff]
        %v1088 = vld [vmem:[%s221 + $0x1980] sm:$0xff]
        %v1089 = vld [vmem:[%s221 + $0x1988] sm:$0xff]
        %v1090 = vld [vmem:[%s221 + $0x1990] sm:$0xff]
        %v1091 = vld [vmem:[%s221 + $0x1998] sm:$0xff]
        %v1092 = vld [vmem:[%s221 + $0x19a0] sm:$0xff]
        %v1093 = vld [vmem:[%s221 + $0x19a8] sm:$0xff]
        %v1094 = vld [vmem:[%s221 + $0x19b0] sm:$0xff]
        %v1095 = vld [vmem:[%s221 + $0x19b8] sm:$0xff]
        %v1096 = vld [vmem:[%s221 + $0x19c0] sm:$0xff]
        %v1097 = vld [vmem:[%s221 + $0x19c8] sm:$0xff]
        %v1098 = vld [vmem:[%s221 + $0x19d0] sm:$0xff]
        %v1099 = vld [vmem:[%s221 + $0x19d8] sm:$0xff]
        %v1100 = vld [vmem:[%s221 + $0x19e0] sm:$0xff]
        %v1101 = vld [vmem:[%s221 + $0x19e8] sm:$0xff]
        %v1102 = vld [vmem:[%s221 + $0x19f0] sm:$0xff]
        %v1103 = vld [vmem:[%s221 + $0x19f8] sm:$0xff]
        %v1104 = vld [vmem:[%s221 + $0x1a00] sm:$0xff]
        %v1105 = vld [vmem:[%s221 + $0x1a08] sm:$0xff]
        %v1106 = vld [vmem:[%s221 + $0x1a10] sm:$0xff]
        %v1107 = vld [vmem:[%s221 + $0x1a18] sm:$0xff]
        %v1108 = vld [vmem:[%s221 + $0x1a20] sm:$0xff]
        %v1109 = vld [vmem:[%s221 + $0x1a28] sm:$0xff]
        %v1110 = vld [vmem:[%s221 + $0x1a30] sm:$0xff]
        %v1111 = vld [vmem:[%s221 + $0x1a38] sm:$0xff]
        %v1112 = vld [vmem:[%s221 + $0x1a40] sm:$0xff]
        %v1113 = vld [vmem:[%s221 + $0x1a48] sm:$0xff]
        %v1114 = vld [vmem:[%s221 + $0x1a50] sm:$0xff]
        %v1115 = vld [vmem:[%s221 + $0x1a58] sm:$0xff]
        %v1116 = vld [vmem:[%s221 + $0x1a60] sm:$0xff]
        %v1117 = vld [vmem:[%s221 + $0x1a68] sm:$0xff]
        %v1118 = vld [vmem:[%s221 + $0x1a70] sm:$0xff]
        %v1119 = vld [vmem:[%s221 + $0x1a78] sm:$0xff]
        %v1120 = vld [vmem:[%s221 + $0x1a80] sm:$0xff]
        %v1121 = vld [vmem:[%s221 + $0x1a88] sm:$0xff]
        %v1122 = vld [vmem:[%s221 + $0x1a90] sm:$0xff]
        %v1123 = vld [vmem:[%s221 + $0x1a98] sm:$0xff]
        %v1124 = vld [vmem:[%s221 + $0x1aa0] sm:$0xff]
        %v1125 = vld [vmem:[%s221 + $0x1aa8] sm:$0xff]
        %v1126 = vld [vmem:[%s221 + $0x1ab0] sm:$0xff]
        %v1127 = vld [vmem:[%s221 + $0x1ab8] sm:$0xff]
        %v1128 = vld [vmem:[%s221 + $0x1ac0] sm:$0xff]
        %v1129 = vld [vmem:[%s221 + $0x1ac8] sm:$0xff]
        %v1130 = vld [vmem:[%s221 + $0x1ad0] sm:$0xff]
        %v1131 = vld [vmem:[%s221 + $0x1ad8] sm:$0xff]
        %v1132 = vld [vmem:[%s221 + $0x1ae0] sm:$0xff]
        %v1133 = vld [vmem:[%s221 + $0x1ae8] sm:$0xff]
        %v1134 = vld [vmem:[%s221 + $0x1af0] sm:$0xff]
        %v1135 = vld [vmem:[%s221 + $0x1af8] sm:$0xff]
        %v1136 = vld [vmem:[%s221 + $0x1b00] sm:$0xff]
        %v1137 = vld [vmem:[%s221 + $0x1b08] sm:$0xff]
        %v1138 = vld [vmem:[%s221 + $0x1b10] sm:$0xff]
        %v1139 = vld [vmem:[%s221 + $0x1b18] sm:$0xff]
        %v1140 = vld [vmem:[%s221 + $0x1b20] sm:$0xff]
        %v1141 = vld [vmem:[%s221 + $0x1b28] sm:$0xff]
        %v1142 = vld [vmem:[%s221 + $0x1b30] sm:$0xff]
        %v1143 = vld [vmem:[%s221 + $0x1b38] sm:$0xff]
        %v1144 = vld [vmem:[%s221 + $0x1b40] sm:$0xff]
        %v1145 = vld [vmem:[%s221 + $0x1b48] sm:$0xff]
        %v1146 = vld [vmem:[%s221 + $0x1b50] sm:$0xff]
        %v1147 = vld [vmem:[%s221 + $0x1b58] sm:$0xff]
        %v1148 = vld [vmem:[%s221 + $0x1b60] sm:$0xff]
        %v1149 = vld [vmem:[%s221 + $0x1b68] sm:$0xff]
        %v1150 = vld [vmem:[%s221 + $0x1b70] sm:$0xff]
        %v1151 = vld [vmem:[%s221 + $0x1b78] sm:$0xff]
        %v1152 = vld [vmem:[%s221 + $0x1b80] sm:$0xff]
        %v1153 = vld [vmem:[%s221 + $0x1b88] sm:$0xff]
        %v1154 = vld [vmem:[%s221 + $0x1b90] sm:$0xff]
        %v1155 = vld [vmem:[%s221 + $0x1b98] sm:$0xff]
        %v1156 = vld [vmem:[%s221 + $0x1ba0] sm:$0xff]
        %v1157 = vld [vmem:[%s221 + $0x1ba8] sm:$0xff]
        %v1158 = vld [vmem:[%s221 + $0x1bb0] sm:$0xff]
        %v1159 = vld [vmem:[%s221 + $0x1bb8] sm:$0xff]
        %v1160 = vld [vmem:[%s221 + $0x1bc0] sm:$0xff]
        %v1161 = vld [vmem:[%s221 + $0x1bc8] sm:$0xff]
        %v1162 = vld [vmem:[%s221 + $0x1bd0] sm:$0xff]
        %v1163 = vld [vmem:[%s221 + $0x1bd8] sm:$0xff]
        %v1164 = vld [vmem:[%s221 + $0x1be0] sm:$0xff]
        %v1165 = vld [vmem:[%s221 + $0x1be8] sm:$0xff]
        %v1166 = vld [vmem:[%s221 + $0x1bf0] sm:$0xff]
        %v1167 = vld [vmem:[%s221 + $0x1bf8] sm:$0xff]
        %v1168 = vld [vmem:[%s221 + $0x1c00] sm:$0xff]
        %v1169 = vld [vmem:[%s221 + $0x1c08] sm:$0xff]
        %v1170 = vld [vmem:[%s221 + $0x1c10] sm:$0xff]
        %v1171 = vld [vmem:[%s221 + $0x1c18] sm:$0xff]
        %v1172 = vld [vmem:[%s221 + $0x1c20] sm:$0xff]
        %v1173 = vld [vmem:[%s221 + $0x1c28] sm:$0xff]
        %v1174 = vld [vmem:[%s221 + $0x1c30] sm:$0xff]
        %v1175 = vld [vmem:[%s221 + $0x1c38] sm:$0xff]
        %v1176 = vld [vmem:[%s221 + $0x1c40] sm:$0xff]
        %v1177 = vld [vmem:[%s221 + $0x1c48] sm:$0xff]
        %v1178 = vld [vmem:[%s221 + $0x1c50] sm:$0xff]
        %v1179 = vld [vmem:[%s221 + $0x1c58] sm:$0xff]
        %v1180 = vld [vmem:[%s221 + $0x1c60] sm:$0xff]
        %v1181 = vld [vmem:[%s221 + $0x1c68] sm:$0xff]
        %v1182 = vld [vmem:[%s221 + $0x1c70] sm:$0xff]
        %v1183 = vld [vmem:[%s221 + $0x1c78] sm:$0xff]
        %v1184 = vld [vmem:[%s221 + $0x1c80] sm:$0xff]
        %v1185 = vld [vmem:[%s221 + $0x1c88] sm:$0xff]
        %v1186 = vld [vmem:[%s221 + $0x1c90] sm:$0xff]
        %v1187 = vld [vmem:[%s221 + $0x1c98] sm:$0xff]
        %v1188 = vld [vmem:[%s221 + $0x1ca0] sm:$0xff]
        %v1189 = vld [vmem:[%s221 + $0x1ca8] sm:$0xff]
        %v1190 = vld [vmem:[%s221 + $0x1cb0] sm:$0xff]
        %v1191 = vld [vmem:[%s221 + $0x1cb8] sm:$0xff]
        %v1192 = vld [vmem:[%s221 + $0x1cc0] sm:$0xff]
        %v1193 = vld [vmem:[%s221 + $0x1cc8] sm:$0xff]
        %v1194 = vld [vmem:[%s221 + $0x1cd0] sm:$0xff]
        %v1195 = vld [vmem:[%s221 + $0x1cd8] sm:$0xff]
        %v1196 = vld [vmem:[%s221 + $0x1ce0] sm:$0xff]
        %v1197 = vld [vmem:[%s221 + $0x1ce8] sm:$0xff]
        %v1198 = vld [vmem:[%s221 + $0x1cf0] sm:$0xff]
        %v1199 = vld [vmem:[%s221 + $0x1cf8] sm:$0xff]
        %v1200 = vld [vmem:[%s221 + $0x1d00] sm:$0xff]
        %v1201 = vld [vmem:[%s221 + $0x1d08] sm:$0xff]
        %v1202 = vld [vmem:[%s221 + $0x1d10] sm:$0xff]
        %v1203 = vld [vmem:[%s221 + $0x1d18] sm:$0xff]
        %v1204 = vld [vmem:[%s221 + $0x1d20] sm:$0xff]
        %v1205 = vld [vmem:[%s221 + $0x1d28] sm:$0xff]
        %v1206 = vld [vmem:[%s221 + $0x1d30] sm:$0xff]
        %v1207 = vld [vmem:[%s221 + $0x1d38] sm:$0xff]
        %v1208 = vld [vmem:[%s221 + $0x1d40] sm:$0xff]
        %v1209 = vld [vmem:[%s221 + $0x1d48] sm:$0xff]
        %v1210 = vld [vmem:[%s221 + $0x1d50] sm:$0xff]
        %v1211 = vld [vmem:[%s221 + $0x1d58] sm:$0xff]
        %v1212 = vld [vmem:[%s221 + $0x1d60] sm:$0xff]
        %v1213 = vld [vmem:[%s221 + $0x1d68] sm:$0xff]
        %v1214 = vld [vmem:[%s221 + $0x1d70] sm:$0xff]
        %v1215 = vld [vmem:[%s221 + $0x1d78] sm:$0xff]
        %v1216 = vld [vmem:[%s221 + $0x1d80] sm:$0xff]
        %v1217 = vld [vmem:[%s221 + $0x1d88] sm:$0xff]
        %v1218 = vld [vmem:[%s221 + $0x1d90] sm:$0xff]
        %v1219 = vld [vmem:[%s221 + $0x1d98] sm:$0xff]
        %v1220 = vld [vmem:[%s221 + $0x1da0] sm:$0xff]
        %v1221 = vld [vmem:[%s221 + $0x1da8] sm:$0xff]
        %v1222 = vld [vmem:[%s221 + $0x1db0] sm:$0xff]
        %v1223 = vld [vmem:[%s221 + $0x1db8] sm:$0xff]
        %v1224 = vld [vmem:[%s221 + $0x1dc0] sm:$0xff]
        %v1225 = vld [vmem:[%s221 + $0x1dc8] sm:$0xff]
        %v1226 = vld [vmem:[%s221 + $0x1dd0] sm:$0xff]
        %v1227 = vld [vmem:[%s221 + $0x1dd8] sm:$0xff]
        %v1228 = vld [vmem:[%s221 + $0x1de0] sm:$0xff]
        %v1229 = vld [vmem:[%s221 + $0x1de8] sm:$0xff]
        %v1230 = vld [vmem:[%s221 + $0x1df0] sm:$0xff]
        %v1231 = vld [vmem:[%s221 + $0x1df8] sm:$0xff]
        %v1232 = vld [vmem:[%s221 + $0x1e00] sm:$0xff]
        %v1233 = vld [vmem:[%s221 + $0x1e08] sm:$0xff]
        %v1234 = vld [vmem:[%s221 + $0x1e10] sm:$0xff]
        %v1235 = vld [vmem:[%s221 + $0x1e18] sm:$0xff]
        %v1236 = vld [vmem:[%s221 + $0x1e20] sm:$0xff]
        %v1237 = vld [vmem:[%s221 + $0x1e28] sm:$0xff]
        %v1238 = vld [vmem:[%s221 + $0x1e30] sm:$0xff]
        %v1239 = vld [vmem:[%s221 + $0x1e38] sm:$0xff]
        %v1240 = vld [vmem:[%s221 + $0x1e40] sm:$0xff]
        %v1241 = vld [vmem:[%s221 + $0x1e48] sm:$0xff]
        %v1242 = vld [vmem:[%s221 + $0x1e50] sm:$0xff]
        %v1243 = vld [vmem:[%s221 + $0x1e58] sm:$0xff]
        %v1244 = vld [vmem:[%s221 + $0x1e60] sm:$0xff]
        %v1245 = vld [vmem:[%s221 + $0x1e68] sm:$0xff]
        %v1246 = vld [vmem:[%s221 + $0x1e70] sm:$0xff]
        %v1247 = vld [vmem:[%s221 + $0x1e78] sm:$0xff]
        %v1248 = vld [vmem:[%s221 + $0x1e80] sm:$0xff]
        %v1249 = vld [vmem:[%s221 + $0x1e88] sm:$0xff]
        %v1250 = vld [vmem:[%s221 + $0x1e90] sm:$0xff]
        %v1251 = vld [vmem:[%s221 + $0x1e98] sm:$0xff]
        %v1252 = vld [vmem:[%s221 + $0x1ea0] sm:$0xff]
        %v1253 = vld [vmem:[%s221 + $0x1ea8] sm:$0xff]
        %v1254 = vld [vmem:[%s221 + $0x1eb0] sm:$0xff]
        %v1255 = vld [vmem:[%s221 + $0x1eb8] sm:$0xff]
        %v1256 = vld [vmem:[%s221 + $0x1ec0] sm:$0xff]
        %v1257 = vld [vmem:[%s221 + $0x1ec8] sm:$0xff]
        %v1258 = vld [vmem:[%s221 + $0x1ed0] sm:$0xff]
        %v1259 = vld [vmem:[%s221 + $0x1ed8] sm:$0xff]
        %v1260 = vld [vmem:[%s221 + $0x1ee0] sm:$0xff]
        %v1261 = vld [vmem:[%s221 + $0x1ee8] sm:$0xff]
        %v1262 = vld [vmem:[%s221 + $0x1ef0] sm:$0xff]
        %v1263 = vld [vmem:[%s221 + $0x1ef8] sm:$0xff]
        %v1264 = vld [vmem:[%s221 + $0x1f00] sm:$0xff]
        %v1265 = vld [vmem:[%s221 + $0x1f08] sm:$0xff]
        %v1266 = vld [vmem:[%s221 + $0x1f10] sm:$0xff]
        %v1267 = vld [vmem:[%s221 + $0x1f18] sm:$0xff]
        %v1268 = vld [vmem:[%s221 + $0x1f20] sm:$0xff]
        %v1269 = vld [vmem:[%s221 + $0x1f28] sm:$0xff]
        %v1270 = vld [vmem:[%s221 + $0x1f30] sm:$0xff]
        %v1271 = vld [vmem:[%s221 + $0x1f38] sm:$0xff]
        %v1272 = vld [vmem:[%s221 + $0x1f40] sm:$0xff]
        %v1273 = vld [vmem:[%s221 + $0x1f48] sm:$0xff]
        %v1274 = vld [vmem:[%s221 + $0x1f50] sm:$0xff]
        %v1275 = vld [vmem:[%s221 + $0x1f58] sm:$0xff]
        %v1276 = vld [vmem:[%s221 + $0x1f60] sm:$0xff]
        %v1277 = vld [vmem:[%s221 + $0x1f68] sm:$0xff]
        %v1278 = vld [vmem:[%s221 + $0x1f70] sm:$0xff]
        %v1279 = vld [vmem:[%s221 + $0x1f78] sm:$0xff]
        %v1280 = vld [vmem:[%s221 + $0x1f80] sm:$0xff]
        %v1281 = vld [vmem:[%s221 + $0x1f88] sm:$0xff]
        %v1282 = vld [vmem:[%s221 + $0x1f90] sm:$0xff]
        %v1283 = vld [vmem:[%s221 + $0x1f98] sm:$0xff]
        %v1284 = vld [vmem:[%s221 + $0x1fa0] sm:$0xff]
        %v1285 = vld [vmem:[%s221 + $0x1fa8] sm:$0xff]
        %v1286 = vld [vmem:[%s221 + $0x1fb0] sm:$0xff]
        %v1287 = vld [vmem:[%s221 + $0x1fb8] sm:$0xff]
        %v1288 = vld [vmem:[%s221 + $0x1fc0] sm:$0xff]
        %v1289 = vld [vmem:[%s221 + $0x1fc8] sm:$0xff]
        %v1290 = vld [vmem:[%s221 + $0x1fd0] sm:$0xff]
        %v1291 = vld [vmem:[%s221 + $0x1fd8] sm:$0xff]
        %v1292 = vld [vmem:[%s221 + $0x1fe0] sm:$0xff]
        %v1293 = vld [vmem:[%s221 + $0x1fe8] sm:$0xff]
        %v1294 = vld [vmem:[%s221 + $0x1ff0] sm:$0xff]
        %v1295 = vld [vmem:[%s221 + $0x1ff8] sm:$0xff]
        %v1312 = vcombine.high %v256, %v256
        %v1314 = vunpack.c.l.s4 1983009808
        %v1315 = vunpack.c.0.s8 %v1314
        %v1316 = vlaneseq
        %v1317 = vshrl.u32 %v1316, 7
        %v1318 = vsub.s32 %v1315, %v1317
        %v1319 = vrot.slane %v256, %v1318
        %v1321 = vunpack.c.l.s4 1983009808
        %v1322 = vunpack.c.0.s8 %v1321
        %v1323 = vlaneseq
        %v1324 = vshrl.u32 %v1323, 7
        %v1325 = vsub.s32 %v1322, %v1324
        %v1326 = vrot.slane %v1312, %v1325
        %v1327 = vcombine.high %v1319, %v1319
        %v1328 = vcombine.high %v1326, %v1326
        %v1329 = vcombine.high %v257, %v257
        %v1331 = vunpack.c.l.s4 1983009808
        %v1332 = vunpack.c.0.s8 %v1331
        %v1333 = vlaneseq
        %v1334 = vshrl.u32 %v1333, 7
        %v1335 = vsub.s32 %v1332, %v1334
        %v1336 = vrot.slane %v257, %v1335
        %v1338 = vunpack.c.l.s4 1983009808
        %v1339 = vunpack.c.0.s8 %v1338
        %v1340 = vlaneseq
        %v1341 = vshrl.u32 %v1340, 7
        %v1342 = vsub.s32 %v1339, %v1341
        %v1343 = vrot.slane %v1329, %v1342
        %v1344 = vcombine.high %v1336, %v1336
        %v1345 = vcombine.high %v1343, %v1343
        %v1346 = vcombine.high %v258, %v258
        %v1348 = vunpack.c.l.s4 1983009808
        %v1349 = vunpack.c.0.s8 %v1348
        %v1350 = vlaneseq
        %v1351 = vshrl.u32 %v1350, 7
        %v1352 = vsub.s32 %v1349, %v1351
        %v1353 = vrot.slane %v258, %v1352
        %v1355 = vunpack.c.l.s4 1983009808
        %v1356 = vunpack.c.0.s8 %v1355
        %v1357 = vlaneseq
        %v1358 = vshrl.u32 %v1357, 7
        %v1359 = vsub.s32 %v1356, %v1358
        %v1360 = vrot.slane %v1346, %v1359
        %v1361 = vcombine.high %v1353, %v1353
        %v1362 = vcombine.high %v1360, %v1360
        %v1363 = vcombine.high %v259, %v259
        %v1365 = vunpack.c.l.s4 1983009808
        %v1366 = vunpack.c.0.s8 %v1365
        %v1367 = vlaneseq
        %v1368 = vshrl.u32 %v1367, 7
        %v1369 = vsub.s32 %v1366, %v1368
        %v1370 = vrot.slane %v259, %v1369
        %v1372 = vunpack.c.l.s4 1983009808
        %v1373 = vunpack.c.0.s8 %v1372
        %v1374 = vlaneseq
        %v1375 = vshrl.u32 %v1374, 7
        %v1376 = vsub.s32 %v1373, %v1375
        %v1377 = vrot.slane %v1363, %v1376
        %v1378 = vcombine.high %v1370, %v1370
        %v1379 = vcombine.high %v1377, %v1377
        %v1380 = vcombine.high %v260, %v260
        %v1382 = vunpack.c.l.s4 1983009808
        %v1383 = vunpack.c.0.s8 %v1382
        %v1384 = vlaneseq
        %v1385 = vshrl.u32 %v1384, 7
        %v1386 = vsub.s32 %v1383, %v1385
        %v1387 = vrot.slane %v260, %v1386
        %v1389 = vunpack.c.l.s4 1983009808
        %v1390 = vunpack.c.0.s8 %v1389
        %v1391 = vlaneseq
        %v1392 = vshrl.u32 %v1391, 7
        %v1393 = vsub.s32 %v1390, %v1392
        %v1394 = vrot.slane %v1380, %v1393
        %v1395 = vcombine.high %v1387, %v1387
        %v1396 = vcombine.high %v1394, %v1394
        %v1397 = vcombine.high %v261, %v261
        %v1399 = vunpack.c.l.s4 1983009808
        %v1400 = vunpack.c.0.s8 %v1399
        %v1401 = vlaneseq
        %v1402 = vshrl.u32 %v1401, 7
        %v1403 = vsub.s32 %v1400, %v1402
        %v1404 = vrot.slane %v261, %v1403
        %v1406 = vunpack.c.l.s4 1983009808
        %v1407 = vunpack.c.0.s8 %v1406
        %v1408 = vlaneseq
        %v1409 = vshrl.u32 %v1408, 7
        %v1410 = vsub.s32 %v1407, %v1409
        %v1411 = vrot.slane %v1397, %v1410
        %v1412 = vcombine.high %v1404, %v1404
        %v1413 = vcombine.high %v1411, %v1411
        %v1414 = vcombine.high %v262, %v262
        %v1416 = vunpack.c.l.s4 1983009808
        %v1417 = vunpack.c.0.s8 %v1416
        %v1418 = vlaneseq
        %v1419 = vshrl.u32 %v1418, 7
        %v1420 = vsub.s32 %v1417, %v1419
        %v1421 = vrot.slane %v262, %v1420
        %v1423 = vunpack.c.l.s4 1983009808
        %v1424 = vunpack.c.0.s8 %v1423
        %v1425 = vlaneseq
        %v1426 = vshrl.u32 %v1425, 7
        %v1427 = vsub.s32 %v1424, %v1426
        %v1428 = vrot.slane %v1414, %v1427
        %v1429 = vcombine.high %v1421, %v1421
        %v1430 = vcombine.high %v1428, %v1428
        %v1431 = vcombine.high %v263, %v263
        %v1433 = vunpack.c.l.s4 1983009808
        %v1434 = vunpack.c.0.s8 %v1433
        %v1435 = vlaneseq
        %v1436 = vshrl.u32 %v1435, 7
        %v1437 = vsub.s32 %v1434, %v1436
        %v1438 = vrot.slane %v263, %v1437
        %v1440 = vunpack.c.l.s4 1983009808
        %v1441 = vunpack.c.0.s8 %v1440
        %v1442 = vlaneseq
        %v1443 = vshrl.u32 %v1442, 7
        %v1444 = vsub.s32 %v1441, %v1443
        %v1445 = vrot.slane %v1431, %v1444
        %v1446 = vcombine.high %v1438, %v1438
        %v1447 = vcombine.high %v1445, %v1445
        %v1448 = vcombine.high %v264, %v264
        %v1450 = vunpack.c.l.s4 1983009808
        %v1451 = vunpack.c.0.s8 %v1450
        %v1452 = vlaneseq
        %v1453 = vshrl.u32 %v1452, 7
        %v1454 = vsub.s32 %v1451, %v1453
        %v1455 = vrot.slane %v264, %v1454
        %v1457 = vunpack.c.l.s4 1983009808
        %v1458 = vunpack.c.0.s8 %v1457
        %v1459 = vlaneseq
        %v1460 = vshrl.u32 %v1459, 7
        %v1461 = vsub.s32 %v1458, %v1460
        %v1462 = vrot.slane %v1448, %v1461
        %v1463 = vcombine.high %v1455, %v1455
        %v1464 = vcombine.high %v1462, %v1462
        %v1465 = vcombine.high %v265, %v265
        %v1467 = vunpack.c.l.s4 1983009808
        %v1468 = vunpack.c.0.s8 %v1467
        %v1469 = vlaneseq
        %v1470 = vshrl.u32 %v1469, 7
        %v1471 = vsub.s32 %v1468, %v1470
        %v1472 = vrot.slane %v265, %v1471
        %v1474 = vunpack.c.l.s4 1983009808
        %v1475 = vunpack.c.0.s8 %v1474
        %v1476 = vlaneseq
        %v1477 = vshrl.u32 %v1476, 7
        %v1478 = vsub.s32 %v1475, %v1477
        %v1479 = vrot.slane %v1465, %v1478
        %v1480 = vcombine.high %v1472, %v1472
        %v1481 = vcombine.high %v1479, %v1479
        %v1482 = vcombine.high %v266, %v266
        %v1484 = vunpack.c.l.s4 1983009808
        %v1485 = vunpack.c.0.s8 %v1484
        %v1486 = vlaneseq
        %v1487 = vshrl.u32 %v1486, 7
        %v1488 = vsub.s32 %v1485, %v1487
        %v1489 = vrot.slane %v266, %v1488
        %v1491 = vunpack.c.l.s4 1983009808
        %v1492 = vunpack.c.0.s8 %v1491
        %v1493 = vlaneseq
        %v1494 = vshrl.u32 %v1493, 7
        %v1495 = vsub.s32 %v1492, %v1494
        %v1496 = vrot.slane %v1482, %v1495
        %v1497 = vcombine.high %v1489, %v1489
        %v1498 = vcombine.high %v1496, %v1496
        %v1499 = vcombine.high %v267, %v267
        %v1501 = vunpack.c.l.s4 1983009808
        %v1502 = vunpack.c.0.s8 %v1501
        %v1503 = vlaneseq
        %v1504 = vshrl.u32 %v1503, 7
        %v1505 = vsub.s32 %v1502, %v1504
        %v1506 = vrot.slane %v267, %v1505
        %v1508 = vunpack.c.l.s4 1983009808
        %v1509 = vunpack.c.0.s8 %v1508
        %v1510 = vlaneseq
        %v1511 = vshrl.u32 %v1510, 7
        %v1512 = vsub.s32 %v1509, %v1511
        %v1513 = vrot.slane %v1499, %v1512
        %v1514 = vcombine.high %v1506, %v1506
        %v1515 = vcombine.high %v1513, %v1513
        %v1516 = vcombine.high %v268, %v268
        %v1518 = vunpack.c.l.s4 1983009808
        %v1519 = vunpack.c.0.s8 %v1518
        %v1520 = vlaneseq
        %v1521 = vshrl.u32 %v1520, 7
        %v1522 = vsub.s32 %v1519, %v1521
        %v1523 = vrot.slane %v268, %v1522
        %v1525 = vunpack.c.l.s4 1983009808
        %v1526 = vunpack.c.0.s8 %v1525
        %v1527 = vlaneseq
        %v1528 = vshrl.u32 %v1527, 7
        %v1529 = vsub.s32 %v1526, %v1528
        %v1530 = vrot.slane %v1516, %v1529
        %v1531 = vcombine.high %v1523, %v1523
        %v1532 = vcombine.high %v1530, %v1530
        %v1533 = vcombine.high %v269, %v269
        %v1535 = vunpack.c.l.s4 1983009808
        %v1536 = vunpack.c.0.s8 %v1535
        %v1537 = vlaneseq
        %v1538 = vshrl.u32 %v1537, 7
        %v1539 = vsub.s32 %v1536, %v1538
        %v1540 = vrot.slane %v269, %v1539
        %v1542 = vunpack.c.l.s4 1983009808
        %v1543 = vunpack.c.0.s8 %v1542
        %v1544 = vlaneseq
        %v1545 = vshrl.u32 %v1544, 7
        %v1546 = vsub.s32 %v1543, %v1545
        %v1547 = vrot.slane %v1533, %v1546
        %v1548 = vcombine.high %v1540, %v1540
        %v1549 = vcombine.high %v1547, %v1547
        %v1550 = vcombine.high %v270, %v270
        %v1552 = vunpack.c.l.s4 1983009808
        %v1553 = vunpack.c.0.s8 %v1552
        %v1554 = vlaneseq
        %v1555 = vshrl.u32 %v1554, 7
        %v1556 = vsub.s32 %v1553, %v1555
        %v1557 = vrot.slane %v270, %v1556
        %v1559 = vunpack.c.l.s4 1983009808
        %v1560 = vunpack.c.0.s8 %v1559
        %v1561 = vlaneseq
        %v1562 = vshrl.u32 %v1561, 7
        %v1563 = vsub.s32 %v1560, %v1562
        %v1564 = vrot.slane %v1550, %v1563
        %v1565 = vcombine.high %v1557, %v1557
        %v1566 = vcombine.high %v1564, %v1564
        %v1567 = vcombine.high %v271, %v271
        %v1569 = vunpack.c.l.s4 1983009808
        %v1570 = vunpack.c.0.s8 %v1569
        %v1571 = vlaneseq
        %v1572 = vshrl.u32 %v1571, 7
        %v1573 = vsub.s32 %v1570, %v1572
        %v1574 = vrot.slane %v271, %v1573
        %v1576 = vunpack.c.l.s4 1983009808
        %v1577 = vunpack.c.0.s8 %v1576
        %v1578 = vlaneseq
        %v1579 = vshrl.u32 %v1578, 7
        %v1580 = vsub.s32 %v1577, %v1579
        %v1581 = vrot.slane %v1567, %v1580
        %v1582 = vcombine.high %v1574, %v1574
        %v1583 = vcombine.high %v1581, %v1581
        %1648 = vmatprep.subr.mxu0 0.0
        %1649 = vmatpush1.msra.mxu0 %v287
        %1650 = vmatprep.subr.mxu0 0.0
        %1651 = vmatpush1.msra.mxu0 %v286
        %1652 = vmatprep.subr.mxu0 0.0
        %1653 = vmatpush1.msra.mxu0 %v285
        %1654 = vmatprep.subr.mxu0 0.0
        %1655 = vmatpush1.msra.mxu0 %v284
        %1656 = vmatprep.subr.mxu0 0.0
        %1657 = vmatpush1.msra.mxu0 %v283
        %1658 = vmatprep.subr.mxu0 0.0
        %1659 = vmatpush1.msra.mxu0 %v282
        %1660 = vmatprep.subr.mxu0 0.0
        %1661 = vmatpush1.msra.mxu0 %v281
        %1662 = vmatprep.subr.mxu0 0.0
        %1663 = vmatpush1.msra.mxu0 %v280
        %1664 = vmatprep.subr.mxu0 0.0
        %1665 = vmatpush1.msra.mxu0 %v279
        %1666 = vmatprep.subr.mxu0 0.0
        %1667 = vmatpush1.msra.mxu0 %v278
        %1668 = vmatprep.subr.mxu0 0.0
        %1669 = vmatpush1.msra.mxu0 %v277
        %1670 = vmatprep.subr.mxu0 0.0
        %1671 = vmatpush1.msra.mxu0 %v276
        %1672 = vmatprep.subr.mxu0 0.0
        %1673 = vmatpush1.msra.mxu0 %v275
        %1674 = vmatprep.subr.mxu0 0.0
        %1675 = vmatpush1.msra.mxu0 %v274
        %1676 = vmatprep.subr.mxu0 0.0
        %1677 = vmatpush1.msra.mxu0 %v273
        %1678 = vmatprep.subr.mxu0 0.0
        %1679 = vmatpush1.msra.mxu0 %v272
        %1680 = vmatprep.subr.mxu0 0.0
        %1681 = vmatpush2.msra.mxu0 %v303
        %1682 = vmatprep.subr.mxu0 0.0
        %1683 = vmatpush2.msra.mxu0 %v302
        %1684 = vmatprep.subr.mxu0 0.0
        %1685 = vmatpush2.msra.mxu0 %v301
        %1686 = vmatprep.subr.mxu0 0.0
        %1687 = vmatpush2.msra.mxu0 %v300
        %1688 = vmatprep.subr.mxu0 0.0
        %1689 = vmatpush2.msra.mxu0 %v299
        %1690 = vmatprep.subr.mxu0 0.0
        %1691 = vmatpush2.msra.mxu0 %v298
        %1692 = vmatprep.subr.mxu0 0.0
        %1693 = vmatpush2.msra.mxu0 %v297
        %1694 = vmatprep.subr.mxu0 0.0
        %1695 = vmatpush2.msra.mxu0 %v296
        %1696 = vmatprep.subr.mxu0 0.0
        %1697 = vmatpush2.msra.mxu0 %v295
        %1698 = vmatprep.subr.mxu0 0.0
        %1699 = vmatpush2.msra.mxu0 %v294
        %1700 = vmatprep.subr.mxu0 0.0
        %1701 = vmatpush2.msra.mxu0 %v293
        %1702 = vmatprep.subr.mxu0 0.0
        %1703 = vmatpush2.msra.mxu0 %v292
        %1704 = vmatprep.subr.mxu0 0.0
        %1705 = vmatpush2.msra.mxu0 %v291
        %1706 = vmatprep.subr.mxu0 0.0
        %1707 = vmatpush2.msra.mxu0 %v290
        %1708 = vmatprep.subr.mxu0 0.0
        %1709 = vmatpush2.msra.mxu0 %v289
        %1710 = vmatprep.subr.mxu0 0.0
        %1711 = vmatpush2.msra.mxu0 %v288
        %1712 = vmatprep.mubr.f32.mxu0 %v1327
        %1713 = vmatmul.mubr.f32.gmra.mxu0 %v1319
        %v1714 = vpop.f32.mrf.mxu0
        %v1715 = vadd.f32 0.0, %v1714
        %v1716 = vpop.f32.mrf.mxu0
        %1717 = vdwg.mxu0
        %1718 = vmatprep.subr.mxu0 0.0
        %1719 = vmatpush1.msra.mxu0 %v319
        %1720 = vmatprep.subr.mxu0 0.0
        %1721 = vmatpush1.msra.mxu0 %v318
        %1722 = vmatprep.subr.mxu0 0.0
        %1723 = vmatpush1.msra.mxu0 %v317
        %1724 = vmatprep.subr.mxu0 0.0
        %1725 = vmatpush1.msra.mxu0 %v316
        %1726 = vmatprep.subr.mxu0 0.0
        %1727 = vmatpush1.msra.mxu0 %v315
        %1728 = vmatprep.subr.mxu0 0.0
        %1729 = vmatpush1.msra.mxu0 %v314
        %1730 = vmatprep.subr.mxu0 0.0
        %1731 = vmatpush1.msra.mxu0 %v313
        %1732 = vmatprep.subr.mxu0 0.0
        %1733 = vmatpush1.msra.mxu0 %v312
        %1734 = vmatprep.subr.mxu0 0.0
        %1735 = vmatpush1.msra.mxu0 %v311
        %1736 = vmatprep.subr.mxu0 0.0
        %1737 = vmatpush1.msra.mxu0 %v310
        %1738 = vmatprep.subr.mxu0 0.0
        %1739 = vmatpush1.msra.mxu0 %v309
        %1740 = vmatprep.subr.mxu0 0.0
        %1741 = vmatpush1.msra.mxu0 %v308
        %1742 = vmatprep.subr.mxu0 0.0
        %1743 = vmatpush1.msra.mxu0 %v307
        %1744 = vmatprep.subr.mxu0 0.0
        %1745 = vmatpush1.msra.mxu0 %v306
        %1746 = vmatprep.subr.mxu0 0.0
        %1747 = vmatpush1.msra.mxu0 %v305
        %1748 = vmatprep.subr.mxu0 0.0
        %1749 = vmatpush1.msra.mxu0 %v304
        %1750 = vmatprep.subr.mxu0 0.0
        %1751 = vmatpush2.msra.mxu0 %v335
        %1752 = vmatprep.subr.mxu0 0.0
        %1753 = vmatpush2.msra.mxu0 %v334
        %1754 = vmatprep.subr.mxu0 0.0
        %1755 = vmatpush2.msra.mxu0 %v333
        %1756 = vmatprep.subr.mxu0 0.0
        %1757 = vmatpush2.msra.mxu0 %v332
        %1758 = vmatprep.subr.mxu0 0.0
        %1759 = vmatpush2.msra.mxu0 %v331
        %1760 = vmatprep.subr.mxu0 0.0
        %1761 = vmatpush2.msra.mxu0 %v330
        %1762 = vmatprep.subr.mxu0 0.0
        %1763 = vmatpush2.msra.mxu0 %v329
        %1764 = vmatprep.subr.mxu0 0.0
        %1765 = vmatpush2.msra.mxu0 %v328
        %1766 = vmatprep.subr.mxu0 0.0
        %1767 = vmatpush2.msra.mxu0 %v327
        %1768 = vmatprep.subr.mxu0 0.0
        %1769 = vmatpush2.msra.mxu0 %v326
        %1770 = vmatprep.subr.mxu0 0.0
        %1771 = vmatpush2.msra.mxu0 %v325
        %1772 = vmatprep.subr.mxu0 0.0
        %1773 = vmatpush2.msra.mxu0 %v324
        %1774 = vmatprep.subr.mxu0 0.0
        %1775 = vmatpush2.msra.mxu0 %v323
        %1776 = vmatprep.subr.mxu0 0.0
        %1777 = vmatpush2.msra.mxu0 %v322
        %1778 = vmatprep.subr.mxu0 0.0
        %1779 = vmatpush2.msra.mxu0 %v321
        %1780 = vmatprep.subr.mxu0 0.0
        %1781 = vmatpush2.msra.mxu0 %v320
        %1782 = vmatprep.mubr.f32.mxu0 %v1328
        %1783 = vmatmul.mubr.f32.gmra.mxu0 %v1326
        %v1784 = vpop.f32.mrf.mxu0
        %v1785 = vadd.f32 %v1715, %v1784
        %v1786 = vpop.f32.mrf.mxu0
        %1787 = vdwg.mxu0
        %1788 = vmatprep.subr.mxu0 0.0
        %1789 = vmatpush1.msra.mxu0 %v351
        %1790 = vmatprep.subr.mxu0 0.0
        %1791 = vmatpush1.msra.mxu0 %v350
        %1792 = vmatprep.subr.mxu0 0.0
        %1793 = vmatpush1.msra.mxu0 %v349
        %1794 = vmatprep.subr.mxu0 0.0
        %1795 = vmatpush1.msra.mxu0 %v348
        %1796 = vmatprep.subr.mxu0 0.0
        %1797 = vmatpush1.msra.mxu0 %v347
        %1798 = vmatprep.subr.mxu0 0.0
        %1799 = vmatpush1.msra.mxu0 %v346
        %1800 = vmatprep.subr.mxu0 0.0
        %1801 = vmatpush1.msra.mxu0 %v345
        %1802 = vmatprep.subr.mxu0 0.0
        %1803 = vmatpush1.msra.mxu0 %v344
        %1804 = vmatprep.subr.mxu0 0.0
        %1805 = vmatpush1.msra.mxu0 %v343
        %1806 = vmatprep.subr.mxu0 0.0
        %1807 = vmatpush1.msra.mxu0 %v342
        %1808 = vmatprep.subr.mxu0 0.0
        %1809 = vmatpush1.msra.mxu0 %v341
        %1810 = vmatprep.subr.mxu0 0.0
        %1811 = vmatpush1.msra.mxu0 %v340
        %1812 = vmatprep.subr.mxu0 0.0
        %1813 = vmatpush1.msra.mxu0 %v339
        %1814 = vmatprep.subr.mxu0 0.0
        %1815 = vmatpush1.msra.mxu0 %v338
        %1816 = vmatprep.subr.mxu0 0.0
        %1817 = vmatpush1.msra.mxu0 %v337
        %1818 = vmatprep.subr.mxu0 0.0
        %1819 = vmatpush1.msra.mxu0 %v336
        %1820 = vmatprep.subr.mxu0 0.0
        %1821 = vmatpush2.msra.mxu0 %v367
        %1822 = vmatprep.subr.mxu0 0.0
        %1823 = vmatpush2.msra.mxu0 %v366
        %1824 = vmatprep.subr.mxu0 0.0
        %1825 = vmatpush2.msra.mxu0 %v365
        %1826 = vmatprep.subr.mxu0 0.0
        %1827 = vmatpush2.msra.mxu0 %v364
        %1828 = vmatprep.subr.mxu0 0.0
        %1829 = vmatpush2.msra.mxu0 %v363
        %1830 = vmatprep.subr.mxu0 0.0
        %1831 = vmatpush2.msra.mxu0 %v362
        %1832 = vmatprep.subr.mxu0 0.0
        %1833 = vmatpush2.msra.mxu0 %v361
        %1834 = vmatprep.subr.mxu0 0.0
        %1835 = vmatpush2.msra.mxu0 %v360
        %1836 = vmatprep.subr.mxu0 0.0
        %1837 = vmatpush2.msra.mxu0 %v359
        %1838 = vmatprep.subr.mxu0 0.0
        %1839 = vmatpush2.msra.mxu0 %v358
        %1840 = vmatprep.subr.mxu0 0.0
        %1841 = vmatpush2.msra.mxu0 %v357
        %1842 = vmatprep.subr.mxu0 0.0
        %1843 = vmatpush2.msra.mxu0 %v356
        %1844 = vmatprep.subr.mxu0 0.0
        %1845 = vmatpush2.msra.mxu0 %v355
        %1846 = vmatprep.subr.mxu0 0.0
        %1847 = vmatpush2.msra.mxu0 %v354
        %1848 = vmatprep.subr.mxu0 0.0
        %1849 = vmatpush2.msra.mxu0 %v353
        %1850 = vmatprep.subr.mxu0 0.0
        %1851 = vmatpush2.msra.mxu0 %v352
        %1852 = vmatprep.mubr.f32.mxu0 %v1344
        %1853 = vmatmul.mubr.f32.gmra.mxu0 %v1336
        %v1854 = vpop.f32.mrf.mxu0
        %v1855 = vadd.f32 %v1785, %v1854
        %v1856 = vpop.f32.mrf.mxu0
        %1857 = vdwg.mxu0
        %1858 = vmatprep.subr.mxu0 0.0
        %1859 = vmatpush1.msra.mxu0 %v383
        %1860 = vmatprep.subr.mxu0 0.0
        %1861 = vmatpush1.msra.mxu0 %v382
        %1862 = vmatprep.subr.mxu0 0.0
        %1863 = vmatpush1.msra.mxu0 %v381
        %1864 = vmatprep.subr.mxu0 0.0
        %1865 = vmatpush1.msra.mxu0 %v380
        %1866 = vmatprep.subr.mxu0 0.0
        %1867 = vmatpush1.msra.mxu0 %v379
        %1868 = vmatprep.subr.mxu0 0.0
        %1869 = vmatpush1.msra.mxu0 %v378
        %1870 = vmatprep.subr.mxu0 0.0
        %1871 = vmatpush1.msra.mxu0 %v377
        %1872 = vmatprep.subr.mxu0 0.0
        %1873 = vmatpush1.msra.mxu0 %v376
        %1874 = vmatprep.subr.mxu0 0.0
        %1875 = vmatpush1.msra.mxu0 %v375
        %1876 = vmatprep.subr.mxu0 0.0
        %1877 = vmatpush1.msra.mxu0 %v374
        %1878 = vmatprep.subr.mxu0 0.0
        %1879 = vmatpush1.msra.mxu0 %v373
        %1880 = vmatprep.subr.mxu0 0.0
        %1881 = vmatpush1.msra.mxu0 %v372
        %1882 = vmatprep.subr.mxu0 0.0
        %1883 = vmatpush1.msra.mxu0 %v371
        %1884 = vmatprep.subr.mxu0 0.0
        %1885 = vmatpush1.msra.mxu0 %v370
        %1886 = vmatprep.subr.mxu0 0.0
        %1887 = vmatpush1.msra.mxu0 %v369
        %1888 = vmatprep.subr.mxu0 0.0
        %1889 = vmatpush1.msra.mxu0 %v368
        %1890 = vmatprep.subr.mxu0 0.0
        %1891 = vmatpush2.msra.mxu0 %v399
        %1892 = vmatprep.subr.mxu0 0.0
        %1893 = vmatpush2.msra.mxu0 %v398
        %1894 = vmatprep.subr.mxu0 0.0
        %1895 = vmatpush2.msra.mxu0 %v397
        %1896 = vmatprep.subr.mxu0 0.0
        %1897 = vmatpush2.msra.mxu0 %v396
        %1898 = vmatprep.subr.mxu0 0.0
        %1899 = vmatpush2.msra.mxu0 %v395
        %1900 = vmatprep.subr.mxu0 0.0
        %1901 = vmatpush2.msra.mxu0 %v394
        %1902 = vmatprep.subr.mxu0 0.0
        %1903 = vmatpush2.msra.mxu0 %v393
        %1904 = vmatprep.subr.mxu0 0.0
        %1905 = vmatpush2.msra.mxu0 %v392
        %1906 = vmatprep.subr.mxu0 0.0
        %1907 = vmatpush2.msra.mxu0 %v391
        %1908 = vmatprep.subr.mxu0 0.0
        %1909 = vmatpush2.msra.mxu0 %v390
        %1910 = vmatprep.subr.mxu0 0.0
        %1911 = vmatpush2.msra.mxu0 %v389
        %1912 = vmatprep.subr.mxu0 0.0
        %1913 = vmatpush2.msra.mxu0 %v388
        %1914 = vmatprep.subr.mxu0 0.0
        %1915 = vmatpush2.msra.mxu0 %v387
        %1916 = vmatprep.subr.mxu0 0.0
        %1917 = vmatpush2.msra.mxu0 %v386
        %1918 = vmatprep.subr.mxu0 0.0
        %1919 = vmatpush2.msra.mxu0 %v385
        %1920 = vmatprep.subr.mxu0 0.0
        %1921 = vmatpush2.msra.mxu0 %v384
        %1922 = vmatprep.mubr.f32.mxu0 %v1345
        %1923 = vmatmul.mubr.f32.gmra.mxu0 %v1343
        %v1924 = vpop.f32.mrf.mxu0
        %v1925 = vadd.f32 %v1855, %v1924
        %v1926 = vpop.f32.mrf.mxu0
        %1927 = vdwg.mxu0
        %1928 = vmatprep.subr.mxu0 0.0
        %1929 = vmatpush1.msra.mxu0 %v415
        %1930 = vmatprep.subr.mxu0 0.0
        %1931 = vmatpush1.msra.mxu0 %v414
        %1932 = vmatprep.subr.mxu0 0.0
        %1933 = vmatpush1.msra.mxu0 %v413
        %1934 = vmatprep.subr.mxu0 0.0
        %1935 = vmatpush1.msra.mxu0 %v412
        %1936 = vmatprep.subr.mxu0 0.0
        %1937 = vmatpush1.msra.mxu0 %v411
        %1938 = vmatprep.subr.mxu0 0.0
        %1939 = vmatpush1.msra.mxu0 %v410
        %1940 = vmatprep.subr.mxu0 0.0
        %1941 = vmatpush1.msra.mxu0 %v409
        %1942 = vmatprep.subr.mxu0 0.0
        %1943 = vmatpush1.msra.mxu0 %v408
        %1944 = vmatprep.subr.mxu0 0.0
        %1945 = vmatpush1.msra.mxu0 %v407
        %1946 = vmatprep.subr.mxu0 0.0
        %1947 = vmatpush1.msra.mxu0 %v406
        %1948 = vmatprep.subr.mxu0 0.0
        %1949 = vmatpush1.msra.mxu0 %v405
        %1950 = vmatprep.subr.mxu0 0.0
        %1951 = vmatpush1.msra.mxu0 %v404
        %1952 = vmatprep.subr.mxu0 0.0
        %1953 = vmatpush1.msra.mxu0 %v403
        %1954 = vmatprep.subr.mxu0 0.0
        %1955 = vmatpush1.msra.mxu0 %v402
        %1956 = vmatprep.subr.mxu0 0.0
        %1957 = vmatpush1.msra.mxu0 %v401
        %1958 = vmatprep.subr.mxu0 0.0
        %1959 = vmatpush1.msra.mxu0 %v400
        %1960 = vmatprep.subr.mxu0 0.0
        %1961 = vmatpush2.msra.mxu0 %v431
        %1962 = vmatprep.subr.mxu0 0.0
        %1963 = vmatpush2.msra.mxu0 %v430
        %1964 = vmatprep.subr.mxu0 0.0
        %1965 = vmatpush2.msra.mxu0 %v429
        %1966 = vmatprep.subr.mxu0 0.0
        %1967 = vmatpush2.msra.mxu0 %v428
        %1968 = vmatprep.subr.mxu0 0.0
        %1969 = vmatpush2.msra.mxu0 %v427
        %1970 = vmatprep.subr.mxu0 0.0
        %1971 = vmatpush2.msra.mxu0 %v426
        %1972 = vmatprep.subr.mxu0 0.0
        %1973 = vmatpush2.msra.mxu0 %v425
        %1974 = vmatprep.subr.mxu0 0.0
        %1975 = vmatpush2.msra.mxu0 %v424
        %1976 = vmatprep.subr.mxu0 0.0
        %1977 = vmatpush2.msra.mxu0 %v423
        %1978 = vmatprep.subr.mxu0 0.0
        %1979 = vmatpush2.msra.mxu0 %v422
        %1980 = vmatprep.subr.mxu0 0.0
        %1981 = vmatpush2.msra.mxu0 %v421
        %1982 = vmatprep.subr.mxu0 0.0
        %1983 = vmatpush2.msra.mxu0 %v420
        %1984 = vmatprep.subr.mxu0 0.0
        %1985 = vmatpush2.msra.mxu0 %v419
        %1986 = vmatprep.subr.mxu0 0.0
        %1987 = vmatpush2.msra.mxu0 %v418
        %1988 = vmatprep.subr.mxu0 0.0
        %1989 = vmatpush2.msra.mxu0 %v417
        %1990 = vmatprep.subr.mxu0 0.0
        %1991 = vmatpush2.msra.mxu0 %v416
        %1992 = vmatprep.mubr.f32.mxu0 %v1361
        %1993 = vmatmul.mubr.f32.gmra.mxu0 %v1353
        %v1994 = vpop.f32.mrf.mxu0
        %v1995 = vadd.f32 %v1925, %v1994
        %v1996 = vpop.f32.mrf.mxu0
        %1997 = vdwg.mxu0
        %1998 = vmatprep.subr.mxu0 0.0
        %1999 = vmatpush1.msra.mxu0 %v447
        %2000 = vmatprep.subr.mxu0 0.0
        %2001 = vmatpush1.msra.mxu0 %v446
        %2002 = vmatprep.subr.mxu0 0.0
        %2003 = vmatpush1.msra.mxu0 %v445
        %2004 = vmatprep.subr.mxu0 0.0
        %2005 = vmatpush1.msra.mxu0 %v444
        %2006 = vmatprep.subr.mxu0 0.0
        %2007 = vmatpush1.msra.mxu0 %v443
        %2008 = vmatprep.subr.mxu0 0.0
        %2009 = vmatpush1.msra.mxu0 %v442
        %2010 = vmatprep.subr.mxu0 0.0
        %2011 = vmatpush1.msra.mxu0 %v441
        %2012 = vmatprep.subr.mxu0 0.0
        %2013 = vmatpush1.msra.mxu0 %v440
        %2014 = vmatprep.subr.mxu0 0.0
        %2015 = vmatpush1.msra.mxu0 %v439
        %2016 = vmatprep.subr.mxu0 0.0
        %2017 = vmatpush1.msra.mxu0 %v438
        %2018 = vmatprep.subr.mxu0 0.0
        %2019 = vmatpush1.msra.mxu0 %v437
        %2020 = vmatprep.subr.mxu0 0.0
        %2021 = vmatpush1.msra.mxu0 %v436
        %2022 = vmatprep.subr.mxu0 0.0
        %2023 = vmatpush1.msra.mxu0 %v435
        %2024 = vmatprep.subr.mxu0 0.0
        %2025 = vmatpush1.msra.mxu0 %v434
        %2026 = vmatprep.subr.mxu0 0.0
        %2027 = vmatpush1.msra.mxu0 %v433
        %2028 = vmatprep.subr.mxu0 0.0
        %2029 = vmatpush1.msra.mxu0 %v432
        %2030 = vmatprep.subr.mxu0 0.0
        %2031 = vmatpush2.msra.mxu0 %v463
        %2032 = vmatprep.subr.mxu0 0.0
        %2033 = vmatpush2.msra.mxu0 %v462
        %2034 = vmatprep.subr.mxu0 0.0
        %2035 = vmatpush2.msra.mxu0 %v461
        %2036 = vmatprep.subr.mxu0 0.0
        %2037 = vmatpush2.msra.mxu0 %v460
        %2038 = vmatprep.subr.mxu0 0.0
        %2039 = vmatpush2.msra.mxu0 %v459
        %2040 = vmatprep.subr.mxu0 0.0
        %2041 = vmatpush2.msra.mxu0 %v458
        %2042 = vmatprep.subr.mxu0 0.0
        %2043 = vmatpush2.msra.mxu0 %v457
        %2044 = vmatprep.subr.mxu0 0.0
        %2045 = vmatpush2.msra.mxu0 %v456
        %2046 = vmatprep.subr.mxu0 0.0
        %2047 = vmatpush2.msra.mxu0 %v455
        %2048 = vmatprep.subr.mxu0 0.0
        %2049 = vmatpush2.msra.mxu0 %v454
        %2050 = vmatprep.subr.mxu0 0.0
        %2051 = vmatpush2.msra.mxu0 %v453
        %2052 = vmatprep.subr.mxu0 0.0
        %2053 = vmatpush2.msra.mxu0 %v452
        %2054 = vmatprep.subr.mxu0 0.0
        %2055 = vmatpush2.msra.mxu0 %v451
        %2056 = vmatprep.subr.mxu0 0.0
        %2057 = vmatpush2.msra.mxu0 %v450
        %2058 = vmatprep.subr.mxu0 0.0
        %2059 = vmatpush2.msra.mxu0 %v449
        %2060 = vmatprep.subr.mxu0 0.0
        %2061 = vmatpush2.msra.mxu0 %v448
        %2062 = vmatprep.mubr.f32.mxu0 %v1362
        %2063 = vmatmul.mubr.f32.gmra.mxu0 %v1360
        %v2064 = vpop.f32.mrf.mxu0
        %v2065 = vadd.f32 %v1995, %v2064
        %v2066 = vpop.f32.mrf.mxu0
        %2067 = vdwg.mxu0
        %2068 = vmatprep.subr.mxu0 0.0
        %2069 = vmatpush1.msra.mxu0 %v479
        %2070 = vmatprep.subr.mxu0 0.0
        %2071 = vmatpush1.msra.mxu0 %v478
        %2072 = vmatprep.subr.mxu0 0.0
        %2073 = vmatpush1.msra.mxu0 %v477
        %2074 = vmatprep.subr.mxu0 0.0
        %2075 = vmatpush1.msra.mxu0 %v476
        %2076 = vmatprep.subr.mxu0 0.0
        %2077 = vmatpush1.msra.mxu0 %v475
        %2078 = vmatprep.subr.mxu0 0.0
        %2079 = vmatpush1.msra.mxu0 %v474
        %2080 = vmatprep.subr.mxu0 0.0
        %2081 = vmatpush1.msra.mxu0 %v473
        %2082 = vmatprep.subr.mxu0 0.0
        %2083 = vmatpush1.msra.mxu0 %v472
        %2084 = vmatprep.subr.mxu0 0.0
        %2085 = vmatpush1.msra.mxu0 %v471
        %2086 = vmatprep.subr.mxu0 0.0
        %2087 = vmatpush1.msra.mxu0 %v470
        %2088 = vmatprep.subr.mxu0 0.0
        %2089 = vmatpush1.msra.mxu0 %v469
        %2090 = vmatprep.subr.mxu0 0.0
        %2091 = vmatpush1.msra.mxu0 %v468
        %2092 = vmatprep.subr.mxu0 0.0
        %2093 = vmatpush1.msra.mxu0 %v467
        %2094 = vmatprep.subr.mxu0 0.0
        %2095 = vmatpush1.msra.mxu0 %v466
        %2096 = vmatprep.subr.mxu0 0.0
        %2097 = vmatpush1.msra.mxu0 %v465
        %2098 = vmatprep.subr.mxu0 0.0
        %2099 = vmatpush1.msra.mxu0 %v464
        %2100 = vmatprep.subr.mxu0 0.0
        %2101 = vmatpush2.msra.mxu0 %v495
        %2102 = vmatprep.subr.mxu0 0.0
        %2103 = vmatpush2.msra.mxu0 %v494
        %2104 = vmatprep.subr.mxu0 0.0
        %2105 = vmatpush2.msra.mxu0 %v493
        %2106 = vmatprep.subr.mxu0 0.0
        %2107 = vmatpush2.msra.mxu0 %v492
        %2108 = vmatprep.subr.mxu0 0.0
        %2109 = vmatpush2.msra.mxu0 %v491
        %2110 = vmatprep.subr.mxu0 0.0
        %2111 = vmatpush2.msra.mxu0 %v490
        %2112 = vmatprep.subr.mxu0 0.0
        %2113 = vmatpush2.msra.mxu0 %v489
        %2114 = vmatprep.subr.mxu0 0.0
        %2115 = vmatpush2.msra.mxu0 %v488
        %2116 = vmatprep.subr.mxu0 0.0
        %2117 = vmatpush2.msra.mxu0 %v487
        %2118 = vmatprep.subr.mxu0 0.0
        %2119 = vmatpush2.msra.mxu0 %v486
        %2120 = vmatprep.subr.mxu0 0.0
        %2121 = vmatpush2.msra.mxu0 %v485
        %2122 = vmatprep.subr.mxu0 0.0
        %2123 = vmatpush2.msra.mxu0 %v484
        %2124 = vmatprep.subr.mxu0 0.0
        %2125 = vmatpush2.msra.mxu0 %v483
        %2126 = vmatprep.subr.mxu0 0.0
        %2127 = vmatpush2.msra.mxu0 %v482
        %2128 = vmatprep.subr.mxu0 0.0
        %2129 = vmatpush2.msra.mxu0 %v481
        %2130 = vmatprep.subr.mxu0 0.0
        %2131 = vmatpush2.msra.mxu0 %v480
        %2132 = vmatprep.mubr.f32.mxu0 %v1378
        %2133 = vmatmul.mubr.f32.gmra.mxu0 %v1370
        %v2134 = vpop.f32.mrf.mxu0
        %v2135 = vadd.f32 %v2065, %v2134
        %v2136 = vpop.f32.mrf.mxu0
        %2137 = vdwg.mxu0
        %2138 = vmatprep.subr.mxu0 0.0
        %2139 = vmatpush1.msra.mxu0 %v511
        %2140 = vmatprep.subr.mxu0 0.0
        %2141 = vmatpush1.msra.mxu0 %v510
        %2142 = vmatprep.subr.mxu0 0.0
        %2143 = vmatpush1.msra.mxu0 %v509
        %2144 = vmatprep.subr.mxu0 0.0
        %2145 = vmatpush1.msra.mxu0 %v508
        %2146 = vmatprep.subr.mxu0 0.0
        %2147 = vmatpush1.msra.mxu0 %v507
        %2148 = vmatprep.subr.mxu0 0.0
        %2149 = vmatpush1.msra.mxu0 %v506
        %2150 = vmatprep.subr.mxu0 0.0
        %2151 = vmatpush1.msra.mxu0 %v505
        %2152 = vmatprep.subr.mxu0 0.0
        %2153 = vmatpush1.msra.mxu0 %v504
        %2154 = vmatprep.subr.mxu0 0.0
        %2155 = vmatpush1.msra.mxu0 %v503
        %2156 = vmatprep.subr.mxu0 0.0
        %2157 = vmatpush1.msra.mxu0 %v502
        %2158 = vmatprep.subr.mxu0 0.0
        %2159 = vmatpush1.msra.mxu0 %v501
        %2160 = vmatprep.subr.mxu0 0.0
        %2161 = vmatpush1.msra.mxu0 %v500
        %2162 = vmatprep.subr.mxu0 0.0
        %2163 = vmatpush1.msra.mxu0 %v499
        %2164 = vmatprep.subr.mxu0 0.0
        %2165 = vmatpush1.msra.mxu0 %v498
        %2166 = vmatprep.subr.mxu0 0.0
        %2167 = vmatpush1.msra.mxu0 %v497
        %2168 = vmatprep.subr.mxu0 0.0
        %2169 = vmatpush1.msra.mxu0 %v496
        %2170 = vmatprep.subr.mxu0 0.0
        %2171 = vmatpush2.msra.mxu0 %v527
        %2172 = vmatprep.subr.mxu0 0.0
        %2173 = vmatpush2.msra.mxu0 %v526
        %2174 = vmatprep.subr.mxu0 0.0
        %2175 = vmatpush2.msra.mxu0 %v525
        %2176 = vmatprep.subr.mxu0 0.0
        %2177 = vmatpush2.msra.mxu0 %v524
        %2178 = vmatprep.subr.mxu0 0.0
        %2179 = vmatpush2.msra.mxu0 %v523
        %2180 = vmatprep.subr.mxu0 0.0
        %2181 = vmatpush2.msra.mxu0 %v522
        %2182 = vmatprep.subr.mxu0 0.0
        %2183 = vmatpush2.msra.mxu0 %v521
        %2184 = vmatprep.subr.mxu0 0.0
        %2185 = vmatpush2.msra.mxu0 %v520
        %2186 = vmatprep.subr.mxu0 0.0
        %2187 = vmatpush2.msra.mxu0 %v519
        %2188 = vmatprep.subr.mxu0 0.0
        %2189 = vmatpush2.msra.mxu0 %v518
        %2190 = vmatprep.subr.mxu0 0.0
        %2191 = vmatpush2.msra.mxu0 %v517
        %2192 = vmatprep.subr.mxu0 0.0
        %2193 = vmatpush2.msra.mxu0 %v516
        %2194 = vmatprep.subr.mxu0 0.0
        %2195 = vmatpush2.msra.mxu0 %v515
        %2196 = vmatprep.subr.mxu0 0.0
        %2197 = vmatpush2.msra.mxu0 %v514
        %2198 = vmatprep.subr.mxu0 0.0
        %2199 = vmatpush2.msra.mxu0 %v513
        %2200 = vmatprep.subr.mxu0 0.0
        %2201 = vmatpush2.msra.mxu0 %v512
        %2202 = vmatprep.mubr.f32.mxu0 %v1379
        %2203 = vmatmul.mubr.f32.gmra.mxu0 %v1377
        %v2204 = vpop.f32.mrf.mxu0
        %v2205 = vadd.f32 %v2135, %v2204
        %v2206 = vpop.f32.mrf.mxu0
        %2207 = vdwg.mxu0
        %2208 = vmatprep.subr.mxu0 0.0
        %2209 = vmatpush1.msra.mxu0 %v543
        %2210 = vmatprep.subr.mxu0 0.0
        %2211 = vmatpush1.msra.mxu0 %v542
        %2212 = vmatprep.subr.mxu0 0.0
        %2213 = vmatpush1.msra.mxu0 %v541
        %2214 = vmatprep.subr.mxu0 0.0
        %2215 = vmatpush1.msra.mxu0 %v540
        %2216 = vmatprep.subr.mxu0 0.0
        %2217 = vmatpush1.msra.mxu0 %v539
        %2218 = vmatprep.subr.mxu0 0.0
        %2219 = vmatpush1.msra.mxu0 %v538
        %2220 = vmatprep.subr.mxu0 0.0
        %2221 = vmatpush1.msra.mxu0 %v537
        %2222 = vmatprep.subr.mxu0 0.0
        %2223 = vmatpush1.msra.mxu0 %v536
        %2224 = vmatprep.subr.mxu0 0.0
        %2225 = vmatpush1.msra.mxu0 %v535
        %2226 = vmatprep.subr.mxu0 0.0
        %2227 = vmatpush1.msra.mxu0 %v534
        %2228 = vmatprep.subr.mxu0 0.0
        %2229 = vmatpush1.msra.mxu0 %v533
        %2230 = vmatprep.subr.mxu0 0.0
        %2231 = vmatpush1.msra.mxu0 %v532
        %2232 = vmatprep.subr.mxu0 0.0
        %2233 = vmatpush1.msra.mxu0 %v531
        %2234 = vmatprep.subr.mxu0 0.0
        %2235 = vmatpush1.msra.mxu0 %v530
        %2236 = vmatprep.subr.mxu0 0.0
        %2237 = vmatpush1.msra.mxu0 %v529
        %2238 = vmatprep.subr.mxu0 0.0
        %2239 = vmatpush1.msra.mxu0 %v528
        %2240 = vmatprep.subr.mxu0 0.0
        %2241 = vmatpush2.msra.mxu0 %v559
        %2242 = vmatprep.subr.mxu0 0.0
        %2243 = vmatpush2.msra.mxu0 %v558
        %2244 = vmatprep.subr.mxu0 0.0
        %2245 = vmatpush2.msra.mxu0 %v557
        %2246 = vmatprep.subr.mxu0 0.0
        %2247 = vmatpush2.msra.mxu0 %v556
        %2248 = vmatprep.subr.mxu0 0.0
        %2249 = vmatpush2.msra.mxu0 %v555
        %2250 = vmatprep.subr.mxu0 0.0
        %2251 = vmatpush2.msra.mxu0 %v554
        %2252 = vmatprep.subr.mxu0 0.0
        %2253 = vmatpush2.msra.mxu0 %v553
        %2254 = vmatprep.subr.mxu0 0.0
        %2255 = vmatpush2.msra.mxu0 %v552
        %2256 = vmatprep.subr.mxu0 0.0
        %2257 = vmatpush2.msra.mxu0 %v551
        %2258 = vmatprep.subr.mxu0 0.0
        %2259 = vmatpush2.msra.mxu0 %v550
        %2260 = vmatprep.subr.mxu0 0.0
        %2261 = vmatpush2.msra.mxu0 %v549
        %2262 = vmatprep.subr.mxu0 0.0
        %2263 = vmatpush2.msra.mxu0 %v548
        %2264 = vmatprep.subr.mxu0 0.0
        %2265 = vmatpush2.msra.mxu0 %v547
        %2266 = vmatprep.subr.mxu0 0.0
        %2267 = vmatpush2.msra.mxu0 %v546
        %2268 = vmatprep.subr.mxu0 0.0
        %2269 = vmatpush2.msra.mxu0 %v545
        %2270 = vmatprep.subr.mxu0 0.0
        %2271 = vmatpush2.msra.mxu0 %v544
        %2272 = vmatprep.mubr.f32.mxu0 %v1395
        %2273 = vmatmul.mubr.f32.gmra.mxu0 %v1387
        %v2274 = vpop.f32.mrf.mxu0
        %v2275 = vadd.f32 %v2205, %v2274
        %v2276 = vpop.f32.mrf.mxu0
        %2277 = vdwg.mxu0
        %2278 = vmatprep.subr.mxu0 0.0
        %2279 = vmatpush1.msra.mxu0 %v575
        %2280 = vmatprep.subr.mxu0 0.0
        %2281 = vmatpush1.msra.mxu0 %v574
        %2282 = vmatprep.subr.mxu0 0.0
        %2283 = vmatpush1.msra.mxu0 %v573
        %2284 = vmatprep.subr.mxu0 0.0
        %2285 = vmatpush1.msra.mxu0 %v572
        %2286 = vmatprep.subr.mxu0 0.0
        %2287 = vmatpush1.msra.mxu0 %v571
        %2288 = vmatprep.subr.mxu0 0.0
        %2289 = vmatpush1.msra.mxu0 %v570
        %2290 = vmatprep.subr.mxu0 0.0
        %2291 = vmatpush1.msra.mxu0 %v569
        %2292 = vmatprep.subr.mxu0 0.0
        %2293 = vmatpush1.msra.mxu0 %v568
        %2294 = vmatprep.subr.mxu0 0.0
        %2295 = vmatpush1.msra.mxu0 %v567
        %2296 = vmatprep.subr.mxu0 0.0
        %2297 = vmatpush1.msra.mxu0 %v566
        %2298 = vmatprep.subr.mxu0 0.0
        %2299 = vmatpush1.msra.mxu0 %v565
        %2300 = vmatprep.subr.mxu0 0.0
        %2301 = vmatpush1.msra.mxu0 %v564
        %2302 = vmatprep.subr.mxu0 0.0
        %2303 = vmatpush1.msra.mxu0 %v563
        %2304 = vmatprep.subr.mxu0 0.0
        %2305 = vmatpush1.msra.mxu0 %v562
        %2306 = vmatprep.subr.mxu0 0.0
        %2307 = vmatpush1.msra.mxu0 %v561
        %2308 = vmatprep.subr.mxu0 0.0
        %2309 = vmatpush1.msra.mxu0 %v560
        %2310 = vmatprep.subr.mxu0 0.0
        %2311 = vmatpush2.msra.mxu0 %v591
        %2312 = vmatprep.subr.mxu0 0.0
        %2313 = vmatpush2.msra.mxu0 %v590
        %2314 = vmatprep.subr.mxu0 0.0
        %2315 = vmatpush2.msra.mxu0 %v589
        %2316 = vmatprep.subr.mxu0 0.0
        %2317 = vmatpush2.msra.mxu0 %v588
        %2318 = vmatprep.subr.mxu0 0.0
        %2319 = vmatpush2.msra.mxu0 %v587
        %2320 = vmatprep.subr.mxu0 0.0
        %2321 = vmatpush2.msra.mxu0 %v586
        %2322 = vmatprep.subr.mxu0 0.0
        %2323 = vmatpush2.msra.mxu0 %v585
        %2324 = vmatprep.subr.mxu0 0.0
        %2325 = vmatpush2.msra.mxu0 %v584
        %2326 = vmatprep.subr.mxu0 0.0
        %2327 = vmatpush2.msra.mxu0 %v583
        %2328 = vmatprep.subr.mxu0 0.0
        %2329 = vmatpush2.msra.mxu0 %v582
        %2330 = vmatprep.subr.mxu0 0.0
        %2331 = vmatpush2.msra.mxu0 %v581
        %2332 = vmatprep.subr.mxu0 0.0
        %2333 = vmatpush2.msra.mxu0 %v580
        %2334 = vmatprep.subr.mxu0 0.0
        %2335 = vmatpush2.msra.mxu0 %v579
        %2336 = vmatprep.subr.mxu0 0.0
        %2337 = vmatpush2.msra.mxu0 %v578
        %2338 = vmatprep.subr.mxu0 0.0
        %2339 = vmatpush2.msra.mxu0 %v577
        %2340 = vmatprep.subr.mxu0 0.0
        %2341 = vmatpush2.msra.mxu0 %v576
        %2342 = vmatprep.mubr.f32.mxu0 %v1396
        %2343 = vmatmul.mubr.f32.gmra.mxu0 %v1394
        %v2344 = vpop.f32.mrf.mxu0
        %v2345 = vadd.f32 %v2275, %v2344
        %v2346 = vpop.f32.mrf.mxu0
        %2347 = vdwg.mxu0
        %2348 = vmatprep.subr.mxu0 0.0
        %2349 = vmatpush1.msra.mxu0 %v607
        %2350 = vmatprep.subr.mxu0 0.0
        %2351 = vmatpush1.msra.mxu0 %v606
        %2352 = vmatprep.subr.mxu0 0.0
        %2353 = vmatpush1.msra.mxu0 %v605
        %2354 = vmatprep.subr.mxu0 0.0
        %2355 = vmatpush1.msra.mxu0 %v604
        %2356 = vmatprep.subr.mxu0 0.0
        %2357 = vmatpush1.msra.mxu0 %v603
        %2358 = vmatprep.subr.mxu0 0.0
        %2359 = vmatpush1.msra.mxu0 %v602
        %2360 = vmatprep.subr.mxu0 0.0
        %2361 = vmatpush1.msra.mxu0 %v601
        %2362 = vmatprep.subr.mxu0 0.0
        %2363 = vmatpush1.msra.mxu0 %v600
        %2364 = vmatprep.subr.mxu0 0.0
        %2365 = vmatpush1.msra.mxu0 %v599
        %2366 = vmatprep.subr.mxu0 0.0
        %2367 = vmatpush1.msra.mxu0 %v598
        %2368 = vmatprep.subr.mxu0 0.0
        %2369 = vmatpush1.msra.mxu0 %v597
        %2370 = vmatprep.subr.mxu0 0.0
        %2371 = vmatpush1.msra.mxu0 %v596
        %2372 = vmatprep.subr.mxu0 0.0
        %2373 = vmatpush1.msra.mxu0 %v595
        %2374 = vmatprep.subr.mxu0 0.0
        %2375 = vmatpush1.msra.mxu0 %v594
        %2376 = vmatprep.subr.mxu0 0.0
        %2377 = vmatpush1.msra.mxu0 %v593
        %2378 = vmatprep.subr.mxu0 0.0
        %2379 = vmatpush1.msra.mxu0 %v592
        %2380 = vmatprep.subr.mxu0 0.0
        %2381 = vmatpush2.msra.mxu0 %v623
        %2382 = vmatprep.subr.mxu0 0.0
        %2383 = vmatpush2.msra.mxu0 %v622
        %2384 = vmatprep.subr.mxu0 0.0
        %2385 = vmatpush2.msra.mxu0 %v621
        %2386 = vmatprep.subr.mxu0 0.0
        %2387 = vmatpush2.msra.mxu0 %v620
        %2388 = vmatprep.subr.mxu0 0.0
        %2389 = vmatpush2.msra.mxu0 %v619
        %2390 = vmatprep.subr.mxu0 0.0
        %2391 = vmatpush2.msra.mxu0 %v618
        %2392 = vmatprep.subr.mxu0 0.0
        %2393 = vmatpush2.msra.mxu0 %v617
        %2394 = vmatprep.subr.mxu0 0.0
        %2395 = vmatpush2.msra.mxu0 %v616
        %2396 = vmatprep.subr.mxu0 0.0
        %2397 = vmatpush2.msra.mxu0 %v615
        %2398 = vmatprep.subr.mxu0 0.0
        %2399 = vmatpush2.msra.mxu0 %v614
        %2400 = vmatprep.subr.mxu0 0.0
        %2401 = vmatpush2.msra.mxu0 %v613
        %2402 = vmatprep.subr.mxu0 0.0
        %2403 = vmatpush2.msra.mxu0 %v612
        %2404 = vmatprep.subr.mxu0 0.0
        %2405 = vmatpush2.msra.mxu0 %v611
        %2406 = vmatprep.subr.mxu0 0.0
        %2407 = vmatpush2.msra.mxu0 %v610
        %2408 = vmatprep.subr.mxu0 0.0
        %2409 = vmatpush2.msra.mxu0 %v609
        %2410 = vmatprep.subr.mxu0 0.0
        %2411 = vmatpush2.msra.mxu0 %v608
        %2412 = vmatprep.mubr.f32.mxu0 %v1412
        %2413 = vmatmul.mubr.f32.gmra.mxu0 %v1404
        %v2414 = vpop.f32.mrf.mxu0
        %v2415 = vadd.f32 %v2345, %v2414
        %v2416 = vpop.f32.mrf.mxu0
        %2417 = vdwg.mxu0
        %2418 = vmatprep.subr.mxu0 0.0
        %2419 = vmatpush1.msra.mxu0 %v639
        %2420 = vmatprep.subr.mxu0 0.0
        %2421 = vmatpush1.msra.mxu0 %v638
        %2422 = vmatprep.subr.mxu0 0.0
        %2423 = vmatpush1.msra.mxu0 %v637
        %2424 = vmatprep.subr.mxu0 0.0
        %2425 = vmatpush1.msra.mxu0 %v636
        %2426 = vmatprep.subr.mxu0 0.0
        %2427 = vmatpush1.msra.mxu0 %v635
        %2428 = vmatprep.subr.mxu0 0.0
        %2429 = vmatpush1.msra.mxu0 %v634
        %2430 = vmatprep.subr.mxu0 0.0
        %2431 = vmatpush1.msra.mxu0 %v633
        %2432 = vmatprep.subr.mxu0 0.0
        %2433 = vmatpush1.msra.mxu0 %v632
        %2434 = vmatprep.subr.mxu0 0.0
        %2435 = vmatpush1.msra.mxu0 %v631
        %2436 = vmatprep.subr.mxu0 0.0
        %2437 = vmatpush1.msra.mxu0 %v630
        %2438 = vmatprep.subr.mxu0 0.0
        %2439 = vmatpush1.msra.mxu0 %v629
        %2440 = vmatprep.subr.mxu0 0.0
        %2441 = vmatpush1.msra.mxu0 %v628
        %2442 = vmatprep.subr.mxu0 0.0
        %2443 = vmatpush1.msra.mxu0 %v627
        %2444 = vmatprep.subr.mxu0 0.0
        %2445 = vmatpush1.msra.mxu0 %v626
        %2446 = vmatprep.subr.mxu0 0.0
        %2447 = vmatpush1.msra.mxu0 %v625
        %2448 = vmatprep.subr.mxu0 0.0
        %2449 = vmatpush1.msra.mxu0 %v624
        %2450 = vmatprep.subr.mxu0 0.0
        %2451 = vmatpush2.msra.mxu0 %v655
        %2452 = vmatprep.subr.mxu0 0.0
        %2453 = vmatpush2.msra.mxu0 %v654
        %2454 = vmatprep.subr.mxu0 0.0
        %2455 = vmatpush2.msra.mxu0 %v653
        %2456 = vmatprep.subr.mxu0 0.0
        %2457 = vmatpush2.msra.mxu0 %v652
        %2458 = vmatprep.subr.mxu0 0.0
        %2459 = vmatpush2.msra.mxu0 %v651
        %2460 = vmatprep.subr.mxu0 0.0
        %2461 = vmatpush2.msra.mxu0 %v650
        %2462 = vmatprep.subr.mxu0 0.0
        %2463 = vmatpush2.msra.mxu0 %v649
        %2464 = vmatprep.subr.mxu0 0.0
        %2465 = vmatpush2.msra.mxu0 %v648
        %2466 = vmatprep.subr.mxu0 0.0
        %2467 = vmatpush2.msra.mxu0 %v647
        %2468 = vmatprep.subr.mxu0 0.0
        %2469 = vmatpush2.msra.mxu0 %v646
        %2470 = vmatprep.subr.mxu0 0.0
        %2471 = vmatpush2.msra.mxu0 %v645
        %2472 = vmatprep.subr.mxu0 0.0
        %2473 = vmatpush2.msra.mxu0 %v644
        %2474 = vmatprep.subr.mxu0 0.0
        %2475 = vmatpush2.msra.mxu0 %v643
        %2476 = vmatprep.subr.mxu0 0.0
        %2477 = vmatpush2.msra.mxu0 %v642
        %2478 = vmatprep.subr.mxu0 0.0
        %2479 = vmatpush2.msra.mxu0 %v641
        %2480 = vmatprep.subr.mxu0 0.0
        %2481 = vmatpush2.msra.mxu0 %v640
        %2482 = vmatprep.mubr.f32.mxu0 %v1413
        %2483 = vmatmul.mubr.f32.gmra.mxu0 %v1411
        %v2484 = vpop.f32.mrf.mxu0
        %v2485 = vadd.f32 %v2415, %v2484
        %v2486 = vpop.f32.mrf.mxu0
        %2487 = vdwg.mxu0
        %2488 = vmatprep.subr.mxu0 0.0
        %2489 = vmatpush1.msra.mxu0 %v671
        %2490 = vmatprep.subr.mxu0 0.0
        %2491 = vmatpush1.msra.mxu0 %v670
        %2492 = vmatprep.subr.mxu0 0.0
        %2493 = vmatpush1.msra.mxu0 %v669
        %2494 = vmatprep.subr.mxu0 0.0
        %2495 = vmatpush1.msra.mxu0 %v668
        %2496 = vmatprep.subr.mxu0 0.0
        %2497 = vmatpush1.msra.mxu0 %v667
        %2498 = vmatprep.subr.mxu0 0.0
        %2499 = vmatpush1.msra.mxu0 %v666
        %2500 = vmatprep.subr.mxu0 0.0
        %2501 = vmatpush1.msra.mxu0 %v665
        %2502 = vmatprep.subr.mxu0 0.0
        %2503 = vmatpush1.msra.mxu0 %v664
        %2504 = vmatprep.subr.mxu0 0.0
        %2505 = vmatpush1.msra.mxu0 %v663
        %2506 = vmatprep.subr.mxu0 0.0
        %2507 = vmatpush1.msra.mxu0 %v662
        %2508 = vmatprep.subr.mxu0 0.0
        %2509 = vmatpush1.msra.mxu0 %v661
        %2510 = vmatprep.subr.mxu0 0.0
        %2511 = vmatpush1.msra.mxu0 %v660
        %2512 = vmatprep.subr.mxu0 0.0
        %2513 = vmatpush1.msra.mxu0 %v659
        %2514 = vmatprep.subr.mxu0 0.0
        %2515 = vmatpush1.msra.mxu0 %v658
        %2516 = vmatprep.subr.mxu0 0.0
        %2517 = vmatpush1.msra.mxu0 %v657
        %2518 = vmatprep.subr.mxu0 0.0
        %2519 = vmatpush1.msra.mxu0 %v656
        %2520 = vmatprep.subr.mxu0 0.0
        %2521 = vmatpush2.msra.mxu0 %v687
        %2522 = vmatprep.subr.mxu0 0.0
        %2523 = vmatpush2.msra.mxu0 %v686
        %2524 = vmatprep.subr.mxu0 0.0
        %2525 = vmatpush2.msra.mxu0 %v685
        %2526 = vmatprep.subr.mxu0 0.0
        %2527 = vmatpush2.msra.mxu0 %v684
        %2528 = vmatprep.subr.mxu0 0.0
        %2529 = vmatpush2.msra.mxu0 %v683
        %2530 = vmatprep.subr.mxu0 0.0
        %2531 = vmatpush2.msra.mxu0 %v682
        %2532 = vmatprep.subr.mxu0 0.0
        %2533 = vmatpush2.msra.mxu0 %v681
        %2534 = vmatprep.subr.mxu0 0.0
        %2535 = vmatpush2.msra.mxu0 %v680
        %2536 = vmatprep.subr.mxu0 0.0
        %2537 = vmatpush2.msra.mxu0 %v679
        %2538 = vmatprep.subr.mxu0 0.0
        %2539 = vmatpush2.msra.mxu0 %v678
        %2540 = vmatprep.subr.mxu0 0.0
        %2541 = vmatpush2.msra.mxu0 %v677
        %2542 = vmatprep.subr.mxu0 0.0
        %2543 = vmatpush2.msra.mxu0 %v676
        %2544 = vmatprep.subr.mxu0 0.0
        %2545 = vmatpush2.msra.mxu0 %v675
        %2546 = vmatprep.subr.mxu0 0.0
        %2547 = vmatpush2.msra.mxu0 %v674
        %2548 = vmatprep.subr.mxu0 0.0
        %2549 = vmatpush2.msra.mxu0 %v673
        %2550 = vmatprep.subr.mxu0 0.0
        %2551 = vmatpush2.msra.mxu0 %v672
        %2552 = vmatprep.mubr.f32.mxu0 %v1429
        %2553 = vmatmul.mubr.f32.gmra.mxu0 %v1421
        %v2554 = vpop.f32.mrf.mxu0
        %v2555 = vadd.f32 %v2485, %v2554
        %v2556 = vpop.f32.mrf.mxu0
        %2557 = vdwg.mxu0
        %2558 = vmatprep.subr.mxu0 0.0
        %2559 = vmatpush1.msra.mxu0 %v703
        %2560 = vmatprep.subr.mxu0 0.0
        %2561 = vmatpush1.msra.mxu0 %v702
        %2562 = vmatprep.subr.mxu0 0.0
        %2563 = vmatpush1.msra.mxu0 %v701
        %2564 = vmatprep.subr.mxu0 0.0
        %2565 = vmatpush1.msra.mxu0 %v700
        %2566 = vmatprep.subr.mxu0 0.0
        %2567 = vmatpush1.msra.mxu0 %v699
        %2568 = vmatprep.subr.mxu0 0.0
        %2569 = vmatpush1.msra.mxu0 %v698
        %2570 = vmatprep.subr.mxu0 0.0
        %2571 = vmatpush1.msra.mxu0 %v697
        %2572 = vmatprep.subr.mxu0 0.0
        %2573 = vmatpush1.msra.mxu0 %v696
        %2574 = vmatprep.subr.mxu0 0.0
        %2575 = vmatpush1.msra.mxu0 %v695
        %2576 = vmatprep.subr.mxu0 0.0
        %2577 = vmatpush1.msra.mxu0 %v694
        %2578 = vmatprep.subr.mxu0 0.0
        %2579 = vmatpush1.msra.mxu0 %v693
        %2580 = vmatprep.subr.mxu0 0.0
        %2581 = vmatpush1.msra.mxu0 %v692
        %2582 = vmatprep.subr.mxu0 0.0
        %2583 = vmatpush1.msra.mxu0 %v691
        %2584 = vmatprep.subr.mxu0 0.0
        %2585 = vmatpush1.msra.mxu0 %v690
        %2586 = vmatprep.subr.mxu0 0.0
        %2587 = vmatpush1.msra.mxu0 %v689
        %2588 = vmatprep.subr.mxu0 0.0
        %2589 = vmatpush1.msra.mxu0 %v688
        %2590 = vmatprep.subr.mxu0 0.0
        %2591 = vmatpush2.msra.mxu0 %v719
        %2592 = vmatprep.subr.mxu0 0.0
        %2593 = vmatpush2.msra.mxu0 %v718
        %2594 = vmatprep.subr.mxu0 0.0
        %2595 = vmatpush2.msra.mxu0 %v717
        %2596 = vmatprep.subr.mxu0 0.0
        %2597 = vmatpush2.msra.mxu0 %v716
        %2598 = vmatprep.subr.mxu0 0.0
        %2599 = vmatpush2.msra.mxu0 %v715
        %2600 = vmatprep.subr.mxu0 0.0
        %2601 = vmatpush2.msra.mxu0 %v714
        %2602 = vmatprep.subr.mxu0 0.0
        %2603 = vmatpush2.msra.mxu0 %v713
        %2604 = vmatprep.subr.mxu0 0.0
        %2605 = vmatpush2.msra.mxu0 %v712
        %2606 = vmatprep.subr.mxu0 0.0
        %2607 = vmatpush2.msra.mxu0 %v711
        %2608 = vmatprep.subr.mxu0 0.0
        %2609 = vmatpush2.msra.mxu0 %v710
        %2610 = vmatprep.subr.mxu0 0.0
        %2611 = vmatpush2.msra.mxu0 %v709
        %2612 = vmatprep.subr.mxu0 0.0
        %2613 = vmatpush2.msra.mxu0 %v708
        %2614 = vmatprep.subr.mxu0 0.0
        %2615 = vmatpush2.msra.mxu0 %v707
        %2616 = vmatprep.subr.mxu0 0.0
        %2617 = vmatpush2.msra.mxu0 %v706
        %2618 = vmatprep.subr.mxu0 0.0
        %2619 = vmatpush2.msra.mxu0 %v705
        %2620 = vmatprep.subr.mxu0 0.0
        %2621 = vmatpush2.msra.mxu0 %v704
        %2622 = vmatprep.mubr.f32.mxu0 %v1430
        %2623 = vmatmul.mubr.f32.gmra.mxu0 %v1428
        %v2624 = vpop.f32.mrf.mxu0
        %v2625 = vadd.f32 %v2555, %v2624
        %v2626 = vpop.f32.mrf.mxu0
        %2627 = vdwg.mxu0
        %2628 = vmatprep.subr.mxu0 0.0
        %2629 = vmatpush1.msra.mxu0 %v735
        %2630 = vmatprep.subr.mxu0 0.0
        %2631 = vmatpush1.msra.mxu0 %v734
        %2632 = vmatprep.subr.mxu0 0.0
        %2633 = vmatpush1.msra.mxu0 %v733
        %2634 = vmatprep.subr.mxu0 0.0
        %2635 = vmatpush1.msra.mxu0 %v732
        %2636 = vmatprep.subr.mxu0 0.0
        %2637 = vmatpush1.msra.mxu0 %v731
        %2638 = vmatprep.subr.mxu0 0.0
        %2639 = vmatpush1.msra.mxu0 %v730
        %2640 = vmatprep.subr.mxu0 0.0
        %2641 = vmatpush1.msra.mxu0 %v729
        %2642 = vmatprep.subr.mxu0 0.0
        %2643 = vmatpush1.msra.mxu0 %v728
        %2644 = vmatprep.subr.mxu0 0.0
        %2645 = vmatpush1.msra.mxu0 %v727
        %2646 = vmatprep.subr.mxu0 0.0
        %2647 = vmatpush1.msra.mxu0 %v726
        %2648 = vmatprep.subr.mxu0 0.0
        %2649 = vmatpush1.msra.mxu0 %v725
        %2650 = vmatprep.subr.mxu0 0.0
        %2651 = vmatpush1.msra.mxu0 %v724
        %2652 = vmatprep.subr.mxu0 0.0
        %2653 = vmatpush1.msra.mxu0 %v723
        %2654 = vmatprep.subr.mxu0 0.0
        %2655 = vmatpush1.msra.mxu0 %v722
        %2656 = vmatprep.subr.mxu0 0.0
        %2657 = vmatpush1.msra.mxu0 %v721
        %2658 = vmatprep.subr.mxu0 0.0
        %2659 = vmatpush1.msra.mxu0 %v720
        %2660 = vmatprep.subr.mxu0 0.0
        %2661 = vmatpush2.msra.mxu0 %v751
        %2662 = vmatprep.subr.mxu0 0.0
        %2663 = vmatpush2.msra.mxu0 %v750
        %2664 = vmatprep.subr.mxu0 0.0
        %2665 = vmatpush2.msra.mxu0 %v749
        %2666 = vmatprep.subr.mxu0 0.0
        %2667 = vmatpush2.msra.mxu0 %v748
        %2668 = vmatprep.subr.mxu0 0.0
        %2669 = vmatpush2.msra.mxu0 %v747
        %2670 = vmatprep.subr.mxu0 0.0
        %2671 = vmatpush2.msra.mxu0 %v746
        %2672 = vmatprep.subr.mxu0 0.0
        %2673 = vmatpush2.msra.mxu0 %v745
        %2674 = vmatprep.subr.mxu0 0.0
        %2675 = vmatpush2.msra.mxu0 %v744
        %2676 = vmatprep.subr.mxu0 0.0
        %2677 = vmatpush2.msra.mxu0 %v743
        %2678 = vmatprep.subr.mxu0 0.0
        %2679 = vmatpush2.msra.mxu0 %v742
        %2680 = vmatprep.subr.mxu0 0.0
        %2681 = vmatpush2.msra.mxu0 %v741
        %2682 = vmatprep.subr.mxu0 0.0
        %2683 = vmatpush2.msra.mxu0 %v740
        %2684 = vmatprep.subr.mxu0 0.0
        %2685 = vmatpush2.msra.mxu0 %v739
        %2686 = vmatprep.subr.mxu0 0.0
        %2687 = vmatpush2.msra.mxu0 %v738
        %2688 = vmatprep.subr.mxu0 0.0
        %2689 = vmatpush2.msra.mxu0 %v737
        %2690 = vmatprep.subr.mxu0 0.0
        %2691 = vmatpush2.msra.mxu0 %v736
        %2692 = vmatprep.mubr.f32.mxu0 %v1446
        %2693 = vmatmul.mubr.f32.gmra.mxu0 %v1438
        %v2694 = vpop.f32.mrf.mxu0
        %v2695 = vadd.f32 %v2625, %v2694
        %v2696 = vpop.f32.mrf.mxu0
        %2697 = vdwg.mxu0
        %2698 = vmatprep.subr.mxu0 0.0
        %2699 = vmatpush1.msra.mxu0 %v767
        %2700 = vmatprep.subr.mxu0 0.0
        %2701 = vmatpush1.msra.mxu0 %v766
        %2702 = vmatprep.subr.mxu0 0.0
        %2703 = vmatpush1.msra.mxu0 %v765
        %2704 = vmatprep.subr.mxu0 0.0
        %2705 = vmatpush1.msra.mxu0 %v764
        %2706 = vmatprep.subr.mxu0 0.0
        %2707 = vmatpush1.msra.mxu0 %v763
        %2708 = vmatprep.subr.mxu0 0.0
        %2709 = vmatpush1.msra.mxu0 %v762
        %2710 = vmatprep.subr.mxu0 0.0
        %2711 = vmatpush1.msra.mxu0 %v761
        %2712 = vmatprep.subr.mxu0 0.0
        %2713 = vmatpush1.msra.mxu0 %v760
        %2714 = vmatprep.subr.mxu0 0.0
        %2715 = vmatpush1.msra.mxu0 %v759
        %2716 = vmatprep.subr.mxu0 0.0
        %2717 = vmatpush1.msra.mxu0 %v758
        %2718 = vmatprep.subr.mxu0 0.0
        %2719 = vmatpush1.msra.mxu0 %v757
        %2720 = vmatprep.subr.mxu0 0.0
        %2721 = vmatpush1.msra.mxu0 %v756
        %2722 = vmatprep.subr.mxu0 0.0
        %2723 = vmatpush1.msra.mxu0 %v755
        %2724 = vmatprep.subr.mxu0 0.0
        %2725 = vmatpush1.msra.mxu0 %v754
        %2726 = vmatprep.subr.mxu0 0.0
        %2727 = vmatpush1.msra.mxu0 %v753
        %2728 = vmatprep.subr.mxu0 0.0
        %2729 = vmatpush1.msra.mxu0 %v752
        %2730 = vmatprep.subr.mxu0 0.0
        %2731 = vmatpush2.msra.mxu0 %v783
        %2732 = vmatprep.subr.mxu0 0.0
        %2733 = vmatpush2.msra.mxu0 %v782
        %2734 = vmatprep.subr.mxu0 0.0
        %2735 = vmatpush2.msra.mxu0 %v781
        %2736 = vmatprep.subr.mxu0 0.0
        %2737 = vmatpush2.msra.mxu0 %v780
        %2738 = vmatprep.subr.mxu0 0.0
        %2739 = vmatpush2.msra.mxu0 %v779
        %2740 = vmatprep.subr.mxu0 0.0
        %2741 = vmatpush2.msra.mxu0 %v778
        %2742 = vmatprep.subr.mxu0 0.0
        %2743 = vmatpush2.msra.mxu0 %v777
        %2744 = vmatprep.subr.mxu0 0.0
        %2745 = vmatpush2.msra.mxu0 %v776
        %2746 = vmatprep.subr.mxu0 0.0
        %2747 = vmatpush2.msra.mxu0 %v775
        %2748 = vmatprep.subr.mxu0 0.0
        %2749 = vmatpush2.msra.mxu0 %v774
        %2750 = vmatprep.subr.mxu0 0.0
        %2751 = vmatpush2.msra.mxu0 %v773
        %2752 = vmatprep.subr.mxu0 0.0
        %2753 = vmatpush2.msra.mxu0 %v772
        %2754 = vmatprep.subr.mxu0 0.0
        %2755 = vmatpush2.msra.mxu0 %v771
        %2756 = vmatprep.subr.mxu0 0.0
        %2757 = vmatpush2.msra.mxu0 %v770
        %2758 = vmatprep.subr.mxu0 0.0
        %2759 = vmatpush2.msra.mxu0 %v769
        %2760 = vmatprep.subr.mxu0 0.0
        %2761 = vmatpush2.msra.mxu0 %v768
        %2762 = vmatprep.mubr.f32.mxu0 %v1447
        %2763 = vmatmul.mubr.f32.gmra.mxu0 %v1445
        %v2764 = vpop.f32.mrf.mxu0
        %v2765 = vadd.f32 %v2695, %v2764
        %v2766 = vpop.f32.mrf.mxu0
        %2767 = vdwg.mxu0
        %2768 = vmatprep.subr.mxu0 0.0
        %2769 = vmatpush1.msra.mxu0 %v799
        %2770 = vmatprep.subr.mxu0 0.0
        %2771 = vmatpush1.msra.mxu0 %v798
        %2772 = vmatprep.subr.mxu0 0.0
        %2773 = vmatpush1.msra.mxu0 %v797
        %2774 = vmatprep.subr.mxu0 0.0
        %2775 = vmatpush1.msra.mxu0 %v796
        %2776 = vmatprep.subr.mxu0 0.0
        %2777 = vmatpush1.msra.mxu0 %v795
        %2778 = vmatprep.subr.mxu0 0.0
        %2779 = vmatpush1.msra.mxu0 %v794
        %2780 = vmatprep.subr.mxu0 0.0
        %2781 = vmatpush1.msra.mxu0 %v793
        %2782 = vmatprep.subr.mxu0 0.0
        %2783 = vmatpush1.msra.mxu0 %v792
        %2784 = vmatprep.subr.mxu0 0.0
        %2785 = vmatpush1.msra.mxu0 %v791
        %2786 = vmatprep.subr.mxu0 0.0
        %2787 = vmatpush1.msra.mxu0 %v790
        %2788 = vmatprep.subr.mxu0 0.0
        %2789 = vmatpush1.msra.mxu0 %v789
        %2790 = vmatprep.subr.mxu0 0.0
        %2791 = vmatpush1.msra.mxu0 %v788
        %2792 = vmatprep.subr.mxu0 0.0
        %2793 = vmatpush1.msra.mxu0 %v787
        %2794 = vmatprep.subr.mxu0 0.0
        %2795 = vmatpush1.msra.mxu0 %v786
        %2796 = vmatprep.subr.mxu0 0.0
        %2797 = vmatpush1.msra.mxu0 %v785
        %2798 = vmatprep.subr.mxu0 0.0
        %2799 = vmatpush1.msra.mxu0 %v784
        %2800 = vmatprep.subr.mxu0 0.0
        %2801 = vmatpush2.msra.mxu0 %v815
        %2802 = vmatprep.subr.mxu0 0.0
        %2803 = vmatpush2.msra.mxu0 %v814
        %2804 = vmatprep.subr.mxu0 0.0
        %2805 = vmatpush2.msra.mxu0 %v813
        %2806 = vmatprep.subr.mxu0 0.0
        %2807 = vmatpush2.msra.mxu0 %v812
        %2808 = vmatprep.subr.mxu0 0.0
        %2809 = vmatpush2.msra.mxu0 %v811
        %2810 = vmatprep.subr.mxu0 0.0
        %2811 = vmatpush2.msra.mxu0 %v810
        %2812 = vmatprep.subr.mxu0 0.0
        %2813 = vmatpush2.msra.mxu0 %v809
        %2814 = vmatprep.subr.mxu0 0.0
        %2815 = vmatpush2.msra.mxu0 %v808
        %2816 = vmatprep.subr.mxu0 0.0
        %2817 = vmatpush2.msra.mxu0 %v807
        %2818 = vmatprep.subr.mxu0 0.0
        %2819 = vmatpush2.msra.mxu0 %v806
        %2820 = vmatprep.subr.mxu0 0.0
        %2821 = vmatpush2.msra.mxu0 %v805
        %2822 = vmatprep.subr.mxu0 0.0
        %2823 = vmatpush2.msra.mxu0 %v804
        %2824 = vmatprep.subr.mxu0 0.0
        %2825 = vmatpush2.msra.mxu0 %v803
        %2826 = vmatprep.subr.mxu0 0.0
        %2827 = vmatpush2.msra.mxu0 %v802
        %2828 = vmatprep.subr.mxu0 0.0
        %2829 = vmatpush2.msra.mxu0 %v801
        %2830 = vmatprep.subr.mxu0 0.0
        %2831 = vmatpush2.msra.mxu0 %v800
        %2832 = vmatprep.mubr.f32.mxu0 %v1463
        %2833 = vmatmul.mubr.f32.gmra.mxu0 %v1455
        %v2834 = vpop.f32.mrf.mxu0
        %v2835 = vadd.f32 %v2765, %v2834
        %v2836 = vpop.f32.mrf.mxu0
        %2837 = vdwg.mxu0
        %2838 = vmatprep.subr.mxu0 0.0
        %2839 = vmatpush1.msra.mxu0 %v831
        %2840 = vmatprep.subr.mxu0 0.0
        %2841 = vmatpush1.msra.mxu0 %v830
        %2842 = vmatprep.subr.mxu0 0.0
        %2843 = vmatpush1.msra.mxu0 %v829
        %2844 = vmatprep.subr.mxu0 0.0
        %2845 = vmatpush1.msra.mxu0 %v828
        %2846 = vmatprep.subr.mxu0 0.0
        %2847 = vmatpush1.msra.mxu0 %v827
        %2848 = vmatprep.subr.mxu0 0.0
        %2849 = vmatpush1.msra.mxu0 %v826
        %2850 = vmatprep.subr.mxu0 0.0
        %2851 = vmatpush1.msra.mxu0 %v825
        %2852 = vmatprep.subr.mxu0 0.0
        %2853 = vmatpush1.msra.mxu0 %v824
        %2854 = vmatprep.subr.mxu0 0.0
        %2855 = vmatpush1.msra.mxu0 %v823
        %2856 = vmatprep.subr.mxu0 0.0
        %2857 = vmatpush1.msra.mxu0 %v822
        %2858 = vmatprep.subr.mxu0 0.0
        %2859 = vmatpush1.msra.mxu0 %v821
        %2860 = vmatprep.subr.mxu0 0.0
        %2861 = vmatpush1.msra.mxu0 %v820
        %2862 = vmatprep.subr.mxu0 0.0
        %2863 = vmatpush1.msra.mxu0 %v819
        %2864 = vmatprep.subr.mxu0 0.0
        %2865 = vmatpush1.msra.mxu0 %v818
        %2866 = vmatprep.subr.mxu0 0.0
        %2867 = vmatpush1.msra.mxu0 %v817
        %2868 = vmatprep.subr.mxu0 0.0
        %2869 = vmatpush1.msra.mxu0 %v816
        %2870 = vmatprep.subr.mxu0 0.0
        %2871 = vmatpush2.msra.mxu0 %v847
        %2872 = vmatprep.subr.mxu0 0.0
        %2873 = vmatpush2.msra.mxu0 %v846
        %2874 = vmatprep.subr.mxu0 0.0
        %2875 = vmatpush2.msra.mxu0 %v845
        %2876 = vmatprep.subr.mxu0 0.0
        %2877 = vmatpush2.msra.mxu0 %v844
        %2878 = vmatprep.subr.mxu0 0.0
        %2879 = vmatpush2.msra.mxu0 %v843
        %2880 = vmatprep.subr.mxu0 0.0
        %2881 = vmatpush2.msra.mxu0 %v842
        %2882 = vmatprep.subr.mxu0 0.0
        %2883 = vmatpush2.msra.mxu0 %v841
        %2884 = vmatprep.subr.mxu0 0.0
        %2885 = vmatpush2.msra.mxu0 %v840
        %2886 = vmatprep.subr.mxu0 0.0
        %2887 = vmatpush2.msra.mxu0 %v839
        %2888 = vmatprep.subr.mxu0 0.0
        %2889 = vmatpush2.msra.mxu0 %v838
        %2890 = vmatprep.subr.mxu0 0.0
        %2891 = vmatpush2.msra.mxu0 %v837
        %2892 = vmatprep.subr.mxu0 0.0
        %2893 = vmatpush2.msra.mxu0 %v836
        %2894 = vmatprep.subr.mxu0 0.0
        %2895 = vmatpush2.msra.mxu0 %v835
        %2896 = vmatprep.subr.mxu0 0.0
        %2897 = vmatpush2.msra.mxu0 %v834
        %2898 = vmatprep.subr.mxu0 0.0
        %2899 = vmatpush2.msra.mxu0 %v833
        %2900 = vmatprep.subr.mxu0 0.0
        %2901 = vmatpush2.msra.mxu0 %v832
        %2902 = vmatprep.mubr.f32.mxu0 %v1464
        %2903 = vmatmul.mubr.f32.gmra.mxu0 %v1462
        %v2904 = vpop.f32.mrf.mxu0
        %v2905 = vadd.f32 %v2835, %v2904
        %v2906 = vpop.f32.mrf.mxu0
        %2907 = vdwg.mxu0
        %2908 = vmatprep.subr.mxu0 0.0
        %2909 = vmatpush1.msra.mxu0 %v863
        %2910 = vmatprep.subr.mxu0 0.0
        %2911 = vmatpush1.msra.mxu0 %v862
        %2912 = vmatprep.subr.mxu0 0.0
        %2913 = vmatpush1.msra.mxu0 %v861
        %2914 = vmatprep.subr.mxu0 0.0
        %2915 = vmatpush1.msra.mxu0 %v860
        %2916 = vmatprep.subr.mxu0 0.0
        %2917 = vmatpush1.msra.mxu0 %v859
        %2918 = vmatprep.subr.mxu0 0.0
        %2919 = vmatpush1.msra.mxu0 %v858
        %2920 = vmatprep.subr.mxu0 0.0
        %2921 = vmatpush1.msra.mxu0 %v857
        %2922 = vmatprep.subr.mxu0 0.0
        %2923 = vmatpush1.msra.mxu0 %v856
        %2924 = vmatprep.subr.mxu0 0.0
        %2925 = vmatpush1.msra.mxu0 %v855
        %2926 = vmatprep.subr.mxu0 0.0
        %2927 = vmatpush1.msra.mxu0 %v854
        %2928 = vmatprep.subr.mxu0 0.0
        %2929 = vmatpush1.msra.mxu0 %v853
        %2930 = vmatprep.subr.mxu0 0.0
        %2931 = vmatpush1.msra.mxu0 %v852
        %2932 = vmatprep.subr.mxu0 0.0
        %2933 = vmatpush1.msra.mxu0 %v851
        %2934 = vmatprep.subr.mxu0 0.0
        %2935 = vmatpush1.msra.mxu0 %v850
        %2936 = vmatprep.subr.mxu0 0.0
        %2937 = vmatpush1.msra.mxu0 %v849
        %2938 = vmatprep.subr.mxu0 0.0
        %2939 = vmatpush1.msra.mxu0 %v848
        %2940 = vmatprep.subr.mxu0 0.0
        %2941 = vmatpush2.msra.mxu0 %v879
        %2942 = vmatprep.subr.mxu0 0.0
        %2943 = vmatpush2.msra.mxu0 %v878
        %2944 = vmatprep.subr.mxu0 0.0
        %2945 = vmatpush2.msra.mxu0 %v877
        %2946 = vmatprep.subr.mxu0 0.0
        %2947 = vmatpush2.msra.mxu0 %v876
        %2948 = vmatprep.subr.mxu0 0.0
        %2949 = vmatpush2.msra.mxu0 %v875
        %2950 = vmatprep.subr.mxu0 0.0
        %2951 = vmatpush2.msra.mxu0 %v874
        %2952 = vmatprep.subr.mxu0 0.0
        %2953 = vmatpush2.msra.mxu0 %v873
        %2954 = vmatprep.subr.mxu0 0.0
        %2955 = vmatpush2.msra.mxu0 %v872
        %2956 = vmatprep.subr.mxu0 0.0
        %2957 = vmatpush2.msra.mxu0 %v871
        %2958 = vmatprep.subr.mxu0 0.0
        %2959 = vmatpush2.msra.mxu0 %v870
        %2960 = vmatprep.subr.mxu0 0.0
        %2961 = vmatpush2.msra.mxu0 %v869
        %2962 = vmatprep.subr.mxu0 0.0
        %2963 = vmatpush2.msra.mxu0 %v868
        %2964 = vmatprep.subr.mxu0 0.0
        %2965 = vmatpush2.msra.mxu0 %v867
        %2966 = vmatprep.subr.mxu0 0.0
        %2967 = vmatpush2.msra.mxu0 %v866
        %2968 = vmatprep.subr.mxu0 0.0
        %2969 = vmatpush2.msra.mxu0 %v865
        %2970 = vmatprep.subr.mxu0 0.0
        %2971 = vmatpush2.msra.mxu0 %v864
        %2972 = vmatprep.mubr.f32.mxu0 %v1480
        %2973 = vmatmul.mubr.f32.gmra.mxu0 %v1472
        %v2974 = vpop.f32.mrf.mxu0
        %v2975 = vadd.f32 %v2905, %v2974
        %v2976 = vpop.f32.mrf.mxu0
        %2977 = vdwg.mxu0
        %2978 = vmatprep.subr.mxu0 0.0
        %2979 = vmatpush1.msra.mxu0 %v895
        %2980 = vmatprep.subr.mxu0 0.0
        %2981 = vmatpush1.msra.mxu0 %v894
        %2982 = vmatprep.subr.mxu0 0.0
        %2983 = vmatpush1.msra.mxu0 %v893
        %2984 = vmatprep.subr.mxu0 0.0
        %2985 = vmatpush1.msra.mxu0 %v892
        %2986 = vmatprep.subr.mxu0 0.0
        %2987 = vmatpush1.msra.mxu0 %v891
        %2988 = vmatprep.subr.mxu0 0.0
        %2989 = vmatpush1.msra.mxu0 %v890
        %2990 = vmatprep.subr.mxu0 0.0
        %2991 = vmatpush1.msra.mxu0 %v889
        %2992 = vmatprep.subr.mxu0 0.0
        %2993 = vmatpush1.msra.mxu0 %v888
        %2994 = vmatprep.subr.mxu0 0.0
        %2995 = vmatpush1.msra.mxu0 %v887
        %2996 = vmatprep.subr.mxu0 0.0
        %2997 = vmatpush1.msra.mxu0 %v886
        %2998 = vmatprep.subr.mxu0 0.0
        %2999 = vmatpush1.msra.mxu0 %v885
        %3000 = vmatprep.subr.mxu0 0.0
        %3001 = vmatpush1.msra.mxu0 %v884
        %3002 = vmatprep.subr.mxu0 0.0
        %3003 = vmatpush1.msra.mxu0 %v883
        %3004 = vmatprep.subr.mxu0 0.0
        %3005 = vmatpush1.msra.mxu0 %v882
        %3006 = vmatprep.subr.mxu0 0.0
        %3007 = vmatpush1.msra.mxu0 %v881
        %3008 = vmatprep.subr.mxu0 0.0
        %3009 = vmatpush1.msra.mxu0 %v880
        %3010 = vmatprep.subr.mxu0 0.0
        %3011 = vmatpush2.msra.mxu0 %v911
        %3012 = vmatprep.subr.mxu0 0.0
        %3013 = vmatpush2.msra.mxu0 %v910
        %3014 = vmatprep.subr.mxu0 0.0
        %3015 = vmatpush2.msra.mxu0 %v909
        %3016 = vmatprep.subr.mxu0 0.0
        %3017 = vmatpush2.msra.mxu0 %v908
        %3018 = vmatprep.subr.mxu0 0.0
        %3019 = vmatpush2.msra.mxu0 %v907
        %3020 = vmatprep.subr.mxu0 0.0
        %3021 = vmatpush2.msra.mxu0 %v906
        %3022 = vmatprep.subr.mxu0 0.0
        %3023 = vmatpush2.msra.mxu0 %v905
        %3024 = vmatprep.subr.mxu0 0.0
        %3025 = vmatpush2.msra.mxu0 %v904
        %3026 = vmatprep.subr.mxu0 0.0
        %3027 = vmatpush2.msra.mxu0 %v903
        %3028 = vmatprep.subr.mxu0 0.0
        %3029 = vmatpush2.msra.mxu0 %v902
        %3030 = vmatprep.subr.mxu0 0.0
        %3031 = vmatpush2.msra.mxu0 %v901
        %3032 = vmatprep.subr.mxu0 0.0
        %3033 = vmatpush2.msra.mxu0 %v900
        %3034 = vmatprep.subr.mxu0 0.0
        %3035 = vmatpush2.msra.mxu0 %v899
        %3036 = vmatprep.subr.mxu0 0.0
        %3037 = vmatpush2.msra.mxu0 %v898
        %3038 = vmatprep.subr.mxu0 0.0
        %3039 = vmatpush2.msra.mxu0 %v897
        %3040 = vmatprep.subr.mxu0 0.0
        %3041 = vmatpush2.msra.mxu0 %v896
        %3042 = vmatprep.mubr.f32.mxu0 %v1481
        %3043 = vmatmul.mubr.f32.gmra.mxu0 %v1479
        %v3044 = vpop.f32.mrf.mxu0
        %v3045 = vadd.f32 %v2975, %v3044
        %v3046 = vpop.f32.mrf.mxu0
        %3047 = vdwg.mxu0
        %3048 = vmatprep.subr.mxu0 0.0
        %3049 = vmatpush1.msra.mxu0 %v927
        %3050 = vmatprep.subr.mxu0 0.0
        %3051 = vmatpush1.msra.mxu0 %v926
        %3052 = vmatprep.subr.mxu0 0.0
        %3053 = vmatpush1.msra.mxu0 %v925
        %3054 = vmatprep.subr.mxu0 0.0
        %3055 = vmatpush1.msra.mxu0 %v924
        %3056 = vmatprep.subr.mxu0 0.0
        %3057 = vmatpush1.msra.mxu0 %v923
        %3058 = vmatprep.subr.mxu0 0.0
        %3059 = vmatpush1.msra.mxu0 %v922
        %3060 = vmatprep.subr.mxu0 0.0
        %3061 = vmatpush1.msra.mxu0 %v921
        %3062 = vmatprep.subr.mxu0 0.0
        %3063 = vmatpush1.msra.mxu0 %v920
        %3064 = vmatprep.subr.mxu0 0.0
        %3065 = vmatpush1.msra.mxu0 %v919
        %3066 = vmatprep.subr.mxu0 0.0
        %3067 = vmatpush1.msra.mxu0 %v918
        %3068 = vmatprep.subr.mxu0 0.0
        %3069 = vmatpush1.msra.mxu0 %v917
        %3070 = vmatprep.subr.mxu0 0.0
        %3071 = vmatpush1.msra.mxu0 %v916
        %3072 = vmatprep.subr.mxu0 0.0
        %3073 = vmatpush1.msra.mxu0 %v915
        %3074 = vmatprep.subr.mxu0 0.0
        %3075 = vmatpush1.msra.mxu0 %v914
        %3076 = vmatprep.subr.mxu0 0.0
        %3077 = vmatpush1.msra.mxu0 %v913
        %3078 = vmatprep.subr.mxu0 0.0
        %3079 = vmatpush1.msra.mxu0 %v912
        %3080 = vmatprep.subr.mxu0 0.0
        %3081 = vmatpush2.msra.mxu0 %v943
        %3082 = vmatprep.subr.mxu0 0.0
        %3083 = vmatpush2.msra.mxu0 %v942
        %3084 = vmatprep.subr.mxu0 0.0
        %3085 = vmatpush2.msra.mxu0 %v941
        %3086 = vmatprep.subr.mxu0 0.0
        %3087 = vmatpush2.msra.mxu0 %v940
        %3088 = vmatprep.subr.mxu0 0.0
        %3089 = vmatpush2.msra.mxu0 %v939
        %3090 = vmatprep.subr.mxu0 0.0
        %3091 = vmatpush2.msra.mxu0 %v938
        %3092 = vmatprep.subr.mxu0 0.0
        %3093 = vmatpush2.msra.mxu0 %v937
        %3094 = vmatprep.subr.mxu0 0.0
        %3095 = vmatpush2.msra.mxu0 %v936
        %3096 = vmatprep.subr.mxu0 0.0
        %3097 = vmatpush2.msra.mxu0 %v935
        %3098 = vmatprep.subr.mxu0 0.0
        %3099 = vmatpush2.msra.mxu0 %v934
        %3100 = vmatprep.subr.mxu0 0.0
        %3101 = vmatpush2.msra.mxu0 %v933
        %3102 = vmatprep.subr.mxu0 0.0
        %3103 = vmatpush2.msra.mxu0 %v932
        %3104 = vmatprep.subr.mxu0 0.0
        %3105 = vmatpush2.msra.mxu0 %v931
        %3106 = vmatprep.subr.mxu0 0.0
        %3107 = vmatpush2.msra.mxu0 %v930
        %3108 = vmatprep.subr.mxu0 0.0
        %3109 = vmatpush2.msra.mxu0 %v929
        %3110 = vmatprep.subr.mxu0 0.0
        %3111 = vmatpush2.msra.mxu0 %v928
        %3112 = vmatprep.mubr.f32.mxu0 %v1497
        %3113 = vmatmul.mubr.f32.gmra.mxu0 %v1489
        %v3114 = vpop.f32.mrf.mxu0
        %v3115 = vadd.f32 %v3045, %v3114
        %v3116 = vpop.f32.mrf.mxu0
        %3117 = vdwg.mxu0
        %3118 = vmatprep.subr.mxu0 0.0
        %3119 = vmatpush1.msra.mxu0 %v959
        %3120 = vmatprep.subr.mxu0 0.0
        %3121 = vmatpush1.msra.mxu0 %v958
        %3122 = vmatprep.subr.mxu0 0.0
        %3123 = vmatpush1.msra.mxu0 %v957
        %3124 = vmatprep.subr.mxu0 0.0
        %3125 = vmatpush1.msra.mxu0 %v956
        %3126 = vmatprep.subr.mxu0 0.0
        %3127 = vmatpush1.msra.mxu0 %v955
        %3128 = vmatprep.subr.mxu0 0.0
        %3129 = vmatpush1.msra.mxu0 %v954
        %3130 = vmatprep.subr.mxu0 0.0
        %3131 = vmatpush1.msra.mxu0 %v953
        %3132 = vmatprep.subr.mxu0 0.0
        %3133 = vmatpush1.msra.mxu0 %v952
        %3134 = vmatprep.subr.mxu0 0.0
        %3135 = vmatpush1.msra.mxu0 %v951
        %3136 = vmatprep.subr.mxu0 0.0
        %3137 = vmatpush1.msra.mxu0 %v950
        %3138 = vmatprep.subr.mxu0 0.0
        %3139 = vmatpush1.msra.mxu0 %v949
        %3140 = vmatprep.subr.mxu0 0.0
        %3141 = vmatpush1.msra.mxu0 %v948
        %3142 = vmatprep.subr.mxu0 0.0
        %3143 = vmatpush1.msra.mxu0 %v947
        %3144 = vmatprep.subr.mxu0 0.0
        %3145 = vmatpush1.msra.mxu0 %v946
        %3146 = vmatprep.subr.mxu0 0.0
        %3147 = vmatpush1.msra.mxu0 %v945
        %3148 = vmatprep.subr.mxu0 0.0
        %3149 = vmatpush1.msra.mxu0 %v944
        %3150 = vmatprep.subr.mxu0 0.0
        %3151 = vmatpush2.msra.mxu0 %v975
        %3152 = vmatprep.subr.mxu0 0.0
        %3153 = vmatpush2.msra.mxu0 %v974
        %3154 = vmatprep.subr.mxu0 0.0
        %3155 = vmatpush2.msra.mxu0 %v973
        %3156 = vmatprep.subr.mxu0 0.0
        %3157 = vmatpush2.msra.mxu0 %v972
        %3158 = vmatprep.subr.mxu0 0.0
        %3159 = vmatpush2.msra.mxu0 %v971
        %3160 = vmatprep.subr.mxu0 0.0
        %3161 = vmatpush2.msra.mxu0 %v970
        %3162 = vmatprep.subr.mxu0 0.0
        %3163 = vmatpush2.msra.mxu0 %v969
        %3164 = vmatprep.subr.mxu0 0.0
        %3165 = vmatpush2.msra.mxu0 %v968
        %3166 = vmatprep.subr.mxu0 0.0
        %3167 = vmatpush2.msra.mxu0 %v967
        %3168 = vmatprep.subr.mxu0 0.0
        %3169 = vmatpush2.msra.mxu0 %v966
        %3170 = vmatprep.subr.mxu0 0.0
        %3171 = vmatpush2.msra.mxu0 %v965
        %3172 = vmatprep.subr.mxu0 0.0
        %3173 = vmatpush2.msra.mxu0 %v964
        %3174 = vmatprep.subr.mxu0 0.0
        %3175 = vmatpush2.msra.mxu0 %v963
        %3176 = vmatprep.subr.mxu0 0.0
        %3177 = vmatpush2.msra.mxu0 %v962
        %3178 = vmatprep.subr.mxu0 0.0
        %3179 = vmatpush2.msra.mxu0 %v961
        %3180 = vmatprep.subr.mxu0 0.0
        %3181 = vmatpush2.msra.mxu0 %v960
        %3182 = vmatprep.mubr.f32.mxu0 %v1498
        %3183 = vmatmul.mubr.f32.gmra.mxu0 %v1496
        %v3184 = vpop.f32.mrf.mxu0
        %v3185 = vadd.f32 %v3115, %v3184
        %v3186 = vpop.f32.mrf.mxu0
        %3187 = vdwg.mxu0
        %3188 = vmatprep.subr.mxu0 0.0
        %3189 = vmatpush1.msra.mxu0 %v991
        %3190 = vmatprep.subr.mxu0 0.0
        %3191 = vmatpush1.msra.mxu0 %v990
        %3192 = vmatprep.subr.mxu0 0.0
        %3193 = vmatpush1.msra.mxu0 %v989
        %3194 = vmatprep.subr.mxu0 0.0
        %3195 = vmatpush1.msra.mxu0 %v988
        %3196 = vmatprep.subr.mxu0 0.0
        %3197 = vmatpush1.msra.mxu0 %v987
        %3198 = vmatprep.subr.mxu0 0.0
        %3199 = vmatpush1.msra.mxu0 %v986
        %3200 = vmatprep.subr.mxu0 0.0
        %3201 = vmatpush1.msra.mxu0 %v985
        %3202 = vmatprep.subr.mxu0 0.0
        %3203 = vmatpush1.msra.mxu0 %v984
        %3204 = vmatprep.subr.mxu0 0.0
        %3205 = vmatpush1.msra.mxu0 %v983
        %3206 = vmatprep.subr.mxu0 0.0
        %3207 = vmatpush1.msra.mxu0 %v982
        %3208 = vmatprep.subr.mxu0 0.0
        %3209 = vmatpush1.msra.mxu0 %v981
        %3210 = vmatprep.subr.mxu0 0.0
        %3211 = vmatpush1.msra.mxu0 %v980
        %3212 = vmatprep.subr.mxu0 0.0
        %3213 = vmatpush1.msra.mxu0 %v979
        %3214 = vmatprep.subr.mxu0 0.0
        %3215 = vmatpush1.msra.mxu0 %v978
        %3216 = vmatprep.subr.mxu0 0.0
        %3217 = vmatpush1.msra.mxu0 %v977
        %3218 = vmatprep.subr.mxu0 0.0
        %3219 = vmatpush1.msra.mxu0 %v976
        %3220 = vmatprep.subr.mxu0 0.0
        %3221 = vmatpush2.msra.mxu0 %v1007
        %3222 = vmatprep.subr.mxu0 0.0
        %3223 = vmatpush2.msra.mxu0 %v1006
        %3224 = vmatprep.subr.mxu0 0.0
        %3225 = vmatpush2.msra.mxu0 %v1005
        %3226 = vmatprep.subr.mxu0 0.0
        %3227 = vmatpush2.msra.mxu0 %v1004
        %3228 = vmatprep.subr.mxu0 0.0
        %3229 = vmatpush2.msra.mxu0 %v1003
        %3230 = vmatprep.subr.mxu0 0.0
        %3231 = vmatpush2.msra.mxu0 %v1002
        %3232 = vmatprep.subr.mxu0 0.0
        %3233 = vmatpush2.msra.mxu0 %v1001
        %3234 = vmatprep.subr.mxu0 0.0
        %3235 = vmatpush2.msra.mxu0 %v1000
        %3236 = vmatprep.subr.mxu0 0.0
        %3237 = vmatpush2.msra.mxu0 %v999
        %3238 = vmatprep.subr.mxu0 0.0
        %3239 = vmatpush2.msra.mxu0 %v998
        %3240 = vmatprep.subr.mxu0 0.0
        %3241 = vmatpush2.msra.mxu0 %v997
        %3242 = vmatprep.subr.mxu0 0.0
        %3243 = vmatpush2.msra.mxu0 %v996
        %3244 = vmatprep.subr.mxu0 0.0
        %3245 = vmatpush2.msra.mxu0 %v995
        %3246 = vmatprep.subr.mxu0 0.0
        %3247 = vmatpush2.msra.mxu0 %v994
        %3248 = vmatprep.subr.mxu0 0.0
        %3249 = vmatpush2.msra.mxu0 %v993
        %3250 = vmatprep.subr.mxu0 0.0
        %3251 = vmatpush2.msra.mxu0 %v992
        %3252 = vmatprep.mubr.f32.mxu0 %v1514
        %3253 = vmatmul.mubr.f32.gmra.mxu0 %v1506
        %v3254 = vpop.f32.mrf.mxu0
        %v3255 = vadd.f32 %v3185, %v3254
        %v3256 = vpop.f32.mrf.mxu0
        %3257 = vdwg.mxu0
        %3258 = vmatprep.subr.mxu0 0.0
        %3259 = vmatpush1.msra.mxu0 %v1023
        %3260 = vmatprep.subr.mxu0 0.0
        %3261 = vmatpush1.msra.mxu0 %v1022
        %3262 = vmatprep.subr.mxu0 0.0
        %3263 = vmatpush1.msra.mxu0 %v1021
        %3264 = vmatprep.subr.mxu0 0.0
        %3265 = vmatpush1.msra.mxu0 %v1020
        %3266 = vmatprep.subr.mxu0 0.0
        %3267 = vmatpush1.msra.mxu0 %v1019
        %3268 = vmatprep.subr.mxu0 0.0
        %3269 = vmatpush1.msra.mxu0 %v1018
        %3270 = vmatprep.subr.mxu0 0.0
        %3271 = vmatpush1.msra.mxu0 %v1017
        %3272 = vmatprep.subr.mxu0 0.0
        %3273 = vmatpush1.msra.mxu0 %v1016
        %3274 = vmatprep.subr.mxu0 0.0
        %3275 = vmatpush1.msra.mxu0 %v1015
        %3276 = vmatprep.subr.mxu0 0.0
        %3277 = vmatpush1.msra.mxu0 %v1014
        %3278 = vmatprep.subr.mxu0 0.0
        %3279 = vmatpush1.msra.mxu0 %v1013
        %3280 = vmatprep.subr.mxu0 0.0
        %3281 = vmatpush1.msra.mxu0 %v1012
        %3282 = vmatprep.subr.mxu0 0.0
        %3283 = vmatpush1.msra.mxu0 %v1011
        %3284 = vmatprep.subr.mxu0 0.0
        %3285 = vmatpush1.msra.mxu0 %v1010
        %3286 = vmatprep.subr.mxu0 0.0
        %3287 = vmatpush1.msra.mxu0 %v1009
        %3288 = vmatprep.subr.mxu0 0.0
        %3289 = vmatpush1.msra.mxu0 %v1008
        %3290 = vmatprep.subr.mxu0 0.0
        %3291 = vmatpush2.msra.mxu0 %v1039
        %3292 = vmatprep.subr.mxu0 0.0
        %3293 = vmatpush2.msra.mxu0 %v1038
        %3294 = vmatprep.subr.mxu0 0.0
        %3295 = vmatpush2.msra.mxu0 %v1037
        %3296 = vmatprep.subr.mxu0 0.0
        %3297 = vmatpush2.msra.mxu0 %v1036
        %3298 = vmatprep.subr.mxu0 0.0
        %3299 = vmatpush2.msra.mxu0 %v1035
        %3300 = vmatprep.subr.mxu0 0.0
        %3301 = vmatpush2.msra.mxu0 %v1034
        %3302 = vmatprep.subr.mxu0 0.0
        %3303 = vmatpush2.msra.mxu0 %v1033
        %3304 = vmatprep.subr.mxu0 0.0
        %3305 = vmatpush2.msra.mxu0 %v1032
        %3306 = vmatprep.subr.mxu0 0.0
        %3307 = vmatpush2.msra.mxu0 %v1031
        %3308 = vmatprep.subr.mxu0 0.0
        %3309 = vmatpush2.msra.mxu0 %v1030
        %3310 = vmatprep.subr.mxu0 0.0
        %3311 = vmatpush2.msra.mxu0 %v1029
        %3312 = vmatprep.subr.mxu0 0.0
        %3313 = vmatpush2.msra.mxu0 %v1028
        %3314 = vmatprep.subr.mxu0 0.0
        %3315 = vmatpush2.msra.mxu0 %v1027
        %3316 = vmatprep.subr.mxu0 0.0
        %3317 = vmatpush2.msra.mxu0 %v1026
        %3318 = vmatprep.subr.mxu0 0.0
        %3319 = vmatpush2.msra.mxu0 %v1025
        %3320 = vmatprep.subr.mxu0 0.0
        %3321 = vmatpush2.msra.mxu0 %v1024
        %3322 = vmatprep.mubr.f32.mxu0 %v1515
        %3323 = vmatmul.mubr.f32.gmra.mxu0 %v1513
        %v3324 = vpop.f32.mrf.mxu0
        %v3325 = vadd.f32 %v3255, %v3324
        %v3326 = vpop.f32.mrf.mxu0
        %3327 = vdwg.mxu0
        %3328 = vmatprep.subr.mxu0 0.0
        %3329 = vmatpush1.msra.mxu0 %v1055
        %3330 = vmatprep.subr.mxu0 0.0
        %3331 = vmatpush1.msra.mxu0 %v1054
        %3332 = vmatprep.subr.mxu0 0.0
        %3333 = vmatpush1.msra.mxu0 %v1053
        %3334 = vmatprep.subr.mxu0 0.0
        %3335 = vmatpush1.msra.mxu0 %v1052
        %3336 = vmatprep.subr.mxu0 0.0
        %3337 = vmatpush1.msra.mxu0 %v1051
        %3338 = vmatprep.subr.mxu0 0.0
        %3339 = vmatpush1.msra.mxu0 %v1050
        %3340 = vmatprep.subr.mxu0 0.0
        %3341 = vmatpush1.msra.mxu0 %v1049
        %3342 = vmatprep.subr.mxu0 0.0
        %3343 = vmatpush1.msra.mxu0 %v1048
        %3344 = vmatprep.subr.mxu0 0.0
        %3345 = vmatpush1.msra.mxu0 %v1047
        %3346 = vmatprep.subr.mxu0 0.0
        %3347 = vmatpush1.msra.mxu0 %v1046
        %3348 = vmatprep.subr.mxu0 0.0
        %3349 = vmatpush1.msra.mxu0 %v1045
        %3350 = vmatprep.subr.mxu0 0.0
        %3351 = vmatpush1.msra.mxu0 %v1044
        %3352 = vmatprep.subr.mxu0 0.0
        %3353 = vmatpush1.msra.mxu0 %v1043
        %3354 = vmatprep.subr.mxu0 0.0
        %3355 = vmatpush1.msra.mxu0 %v1042
        %3356 = vmatprep.subr.mxu0 0.0
        %3357 = vmatpush1.msra.mxu0 %v1041
        %3358 = vmatprep.subr.mxu0 0.0
        %3359 = vmatpush1.msra.mxu0 %v1040
        %3360 = vmatprep.subr.mxu0 0.0
        %3361 = vmatpush2.msra.mxu0 %v1071
        %3362 = vmatprep.subr.mxu0 0.0
        %3363 = vmatpush2.msra.mxu0 %v1070
        %3364 = vmatprep.subr.mxu0 0.0
        %3365 = vmatpush2.msra.mxu0 %v1069
        %3366 = vmatprep.subr.mxu0 0.0
        %3367 = vmatpush2.msra.mxu0 %v1068
        %3368 = vmatprep.subr.mxu0 0.0
        %3369 = vmatpush2.msra.mxu0 %v1067
        %3370 = vmatprep.subr.mxu0 0.0
        %3371 = vmatpush2.msra.mxu0 %v1066
        %3372 = vmatprep.subr.mxu0 0.0
        %3373 = vmatpush2.msra.mxu0 %v1065
        %3374 = vmatprep.subr.mxu0 0.0
        %3375 = vmatpush2.msra.mxu0 %v1064
        %3376 = vmatprep.subr.mxu0 0.0
        %3377 = vmatpush2.msra.mxu0 %v1063
        %3378 = vmatprep.subr.mxu0 0.0
        %3379 = vmatpush2.msra.mxu0 %v1062
        %3380 = vmatprep.subr.mxu0 0.0
        %3381 = vmatpush2.msra.mxu0 %v1061
        %3382 = vmatprep.subr.mxu0 0.0
        %3383 = vmatpush2.msra.mxu0 %v1060
        %3384 = vmatprep.subr.mxu0 0.0
        %3385 = vmatpush2.msra.mxu0 %v1059
        %3386 = vmatprep.subr.mxu0 0.0
        %3387 = vmatpush2.msra.mxu0 %v1058
        %3388 = vmatprep.subr.mxu0 0.0
        %3389 = vmatpush2.msra.mxu0 %v1057
        %3390 = vmatprep.subr.mxu0 0.0
        %3391 = vmatpush2.msra.mxu0 %v1056
        %3392 = vmatprep.mubr.f32.mxu0 %v1531
        %3393 = vmatmul.mubr.f32.gmra.mxu0 %v1523
        %v3394 = vpop.f32.mrf.mxu0
        %v3395 = vadd.f32 %v3325, %v3394
        %v3396 = vpop.f32.mrf.mxu0
        %3397 = vdwg.mxu0
        %3398 = vmatprep.subr.mxu0 0.0
        %3399 = vmatpush1.msra.mxu0 %v1087
        %3400 = vmatprep.subr.mxu0 0.0
        %3401 = vmatpush1.msra.mxu0 %v1086
        %3402 = vmatprep.subr.mxu0 0.0
        %3403 = vmatpush1.msra.mxu0 %v1085
        %3404 = vmatprep.subr.mxu0 0.0
        %3405 = vmatpush1.msra.mxu0 %v1084
        %3406 = vmatprep.subr.mxu0 0.0
        %3407 = vmatpush1.msra.mxu0 %v1083
        %3408 = vmatprep.subr.mxu0 0.0
        %3409 = vmatpush1.msra.mxu0 %v1082
        %3410 = vmatprep.subr.mxu0 0.0
        %3411 = vmatpush1.msra.mxu0 %v1081
        %3412 = vmatprep.subr.mxu0 0.0
        %3413 = vmatpush1.msra.mxu0 %v1080
        %3414 = vmatprep.subr.mxu0 0.0
        %3415 = vmatpush1.msra.mxu0 %v1079
        %3416 = vmatprep.subr.mxu0 0.0
        %3417 = vmatpush1.msra.mxu0 %v1078
        %3418 = vmatprep.subr.mxu0 0.0
        %3419 = vmatpush1.msra.mxu0 %v1077
        %3420 = vmatprep.subr.mxu0 0.0
        %3421 = vmatpush1.msra.mxu0 %v1076
        %3422 = vmatprep.subr.mxu0 0.0
        %3423 = vmatpush1.msra.mxu0 %v1075
        %3424 = vmatprep.subr.mxu0 0.0
        %3425 = vmatpush1.msra.mxu0 %v1074
        %3426 = vmatprep.subr.mxu0 0.0
        %3427 = vmatpush1.msra.mxu0 %v1073
        %3428 = vmatprep.subr.mxu0 0.0
        %3429 = vmatpush1.msra.mxu0 %v1072
        %3430 = vmatprep.subr.mxu0 0.0
        %3431 = vmatpush2.msra.mxu0 %v1103
        %3432 = vmatprep.subr.mxu0 0.0
        %3433 = vmatpush2.msra.mxu0 %v1102
        %3434 = vmatprep.subr.mxu0 0.0
        %3435 = vmatpush2.msra.mxu0 %v1101
        %3436 = vmatprep.subr.mxu0 0.0
        %3437 = vmatpush2.msra.mxu0 %v1100
        %3438 = vmatprep.subr.mxu0 0.0
        %3439 = vmatpush2.msra.mxu0 %v1099
        %3440 = vmatprep.subr.mxu0 0.0
        %3441 = vmatpush2.msra.mxu0 %v1098
        %3442 = vmatprep.subr.mxu0 0.0
        %3443 = vmatpush2.msra.mxu0 %v1097
        %3444 = vmatprep.subr.mxu0 0.0
        %3445 = vmatpush2.msra.mxu0 %v1096
        %3446 = vmatprep.subr.mxu0 0.0
        %3447 = vmatpush2.msra.mxu0 %v1095
        %3448 = vmatprep.subr.mxu0 0.0
        %3449 = vmatpush2.msra.mxu0 %v1094
        %3450 = vmatprep.subr.mxu0 0.0
        %3451 = vmatpush2.msra.mxu0 %v1093
        %3452 = vmatprep.subr.mxu0 0.0
        %3453 = vmatpush2.msra.mxu0 %v1092
        %3454 = vmatprep.subr.mxu0 0.0
        %3455 = vmatpush2.msra.mxu0 %v1091
        %3456 = vmatprep.subr.mxu0 0.0
        %3457 = vmatpush2.msra.mxu0 %v1090
        %3458 = vmatprep.subr.mxu0 0.0
        %3459 = vmatpush2.msra.mxu0 %v1089
        %3460 = vmatprep.subr.mxu0 0.0
        %3461 = vmatpush2.msra.mxu0 %v1088
        %3462 = vmatprep.mubr.f32.mxu0 %v1532
        %3463 = vmatmul.mubr.f32.gmra.mxu0 %v1530
        %v3464 = vpop.f32.mrf.mxu0
        %v3465 = vadd.f32 %v3395, %v3464
        %v3466 = vpop.f32.mrf.mxu0
        %3467 = vdwg.mxu0
        %3468 = vmatprep.subr.mxu0 0.0
        %3469 = vmatpush1.msra.mxu0 %v1119
        %3470 = vmatprep.subr.mxu0 0.0
        %3471 = vmatpush1.msra.mxu0 %v1118
        %3472 = vmatprep.subr.mxu0 0.0
        %3473 = vmatpush1.msra.mxu0 %v1117
        %3474 = vmatprep.subr.mxu0 0.0
        %3475 = vmatpush1.msra.mxu0 %v1116
        %3476 = vmatprep.subr.mxu0 0.0
        %3477 = vmatpush1.msra.mxu0 %v1115
        %3478 = vmatprep.subr.mxu0 0.0
        %3479 = vmatpush1.msra.mxu0 %v1114
        %3480 = vmatprep.subr.mxu0 0.0
        %3481 = vmatpush1.msra.mxu0 %v1113
        %3482 = vmatprep.subr.mxu0 0.0
        %3483 = vmatpush1.msra.mxu0 %v1112
        %3484 = vmatprep.subr.mxu0 0.0
        %3485 = vmatpush1.msra.mxu0 %v1111
        %3486 = vmatprep.subr.mxu0 0.0
        %3487 = vmatpush1.msra.mxu0 %v1110
        %3488 = vmatprep.subr.mxu0 0.0
        %3489 = vmatpush1.msra.mxu0 %v1109
        %3490 = vmatprep.subr.mxu0 0.0
        %3491 = vmatpush1.msra.mxu0 %v1108
        %3492 = vmatprep.subr.mxu0 0.0
        %3493 = vmatpush1.msra.mxu0 %v1107
        %3494 = vmatprep.subr.mxu0 0.0
        %3495 = vmatpush1.msra.mxu0 %v1106
        %3496 = vmatprep.subr.mxu0 0.0
        %3497 = vmatpush1.msra.mxu0 %v1105
        %3498 = vmatprep.subr.mxu0 0.0
        %3499 = vmatpush1.msra.mxu0 %v1104
        %3500 = vmatprep.subr.mxu0 0.0
        %3501 = vmatpush2.msra.mxu0 %v1135
        %3502 = vmatprep.subr.mxu0 0.0
        %3503 = vmatpush2.msra.mxu0 %v1134
        %3504 = vmatprep.subr.mxu0 0.0
        %3505 = vmatpush2.msra.mxu0 %v1133
        %3506 = vmatprep.subr.mxu0 0.0
        %3507 = vmatpush2.msra.mxu0 %v1132
        %3508 = vmatprep.subr.mxu0 0.0
        %3509 = vmatpush2.msra.mxu0 %v1131
        %3510 = vmatprep.subr.mxu0 0.0
        %3511 = vmatpush2.msra.mxu0 %v1130
        %3512 = vmatprep.subr.mxu0 0.0
        %3513 = vmatpush2.msra.mxu0 %v1129
        %3514 = vmatprep.subr.mxu0 0.0
        %3515 = vmatpush2.msra.mxu0 %v1128
        %3516 = vmatprep.subr.mxu0 0.0
        %3517 = vmatpush2.msra.mxu0 %v1127
        %3518 = vmatprep.subr.mxu0 0.0
        %3519 = vmatpush2.msra.mxu0 %v1126
        %3520 = vmatprep.subr.mxu0 0.0
        %3521 = vmatpush2.msra.mxu0 %v1125
        %3522 = vmatprep.subr.mxu0 0.0
        %3523 = vmatpush2.msra.mxu0 %v1124
        %3524 = vmatprep.subr.mxu0 0.0
        %3525 = vmatpush2.msra.mxu0 %v1123
        %3526 = vmatprep.subr.mxu0 0.0
        %3527 = vmatpush2.msra.mxu0 %v1122
        %3528 = vmatprep.subr.mxu0 0.0
        %3529 = vmatpush2.msra.mxu0 %v1121
        %3530 = vmatprep.subr.mxu0 0.0
        %3531 = vmatpush2.msra.mxu0 %v1120
        %3532 = vmatprep.mubr.f32.mxu0 %v1548
        %3533 = vmatmul.mubr.f32.gmra.mxu0 %v1540
        %v3534 = vpop.f32.mrf.mxu0
        %v3535 = vadd.f32 %v3465, %v3534
        %v3536 = vpop.f32.mrf.mxu0
        %3537 = vdwg.mxu0
        %3538 = vmatprep.subr.mxu0 0.0
        %3539 = vmatpush1.msra.mxu0 %v1151
        %3540 = vmatprep.subr.mxu0 0.0
        %3541 = vmatpush1.msra.mxu0 %v1150
        %3542 = vmatprep.subr.mxu0 0.0
        %3543 = vmatpush1.msra.mxu0 %v1149
        %3544 = vmatprep.subr.mxu0 0.0
        %3545 = vmatpush1.msra.mxu0 %v1148
        %3546 = vmatprep.subr.mxu0 0.0
        %3547 = vmatpush1.msra.mxu0 %v1147
        %3548 = vmatprep.subr.mxu0 0.0
        %3549 = vmatpush1.msra.mxu0 %v1146
        %3550 = vmatprep.subr.mxu0 0.0
        %3551 = vmatpush1.msra.mxu0 %v1145
        %3552 = vmatprep.subr.mxu0 0.0
        %3553 = vmatpush1.msra.mxu0 %v1144
        %3554 = vmatprep.subr.mxu0 0.0
        %3555 = vmatpush1.msra.mxu0 %v1143
        %3556 = vmatprep.subr.mxu0 0.0
        %3557 = vmatpush1.msra.mxu0 %v1142
        %3558 = vmatprep.subr.mxu0 0.0
        %3559 = vmatpush1.msra.mxu0 %v1141
        %3560 = vmatprep.subr.mxu0 0.0
        %3561 = vmatpush1.msra.mxu0 %v1140
        %3562 = vmatprep.subr.mxu0 0.0
        %3563 = vmatpush1.msra.mxu0 %v1139
        %3564 = vmatprep.subr.mxu0 0.0
        %3565 = vmatpush1.msra.mxu0 %v1138
        %3566 = vmatprep.subr.mxu0 0.0
        %3567 = vmatpush1.msra.mxu0 %v1137
        %3568 = vmatprep.subr.mxu0 0.0
        %3569 = vmatpush1.msra.mxu0 %v1136
        %3570 = vmatprep.subr.mxu0 0.0
        %3571 = vmatpush2.msra.mxu0 %v1167
        %3572 = vmatprep.subr.mxu0 0.0
        %3573 = vmatpush2.msra.mxu0 %v1166
        %3574 = vmatprep.subr.mxu0 0.0
        %3575 = vmatpush2.msra.mxu0 %v1165
        %3576 = vmatprep.subr.mxu0 0.0
        %3577 = vmatpush2.msra.mxu0 %v1164
        %3578 = vmatprep.subr.mxu0 0.0
        %3579 = vmatpush2.msra.mxu0 %v1163
        %3580 = vmatprep.subr.mxu0 0.0
        %3581 = vmatpush2.msra.mxu0 %v1162
        %3582 = vmatprep.subr.mxu0 0.0
        %3583 = vmatpush2.msra.mxu0 %v1161
        %3584 = vmatprep.subr.mxu0 0.0
        %3585 = vmatpush2.msra.mxu0 %v1160
        %3586 = vmatprep.subr.mxu0 0.0
        %3587 = vmatpush2.msra.mxu0 %v1159
        %3588 = vmatprep.subr.mxu0 0.0
        %3589 = vmatpush2.msra.mxu0 %v1158
        %3590 = vmatprep.subr.mxu0 0.0
        %3591 = vmatpush2.msra.mxu0 %v1157
        %3592 = vmatprep.subr.mxu0 0.0
        %3593 = vmatpush2.msra.mxu0 %v1156
        %3594 = vmatprep.subr.mxu0 0.0
        %3595 = vmatpush2.msra.mxu0 %v1155
        %3596 = vmatprep.subr.mxu0 0.0
        %3597 = vmatpush2.msra.mxu0 %v1154
        %3598 = vmatprep.subr.mxu0 0.0
        %3599 = vmatpush2.msra.mxu0 %v1153
        %3600 = vmatprep.subr.mxu0 0.0
        %3601 = vmatpush2.msra.mxu0 %v1152
        %3602 = vmatprep.mubr.f32.mxu0 %v1549
        %3603 = vmatmul.mubr.f32.gmra.mxu0 %v1547
        %v3604 = vpop.f32.mrf.mxu0
        %v3605 = vadd.f32 %v3535, %v3604
        %v3606 = vpop.f32.mrf.mxu0
        %3607 = vdwg.mxu0
        %3608 = vmatprep.subr.mxu0 0.0
        %3609 = vmatpush1.msra.mxu0 %v1183
        %3610 = vmatprep.subr.mxu0 0.0
        %3611 = vmatpush1.msra.mxu0 %v1182
        %3612 = vmatprep.subr.mxu0 0.0
        %3613 = vmatpush1.msra.mxu0 %v1181
        %3614 = vmatprep.subr.mxu0 0.0
        %3615 = vmatpush1.msra.mxu0 %v1180
        %3616 = vmatprep.subr.mxu0 0.0
        %3617 = vmatpush1.msra.mxu0 %v1179
        %3618 = vmatprep.subr.mxu0 0.0
        %3619 = vmatpush1.msra.mxu0 %v1178
        %3620 = vmatprep.subr.mxu0 0.0
        %3621 = vmatpush1.msra.mxu0 %v1177
        %3622 = vmatprep.subr.mxu0 0.0
        %3623 = vmatpush1.msra.mxu0 %v1176
        %3624 = vmatprep.subr.mxu0 0.0
        %3625 = vmatpush1.msra.mxu0 %v1175
        %3626 = vmatprep.subr.mxu0 0.0
        %3627 = vmatpush1.msra.mxu0 %v1174
        %3628 = vmatprep.subr.mxu0 0.0
        %3629 = vmatpush1.msra.mxu0 %v1173
        %3630 = vmatprep.subr.mxu0 0.0
        %3631 = vmatpush1.msra.mxu0 %v1172
        %3632 = vmatprep.subr.mxu0 0.0
        %3633 = vmatpush1.msra.mxu0 %v1171
        %3634 = vmatprep.subr.mxu0 0.0
        %3635 = vmatpush1.msra.mxu0 %v1170
        %3636 = vmatprep.subr.mxu0 0.0
        %3637 = vmatpush1.msra.mxu0 %v1169
        %3638 = vmatprep.subr.mxu0 0.0
        %3639 = vmatpush1.msra.mxu0 %v1168
        %3640 = vmatprep.subr.mxu0 0.0
        %3641 = vmatpush2.msra.mxu0 %v1199
        %3642 = vmatprep.subr.mxu0 0.0
        %3643 = vmatpush2.msra.mxu0 %v1198
        %3644 = vmatprep.subr.mxu0 0.0
        %3645 = vmatpush2.msra.mxu0 %v1197
        %3646 = vmatprep.subr.mxu0 0.0
        %3647 = vmatpush2.msra.mxu0 %v1196
        %3648 = vmatprep.subr.mxu0 0.0
        %3649 = vmatpush2.msra.mxu0 %v1195
        %3650 = vmatprep.subr.mxu0 0.0
        %3651 = vmatpush2.msra.mxu0 %v1194
        %3652 = vmatprep.subr.mxu0 0.0
        %3653 = vmatpush2.msra.mxu0 %v1193
        %3654 = vmatprep.subr.mxu0 0.0
        %3655 = vmatpush2.msra.mxu0 %v1192
        %3656 = vmatprep.subr.mxu0 0.0
        %3657 = vmatpush2.msra.mxu0 %v1191
        %3658 = vmatprep.subr.mxu0 0.0
        %3659 = vmatpush2.msra.mxu0 %v1190
        %3660 = vmatprep.subr.mxu0 0.0
        %3661 = vmatpush2.msra.mxu0 %v1189
        %3662 = vmatprep.subr.mxu0 0.0
        %3663 = vmatpush2.msra.mxu0 %v1188
        %3664 = vmatprep.subr.mxu0 0.0
        %3665 = vmatpush2.msra.mxu0 %v1187
        %3666 = vmatprep.subr.mxu0 0.0
        %3667 = vmatpush2.msra.mxu0 %v1186
        %3668 = vmatprep.subr.mxu0 0.0
        %3669 = vmatpush2.msra.mxu0 %v1185
        %3670 = vmatprep.subr.mxu0 0.0
        %3671 = vmatpush2.msra.mxu0 %v1184
        %3672 = vmatprep.mubr.f32.mxu0 %v1565
        %3673 = vmatmul.mubr.f32.gmra.mxu0 %v1557
        %v3674 = vpop.f32.mrf.mxu0
        %v3675 = vadd.f32 %v3605, %v3674
        %v3676 = vpop.f32.mrf.mxu0
        %3677 = vdwg.mxu0
        %3678 = vmatprep.subr.mxu0 0.0
        %3679 = vmatpush1.msra.mxu0 %v1215
        %3680 = vmatprep.subr.mxu0 0.0
        %3681 = vmatpush1.msra.mxu0 %v1214
        %3682 = vmatprep.subr.mxu0 0.0
        %3683 = vmatpush1.msra.mxu0 %v1213
        %3684 = vmatprep.subr.mxu0 0.0
        %3685 = vmatpush1.msra.mxu0 %v1212
        %3686 = vmatprep.subr.mxu0 0.0
        %3687 = vmatpush1.msra.mxu0 %v1211
        %3688 = vmatprep.subr.mxu0 0.0
        %3689 = vmatpush1.msra.mxu0 %v1210
        %3690 = vmatprep.subr.mxu0 0.0
        %3691 = vmatpush1.msra.mxu0 %v1209
        %3692 = vmatprep.subr.mxu0 0.0
        %3693 = vmatpush1.msra.mxu0 %v1208
        %3694 = vmatprep.subr.mxu0 0.0
        %3695 = vmatpush1.msra.mxu0 %v1207
        %3696 = vmatprep.subr.mxu0 0.0
        %3697 = vmatpush1.msra.mxu0 %v1206
        %3698 = vmatprep.subr.mxu0 0.0
        %3699 = vmatpush1.msra.mxu0 %v1205
        %3700 = vmatprep.subr.mxu0 0.0
        %3701 = vmatpush1.msra.mxu0 %v1204
        %3702 = vmatprep.subr.mxu0 0.0
        %3703 = vmatpush1.msra.mxu0 %v1203
        %3704 = vmatprep.subr.mxu0 0.0
        %3705 = vmatpush1.msra.mxu0 %v1202
        %3706 = vmatprep.subr.mxu0 0.0
        %3707 = vmatpush1.msra.mxu0 %v1201
        %3708 = vmatprep.subr.mxu0 0.0
        %3709 = vmatpush1.msra.mxu0 %v1200
        %3710 = vmatprep.subr.mxu0 0.0
        %3711 = vmatpush2.msra.mxu0 %v1231
        %3712 = vmatprep.subr.mxu0 0.0
        %3713 = vmatpush2.msra.mxu0 %v1230
        %3714 = vmatprep.subr.mxu0 0.0
        %3715 = vmatpush2.msra.mxu0 %v1229
        %3716 = vmatprep.subr.mxu0 0.0
        %3717 = vmatpush2.msra.mxu0 %v1228
        %3718 = vmatprep.subr.mxu0 0.0
        %3719 = vmatpush2.msra.mxu0 %v1227
        %3720 = vmatprep.subr.mxu0 0.0
        %3721 = vmatpush2.msra.mxu0 %v1226
        %3722 = vmatprep.subr.mxu0 0.0
        %3723 = vmatpush2.msra.mxu0 %v1225
        %3724 = vmatprep.subr.mxu0 0.0
        %3725 = vmatpush2.msra.mxu0 %v1224
        %3726 = vmatprep.subr.mxu0 0.0
        %3727 = vmatpush2.msra.mxu0 %v1223
        %3728 = vmatprep.subr.mxu0 0.0
        %3729 = vmatpush2.msra.mxu0 %v1222
        %3730 = vmatprep.subr.mxu0 0.0
        %3731 = vmatpush2.msra.mxu0 %v1221
        %3732 = vmatprep.subr.mxu0 0.0
        %3733 = vmatpush2.msra.mxu0 %v1220
        %3734 = vmatprep.subr.mxu0 0.0
        %3735 = vmatpush2.msra.mxu0 %v1219
        %3736 = vmatprep.subr.mxu0 0.0
        %3737 = vmatpush2.msra.mxu0 %v1218
        %3738 = vmatprep.subr.mxu0 0.0
        %3739 = vmatpush2.msra.mxu0 %v1217
        %3740 = vmatprep.subr.mxu0 0.0
        %3741 = vmatpush2.msra.mxu0 %v1216
        %3742 = vmatprep.mubr.f32.mxu0 %v1566
        %3743 = vmatmul.mubr.f32.gmra.mxu0 %v1564
        %v3744 = vpop.f32.mrf.mxu0
        %v3745 = vadd.f32 %v3675, %v3744
        %v3746 = vpop.f32.mrf.mxu0
        %3747 = vdwg.mxu0
        %3748 = vmatprep.subr.mxu0 0.0
        %3749 = vmatpush1.msra.mxu0 %v1247
        %3750 = vmatprep.subr.mxu0 0.0
        %3751 = vmatpush1.msra.mxu0 %v1246
        %3752 = vmatprep.subr.mxu0 0.0
        %3753 = vmatpush1.msra.mxu0 %v1245
        %3754 = vmatprep.subr.mxu0 0.0
        %3755 = vmatpush1.msra.mxu0 %v1244
        %3756 = vmatprep.subr.mxu0 0.0
        %3757 = vmatpush1.msra.mxu0 %v1243
        %3758 = vmatprep.subr.mxu0 0.0
        %3759 = vmatpush1.msra.mxu0 %v1242
        %3760 = vmatprep.subr.mxu0 0.0
        %3761 = vmatpush1.msra.mxu0 %v1241
        %3762 = vmatprep.subr.mxu0 0.0
        %3763 = vmatpush1.msra.mxu0 %v1240
        %3764 = vmatprep.subr.mxu0 0.0
        %3765 = vmatpush1.msra.mxu0 %v1239
        %3766 = vmatprep.subr.mxu0 0.0
        %3767 = vmatpush1.msra.mxu0 %v1238
        %3768 = vmatprep.subr.mxu0 0.0
        %3769 = vmatpush1.msra.mxu0 %v1237
        %3770 = vmatprep.subr.mxu0 0.0
        %3771 = vmatpush1.msra.mxu0 %v1236
        %3772 = vmatprep.subr.mxu0 0.0
        %3773 = vmatpush1.msra.mxu0 %v1235
        %3774 = vmatprep.subr.mxu0 0.0
        %3775 = vmatpush1.msra.mxu0 %v1234
        %3776 = vmatprep.subr.mxu0 0.0
        %3777 = vmatpush1.msra.mxu0 %v1233
        %3778 = vmatprep.subr.mxu0 0.0
        %3779 = vmatpush1.msra.mxu0 %v1232
        %3780 = vmatprep.subr.mxu0 0.0
        %3781 = vmatpush2.msra.mxu0 %v1263
        %3782 = vmatprep.subr.mxu0 0.0
        %3783 = vmatpush2.msra.mxu0 %v1262
        %3784 = vmatprep.subr.mxu0 0.0
        %3785 = vmatpush2.msra.mxu0 %v1261
        %3786 = vmatprep.subr.mxu0 0.0
        %3787 = vmatpush2.msra.mxu0 %v1260
        %3788 = vmatprep.subr.mxu0 0.0
        %3789 = vmatpush2.msra.mxu0 %v1259
        %3790 = vmatprep.subr.mxu0 0.0
        %3791 = vmatpush2.msra.mxu0 %v1258
        %3792 = vmatprep.subr.mxu0 0.0
        %3793 = vmatpush2.msra.mxu0 %v1257
        %3794 = vmatprep.subr.mxu0 0.0
        %3795 = vmatpush2.msra.mxu0 %v1256
        %3796 = vmatprep.subr.mxu0 0.0
        %3797 = vmatpush2.msra.mxu0 %v1255
        %3798 = vmatprep.subr.mxu0 0.0
        %3799 = vmatpush2.msra.mxu0 %v1254
        %3800 = vmatprep.subr.mxu0 0.0
        %3801 = vmatpush2.msra.mxu0 %v1253
        %3802 = vmatprep.subr.mxu0 0.0
        %3803 = vmatpush2.msra.mxu0 %v1252
        %3804 = vmatprep.subr.mxu0 0.0
        %3805 = vmatpush2.msra.mxu0 %v1251
        %3806 = vmatprep.subr.mxu0 0.0
        %3807 = vmatpush2.msra.mxu0 %v1250
        %3808 = vmatprep.subr.mxu0 0.0
        %3809 = vmatpush2.msra.mxu0 %v1249
        %3810 = vmatprep.subr.mxu0 0.0
        %3811 = vmatpush2.msra.mxu0 %v1248
        %3812 = vmatprep.mubr.f32.mxu0 %v1582
        %3813 = vmatmul.mubr.f32.gmra.mxu0 %v1574
        %v3814 = vpop.f32.mrf.mxu0
        %v3815 = vadd.f32 %v3745, %v3814
        %v3816 = vpop.f32.mrf.mxu0
        %3817 = vdwg.mxu0
        %3818 = vmatprep.subr.mxu0 0.0
        %3819 = vmatpush1.msra.mxu0 %v1279
        %3820 = vmatprep.subr.mxu0 0.0
        %3821 = vmatpush1.msra.mxu0 %v1278
        %3822 = vmatprep.subr.mxu0 0.0
        %3823 = vmatpush1.msra.mxu0 %v1277
        %3824 = vmatprep.subr.mxu0 0.0
        %3825 = vmatpush1.msra.mxu0 %v1276
        %3826 = vmatprep.subr.mxu0 0.0
        %3827 = vmatpush1.msra.mxu0 %v1275
        %3828 = vmatprep.subr.mxu0 0.0
        %3829 = vmatpush1.msra.mxu0 %v1274
        %3830 = vmatprep.subr.mxu0 0.0
        %3831 = vmatpush1.msra.mxu0 %v1273
        %3832 = vmatprep.subr.mxu0 0.0
        %3833 = vmatpush1.msra.mxu0 %v1272
        %3834 = vmatprep.subr.mxu0 0.0
        %3835 = vmatpush1.msra.mxu0 %v1271
        %3836 = vmatprep.subr.mxu0 0.0
        %3837 = vmatpush1.msra.mxu0 %v1270
        %3838 = vmatprep.subr.mxu0 0.0
        %3839 = vmatpush1.msra.mxu0 %v1269
        %3840 = vmatprep.subr.mxu0 0.0
        %3841 = vmatpush1.msra.mxu0 %v1268
        %3842 = vmatprep.subr.mxu0 0.0
        %3843 = vmatpush1.msra.mxu0 %v1267
        %3844 = vmatprep.subr.mxu0 0.0
        %3845 = vmatpush1.msra.mxu0 %v1266
        %3846 = vmatprep.subr.mxu0 0.0
        %3847 = vmatpush1.msra.mxu0 %v1265
        %3848 = vmatprep.subr.mxu0 0.0
        %3849 = vmatpush1.msra.mxu0 %v1264
        %3850 = vmatprep.subr.mxu0 0.0
        %3851 = vmatpush2.msra.mxu0 %v1295
        %3852 = vmatprep.subr.mxu0 0.0
        %3853 = vmatpush2.msra.mxu0 %v1294
        %3854 = vmatprep.subr.mxu0 0.0
        %3855 = vmatpush2.msra.mxu0 %v1293
        %3856 = vmatprep.subr.mxu0 0.0
        %3857 = vmatpush2.msra.mxu0 %v1292
        %3858 = vmatprep.subr.mxu0 0.0
        %3859 = vmatpush2.msra.mxu0 %v1291
        %3860 = vmatprep.subr.mxu0 0.0
        %3861 = vmatpush2.msra.mxu0 %v1290
        %3862 = vmatprep.subr.mxu0 0.0
        %3863 = vmatpush2.msra.mxu0 %v1289
        %3864 = vmatprep.subr.mxu0 0.0
        %3865 = vmatpush2.msra.mxu0 %v1288
        %3866 = vmatprep.subr.mxu0 0.0
        %3867 = vmatpush2.msra.mxu0 %v1287
        %3868 = vmatprep.subr.mxu0 0.0
        %3869 = vmatpush2.msra.mxu0 %v1286
        %3870 = vmatprep.subr.mxu0 0.0
        %3871 = vmatpush2.msra.mxu0 %v1285
        %3872 = vmatprep.subr.mxu0 0.0
        %3873 = vmatpush2.msra.mxu0 %v1284
        %3874 = vmatprep.subr.mxu0 0.0
        %3875 = vmatpush2.msra.mxu0 %v1283
        %3876 = vmatprep.subr.mxu0 0.0
        %3877 = vmatpush2.msra.mxu0 %v1282
        %3878 = vmatprep.subr.mxu0 0.0
        %3879 = vmatpush2.msra.mxu0 %v1281
        %3880 = vmatprep.subr.mxu0 0.0
        %3881 = vmatpush2.msra.mxu0 %v1280
        %3882 = vmatprep.mubr.f32.mxu0 %v1583
        %3883 = vmatmul.mubr.f32.gmra.mxu0 %v1581
        %v3884 = vpop.f32.mrf.mxu0
        %v3885 = vadd.f32 %v3815, %v3884
        %v3886 = vpop.f32.mrf.mxu0
        %3887 = vdwg.mxu0
        %v3888 = vadd.f32 %v255, %v3885
        %3889 = vst [vmem:[#allocation2] sm:$0x3] %v3888
        %p3890 = scmp.eq.s32.totalorder %s26, 3
        // Predicated region
        $region49: #{tpu_custom_call.1} parent=31 // pred_check
          %p3891 = pneg %p3890
        $region50: #{tpu_custom_call.1} parent=31 // pred_check_branch
          %3893 = sbr.rel (%p3891) target = $region52
        $region51: #{tpu_custom_call.1} parent=31 // pred_region
          %v3894 = vld [vmem:[#allocation2] sm:$0x3]
          %v3895 = vld [vmem:[#allocation8] sm:$0x1]
          %v3897 = vlaneseq
          %v3898 = vshrl.u32 %v3897, 7
          %v3899 = vsub.s32 0, %v3898
          %v3900 = vrot.slane %v3895, %v3899
          %v3902 = vadd.f32 %v3894, %v3900
          %3903 = vst [vmem:[#allocation9] sm:$0x3] %v3902
        $region52: #{tpu_custom_call.1} parent=31 // pred_fallthru
          _
        // Predicated region
        $region53: #{tpu_custom_call.1} parent=31 // pred_check
          %p3904 = pneg %p126
        $region54: #{tpu_custom_call.1} parent=31 // pred_check_branch
          %3906 = sbr.rel (%p3904) target = $region56
        $region55: #{tpu_custom_call.1} parent=31 // pred_region
          %s3908 = ssub.s32 32, 32
          %3909 = vsyncadd [#allocation5], %s3908
          %s3910 = smul.addr %s25, 32
          %s3911 = scalar_lea.hbm %s3, %s3910
          %s3913 = sshll.u32 [#allocation9], 4
          %s3914 = int_to_ptr.vmem [resolvable:$true] %s3913
          %3916 = dma.vmem_to_hbm [thread:$0]  %s3914, 32, %s3911, [#allocation5]
        $region56: #{tpu_custom_call.1} parent=31 // pred_fallthru
          _
        // Predicated region
        $region57: #{tpu_custom_call.1} parent=31 // pred_check
          %p3917 = pneg %p126
        $region58: #{tpu_custom_call.1} parent=31 // pred_check_branch
          %3919 = sbr.rel (%p3917) target = $region60
        $region59: #{tpu_custom_call.1} parent=31 // pred_region
          %3920 = dma.done [#allocation5], 32
        $region60: #{tpu_custom_call.1} parent=31 // pred_fallthru
          _
      $region32: #{tpu_custom_call.1} parent=5 // pred_fallthru
        _
      %p3921 = scmp.le.s32.totalorder 2, %s16
      // Predicated region
      $region61: #{tpu_custom_call.1} parent=5 // pred_check
        %p3922 = pneg %p3921
      $region62: #{tpu_custom_call.1} parent=5 // pred_check_branch
        %3924 = sbr.rel (%p3922) target = $region64
      $region63: #{tpu_custom_call.1} parent=5 // pred_region
        %s3925 = ssub.s32 %s16, 2
      $region64: #{tpu_custom_call.1} parent=5 // pred_fallthru
        _
    $region6: #{tpu_custom_call.1} parent=1 // loop_footer
      %s20 = sadd.s32 1, %s16
    $region7: #{tpu_custom_call.1} parent=1 // loop_footer_branch
      %15 = sbr.rel target = $region3
    $region8: #{tpu_custom_call.1} parent=1 // loop_exit
      _
    %3926 = vsyncpa [#allocation4], 1
    %s3927 = scalar_lea.sflag [#allocation4], 1
    %3928 = vsyncpa %s3927, 1
    %3929 = vsyncpa [#allocation7], 1
    %s3930 = scalar_lea.sflag [#allocation7], 1
    %3931 = vsyncpa %s3930, 1
    %3932 = vsyncpa [#allocation5], 1
    %s3933 = scalar_lea.sflag [#allocation5], 1
    %3934 = vsyncpa %s3933, 1

</llo_original>
